<compile_context>
chip_gen: v7x
topology: tpu7x:2x2x1
jax: 0.10.0
libtpu: 0.0.40
codegen_flags: <defaults>
</compile_context>

<pallas_src>
import functools

import jax
import jax.numpy as jnp
from jax.experimental import pallas as pl
from jax.experimental.pallas import tpu as pltpu


# ----------------------------------------------------------------------------
# Fused kernel: conv3x3 (9 shifted matmuls) + bias + ReLU + global avg pool + fc
#   x_ref : ((H+3)*(W+2), Cin)   padded image, spatially flattened (per batch element)
#   w_ref : (9, Cin, Cout)       conv taps, t = kh*3 + kw
#   cb_ref: (1, Cout)            conv bias
#   fw_ref: (Cout, num_classes)  fc weight
#   fb_ref: (1, num_classes)     fc bias
#   o_ref : (1, num_classes)     logits for this batch element
# ----------------------------------------------------------------------------
def fused_backbone_kernel(x_ref, w_ref, cb_ref, fw_ref, fb_ref, o_ref,
                          *, H, W, Cout, row_chunk):
    Wp = W + 2
    inv_hw = 1.0 / float(H * W)

    # Column-validity mask (zeros the 2 pad columns of each output row) with the global
    # average-pool scale folded in. Built in-kernel from an iota (no HBM input needed);
    # the pattern repeats every Wp rows, so one full-chunk-sized mask serves every chunk.
    m_full = row_chunk * Wp
    col = jax.lax.broadcasted_iota(jnp.int32, (m_full, 1), 0) % Wp
    mask_full = (col < W).astype(jnp.float32) * inv_hw            # (m_full, 1)

    pooled = jnp.zeros((1, Cout), jnp.float32)

    # Static chunk loop over output rows bounds the live (m, Cout) activation slab.
    for h0 in range(0, H, row_chunk):
        hr = min(row_chunk, H - h0)
        m = hr * Wp                      # output rows computed over padded width (masked)
        base = h0 * Wp

        acc = jnp.zeros((m, Cout), jnp.float32)
        for kh in range(3):
            for kw in range(3):
                # tap (kh, kw) of output flat-row r comes from padded flat-row r + kh*Wp + kw
                xs = x_ref[pl.ds(base + kh * Wp + kw, m), :]       # (m, Cin), static start
                acc = acc + jnp.dot(xs, w_ref[kh * 3 + kw],
                                    preferred_element_type=jnp.float32)

        feats = jnp.maximum(acc + cb_ref[...], 0.0)                # bias + ReLU
        mask = mask_full if m == m_full else mask_full[:m]
        pooled = pooled + jnp.sum(feats * mask, axis=0, keepdims=True)

    # pooled already carries the 1/(H*W) scale -> global avg pool + flatten; then fc head.
    logits = jnp.dot(pooled, fw_ref[...],
                     preferred_element_type=jnp.float32) + fb_ref[...]
    o_ref[...] = logits.astype(o_ref.dtype)


# ----------------------------------------------------------------------------
# Wrapper
# ----------------------------------------------------------------------------
def backbone_model_forward(x_nchw, params, *, row_chunk=8):
    """Forward matching backbone_model.forward: backbone -> avgpool -> flatten -> fc."""
    conv_w = params["conv_w"]           # (3, 3, Cin, Cout)  HWIO
    conv_b = params["conv_b"]           # (Cout,)
    fc_w = params["fc_w"]               # (Cout, num_classes)
    fc_b = params["fc_b"]               # (num_classes,)

    B, Cin, H, W = x_nchw.shape
    Cout = conv_w.shape[-1]
    num_classes = fc_w.shape[-1]
    Wp = W + 2

    # NCHW -> NHWC, pad (top=1, bottom=2, left=1, right=1), flatten spatial.
    # (bottom pad of 2 gives slack so the largest tap's shifted slice stays in bounds;
    #  the extra rows only feed masked-out pad columns.)
    x_nhwc = jnp.transpose(x_nchw, (0, 2, 3, 1)).astype(jnp.float32)
    x_pad = jnp.pad(x_nhwc, ((0, 0), (1, 2), (1, 1), (0, 0)))
    Np = (H + 3) * Wp
    x_flat = x_pad.reshape(B, Np, Cin)

    w9 = conv_w.reshape(9, Cin, Cout).astype(jnp.float32)
    cb = conv_b.reshape(1, Cout).astype(jnp.float32)
    fb = fc_b.reshape(1, num_classes).astype(jnp.float32)

    row_chunk = max(1, min(H, row_chunk))
    kernel = functools.partial(fused_backbone_kernel,
                               H=H, W=W, Cout=Cout, row_chunk=row_chunk)

    out = pl.pallas_call(
        kernel,
        out_shape=jax.ShapeDtypeStruct((B, 1, num_classes), jnp.float32),
        grid_spec=pltpu.PrefetchScalarGridSpec(
            num_scalar_prefetch=0,
            grid=(B,),
            in_specs=[
                pl.BlockSpec((None, Np, Cin), lambda b: (b, 0, 0)),      # padded image (per b)
                pl.BlockSpec((9, Cin, Cout), lambda b: (0, 0, 0)),       # conv taps (resident)
                pl.BlockSpec((1, Cout), lambda b: (0, 0)),               # conv bias (resident)
                pl.BlockSpec((Cout, num_classes), lambda b: (0, 0)),     # fc weight (resident)
                pl.BlockSpec((1, num_classes), lambda b: (0, 0)),        # fc bias (resident)
            ],
            out_specs=pl.BlockSpec((None, 1, num_classes), lambda b: (b, 0, 0)),
        ),
        compiler_params=pltpu.CompilerParams(
            dimension_semantics=("parallel",)),                          # shards B over 2 TCs (v7x)
    )(x_flat, w9, cb, fc_w.astype(jnp.float32), fb)

    return out.reshape(B, num_classes)


# ----------------------------------------------------------------------------
# Deterministic parameter init + pure-JAX reference
# ----------------------------------------------------------------------------
def init_params(key, cin, num_ftrs, num_classes):
    k0, k1, k2, k3 = jax.random.split(key, 4)
    return {
        "conv_w": jax.random.normal(k0, (3, 3, cin, num_ftrs), jnp.float32) * 0.1,
        "conv_b": jax.random.normal(k1, (num_ftrs,), jnp.float32) * 0.01,
        "fc_w":   jax.random.normal(k2, (num_ftrs, num_classes), jnp.float32) * 0.1,
        "fc_b":   jax.random.normal(k3, (num_classes,), jnp.float32) * 0.01,
    }


def reference_forward(x_nchw, params):
    x_nhwc = jnp.transpose(x_nchw, (0, 2, 3, 1))
    feats = jax.lax.conv_general_dilated(
        x_nhwc, params["conv_w"], window_strides=(1, 1), padding="SAME",
        dimension_numbers=("NHWC", "HWIO", "NHWC"))
    feats = jnp.maximum(feats + params["conv_b"], 0.0)
    pooled = jnp.mean(feats, axis=(1, 2))                       # global avg pool + flatten
    return pooled @ params["fc_w"] + params["fc_b"]


if __name__ == "__main__":
    key = jax.random.PRNGKey(0)
    kx, kp = jax.random.split(key)

    B, Cin, H, W = 2, 3, 16, 16
    num_ftrs, num_classes = 32, 5

    x = jax.random.normal(kx, (B, Cin, H, W), jnp.float32)      # PyTorch-style NCHW input
    params = init_params(kp, Cin, num_ftrs, num_classes)

    out = backbone_model_forward(x, params)                     # row_chunk=8 -> exercises 2 chunks
    out = jax.block_until_ready(out)

    ref = reference_forward(x, params)
    assert out.shape == (B, num_classes)
    assert jnp.allclose(out, ref, atol=1e-4, rtol=1e-4), "mismatch vs reference"

    print("KERNEL_OK")
</pallas_src>

<mosaic_0001>
module attributes {stable_mosaic.version = 11 : i64} {
  func.func @fused_backbone_kernel(%arg0: i32, %arg1: memref<1x342x3xf32, #tpu.memory_space<vmem>>, %arg2: memref<9x3x32xf32, #tpu.memory_space<vmem>>, %arg3: memref<1x32xf32, #tpu.memory_space<vmem>>, %arg4: memref<32x5xf32, #tpu.memory_space<vmem>>, %arg5: memref<1x5xf32, #tpu.memory_space<vmem>>, %arg6: memref<1x1x5xf32, #tpu.memory_space<vmem>>) attributes {dimension_semantics = [#tpu.dimension_semantics<parallel>], iteration_bounds = array<i64: 2>, scalar_prefetch = 0 : i64, scratch_operands = 0 : i64, tpu.core_type = #tpu.core_type<tc>, window_params = [{transform_indices = @transform_0, window_bounds = array<i64: 1, 342, 3>}, {pipeline_mode = #tpu.pipeline_mode<synchronous>, transform_indices = @transform_1, window_bounds = array<i64: 9, 3, 32>}, {pipeline_mode = #tpu.pipeline_mode<synchronous>, transform_indices = @transform_2, window_bounds = array<i64: 1, 32>}, {pipeline_mode = #tpu.pipeline_mode<synchronous>, transform_indices = @transform_3, window_bounds = array<i64: 32, 5>}, {pipeline_mode = #tpu.pipeline_mode<synchronous>, transform_indices = @transform_4, window_bounds = array<i64: 1, 5>}, {transform_indices = @transform_5, window_bounds = array<i64: 1, 1, 5>}]} {
    %0 = tpu.iota {dimensions = array<i32: 0>} : vector<144x1xi32>
    %c18_i32 = arith.constant 18 : i32
    %c0_i32 = arith.constant 0 : i32
    %1 = arith.cmpi eq, %c18_i32, %c0_i32 : i32
    %c1_i32 = arith.constant 1 : i32
    %2 = arith.select %1, %c1_i32, %c18_i32 : i32
    %3 = vector.broadcast %2 : i32 to vector<144x1xi32>
    %4 = arith.remsi %0, %3 : vector<144x1xi32>
    %c0_i32_0 = arith.constant 0 : i32
    %5 = vector.broadcast %c0_i32_0 : i32 to vector<144x1xi32>
    %6 = arith.cmpi ne, %4, %5 : vector<144x1xi32>
    %c0_i32_1 = arith.constant 0 : i32
    %7 = vector.broadcast %c0_i32_1 : i32 to vector<144x1xi32>
    %8 = arith.cmpi slt, %4, %7 : vector<144x1xi32>
    %c0_i32_2 = arith.constant 0 : i32
    %9 = arith.cmpi slt, %2, %c0_i32_2 : i32
    %10 = vector.broadcast %9 : i1 to vector<144x1xi1>
    %11 = vector.broadcast %10 : vector<144x1xi1> to vector<144x1xi1>
    %12 = arith.xori %8, %11 : vector<144x1xi1>
    %13 = arith.andi %12, %6 : vector<144x1xi1>
    %14 = vector.broadcast %2 : i32 to vector<144x1xi32>
    %15 = arith.addi %4, %14 : vector<144x1xi32>
    %16 = arith.select %13, %15, %4 : vector<144x1xi1>, vector<144x1xi32>
    %c16_i32 = arith.constant 16 : i32
    %17 = vector.broadcast %c16_i32 : i32 to vector<144x1xi32>
    %18 = arith.cmpi slt, %16, %17 : vector<144x1xi32>
    %19 = arith.extui %18 : vector<144x1xi1> to vector<144x1xi32>
    %20 = arith.sitofp %19 : vector<144x1xi32> to vector<144x1xf32>
    %cst = arith.constant 3.906250e-03 : f32
    %21 = vector.broadcast %cst : f32 to vector<144x1xf32>
    %22 = arith.mulf %20, %21 : vector<144x1xf32>
    %cst_3 = arith.constant 0.000000e+00 : f32
    %23 = vector.broadcast %cst_3 : f32 to vector<1x32xf32>
    %cst_4 = arith.constant 0.000000e+00 : f32
    %24 = vector.broadcast %cst_4 : f32 to vector<144x32xf32>
    %c0 = arith.constant 0 : index
    %c0_5 = arith.constant 0 : index
    %c0_6 = arith.constant 0 : index
    %25 = vector.load %arg1[%c0, %c0_5, %c0_6] : memref<1x342x3xf32, #tpu.memory_space<vmem>>, vector<1x144x3xf32>
    %26 = vector.shape_cast %25 : vector<1x144x3xf32> to vector<144x3xf32>
    %c0_7 = arith.constant 0 : index
    %c0_8 = arith.constant 0 : index
    %c0_9 = arith.constant 0 : index
    %27 = vector.load %arg2[%c0_7, %c0_8, %c0_9] : memref<9x3x32xf32, #tpu.memory_space<vmem>>, vector<1x3x32xf32>
    %28 = vector.shape_cast %27 : vector<1x3x32xf32> to vector<3x32xf32>
    %cst_10 = arith.constant dense<0.000000e+00> : vector<144x32xf32>
    %29 = tpu.matmul %26, %28, %cst_10 {dimension_numbers = #tpu.dot_dimension_numbers<[1], [0], [0], [1], [0, 0, 1, 1], [], []>} : vector<144x3xf32>, vector<3x32xf32>, vector<144x32xf32> -> vector<144x32xf32>
    %30 = arith.addf %24, %29 : vector<144x32xf32>
    %c0_11 = arith.constant 0 : index
    %c1 = arith.constant 1 : index
    %c0_12 = arith.constant 0 : index
    %31 = vector.load %arg1[%c0_11, %c1, %c0_12] : memref<1x342x3xf32, #tpu.memory_space<vmem>>, vector<1x144x3xf32>
    %32 = vector.shape_cast %31 : vector<1x144x3xf32> to vector<144x3xf32>
    %c1_13 = arith.constant 1 : index
    %c0_14 = arith.constant 0 : index
    %c0_15 = arith.constant 0 : index
    %33 = vector.load %arg2[%c1_13, %c0_14, %c0_15] : memref<9x3x32xf32, #tpu.memory_space<vmem>>, vector<1x3x32xf32>
    %34 = vector.shape_cast %33 : vector<1x3x32xf32> to vector<3x32xf32>
    %cst_16 = arith.constant dense<0.000000e+00> : vector<144x32xf32>
    %35 = tpu.matmul %32, %34, %cst_16 {dimension_numbers = #tpu.dot_dimension_numbers<[1], [0], [0], [1], [0, 0, 1, 1], [], []>} : vector<144x3xf32>, vector<3x32xf32>, vector<144x32xf32> -> vector<144x32xf32>
    %36 = arith.addf %30, %35 : vector<144x32xf32>
    %c0_17 = arith.constant 0 : index
    %c2 = arith.constant 2 : index
    %c0_18 = arith.constant 0 : index
    %37 = vector.load %arg1[%c0_17, %c2, %c0_18] : memref<1x342x3xf32, #tpu.memory_space<vmem>>, vector<1x144x3xf32>
    %38 = vector.shape_cast %37 : vector<1x144x3xf32> to vector<144x3xf32>
    %c2_19 = arith.constant 2 : index
    %c0_20 = arith.constant 0 : index
    %c0_21 = arith.constant 0 : index
    %39 = vector.load %arg2[%c2_19, %c0_20, %c0_21] : memref<9x3x32xf32, #tpu.memory_space<vmem>>, vector<1x3x32xf32>
    %40 = vector.shape_cast %39 : vector<1x3x32xf32> to vector<3x32xf32>
    %cst_22 = arith.constant dense<0.000000e+00> : vector<144x32xf32>
    %41 = tpu.matmul %38, %40, %cst_22 {dimension_numbers = #tpu.dot_dimension_numbers<[1], [0], [0], [1], [0, 0, 1, 1], [], []>} : vector<144x3xf32>, vector<3x32xf32>, vector<144x32xf32> -> vector<144x32xf32>
    %42 = arith.addf %36, %41 : vector<144x32xf32>
    %c0_23 = arith.constant 0 : index
    %c18 = arith.constant 18 : index
    %c0_24 = arith.constant 0 : index
    %43 = vector.load %arg1[%c0_23, %c18, %c0_24] : memref<1x342x3xf32, #tpu.memory_space<vmem>>, vector<1x144x3xf32>
    %44 = vector.shape_cast %43 : vector<1x144x3xf32> to vector<144x3xf32>
    %c3 = arith.constant 3 : index
    %c0_25 = arith.constant 0 : index
    %c0_26 = arith.constant 0 : index
    %45 = vector.load %arg2[%c3, %c0_25, %c0_26] : memref<9x3x32xf32, #tpu.memory_space<vmem>>, vector<1x3x32xf32>
    %46 = vector.shape_cast %45 : vector<1x3x32xf32> to vector<3x32xf32>
    %cst_27 = arith.constant dense<0.000000e+00> : vector<144x32xf32>
    %47 = tpu.matmul %44, %46, %cst_27 {dimension_numbers = #tpu.dot_dimension_numbers<[1], [0], [0], [1], [0, 0, 1, 1], [], []>} : vector<144x3xf32>, vector<3x32xf32>, vector<144x32xf32> -> vector<144x32xf32>
    %48 = arith.addf %42, %47 : vector<144x32xf32>
    %c0_28 = arith.constant 0 : index
    %c19 = arith.constant 19 : index
    %c0_29 = arith.constant 0 : index
    %49 = vector.load %arg1[%c0_28, %c19, %c0_29] : memref<1x342x3xf32, #tpu.memory_space<vmem>>, vector<1x144x3xf32>
    %50 = vector.shape_cast %49 : vector<1x144x3xf32> to vector<144x3xf32>
    %c4 = arith.constant 4 : index
    %c0_30 = arith.constant 0 : index
    %c0_31 = arith.constant 0 : index
    %51 = vector.load %arg2[%c4, %c0_30, %c0_31] : memref<9x3x32xf32, #tpu.memory_space<vmem>>, vector<1x3x32xf32>
    %52 = vector.shape_cast %51 : vector<1x3x32xf32> to vector<3x32xf32>
    %cst_32 = arith.constant dense<0.000000e+00> : vector<144x32xf32>
    %53 = tpu.matmul %50, %52, %cst_32 {dimension_numbers = #tpu.dot_dimension_numbers<[1], [0], [0], [1], [0, 0, 1, 1], [], []>} : vector<144x3xf32>, vector<3x32xf32>, vector<144x32xf32> -> vector<144x32xf32>
    %54 = arith.addf %48, %53 : vector<144x32xf32>
    %c0_33 = arith.constant 0 : index
    %c20 = arith.constant 20 : index
    %c0_34 = arith.constant 0 : index
    %55 = vector.load %arg1[%c0_33, %c20, %c0_34] : memref<1x342x3xf32, #tpu.memory_space<vmem>>, vector<1x144x3xf32>
    %56 = vector.shape_cast %55 : vector<1x144x3xf32> to vector<144x3xf32>
    %c5 = arith.constant 5 : index
    %c0_35 = arith.constant 0 : index
    %c0_36 = arith.constant 0 : index
    %57 = vector.load %arg2[%c5, %c0_35, %c0_36] : memref<9x3x32xf32, #tpu.memory_space<vmem>>, vector<1x3x32xf32>
    %58 = vector.shape_cast %57 : vector<1x3x32xf32> to vector<3x32xf32>
    %cst_37 = arith.constant dense<0.000000e+00> : vector<144x32xf32>
    %59 = tpu.matmul %56, %58, %cst_37 {dimension_numbers = #tpu.dot_dimension_numbers<[1], [0], [0], [1], [0, 0, 1, 1], [], []>} : vector<144x3xf32>, vector<3x32xf32>, vector<144x32xf32> -> vector<144x32xf32>
    %60 = arith.addf %54, %59 : vector<144x32xf32>
    %c0_38 = arith.constant 0 : index
    %c36 = arith.constant 36 : index
    %c0_39 = arith.constant 0 : index
    %61 = vector.load %arg1[%c0_38, %c36, %c0_39] : memref<1x342x3xf32, #tpu.memory_space<vmem>>, vector<1x144x3xf32>
    %62 = vector.shape_cast %61 : vector<1x144x3xf32> to vector<144x3xf32>
    %c6 = arith.constant 6 : index
    %c0_40 = arith.constant 0 : index
    %c0_41 = arith.constant 0 : index
    %63 = vector.load %arg2[%c6, %c0_40, %c0_41] : memref<9x3x32xf32, #tpu.memory_space<vmem>>, vector<1x3x32xf32>
    %64 = vector.shape_cast %63 : vector<1x3x32xf32> to vector<3x32xf32>
    %cst_42 = arith.constant dense<0.000000e+00> : vector<144x32xf32>
    %65 = tpu.matmul %62, %64, %cst_42 {dimension_numbers = #tpu.dot_dimension_numbers<[1], [0], [0], [1], [0, 0, 1, 1], [], []>} : vector<144x3xf32>, vector<3x32xf32>, vector<144x32xf32> -> vector<144x32xf32>
    %66 = arith.addf %60, %65 : vector<144x32xf32>
    %c0_43 = arith.constant 0 : index
    %c37 = arith.constant 37 : index
    %c0_44 = arith.constant 0 : index
    %67 = vector.load %arg1[%c0_43, %c37, %c0_44] : memref<1x342x3xf32, #tpu.memory_space<vmem>>, vector<1x144x3xf32>
    %68 = vector.shape_cast %67 : vector<1x144x3xf32> to vector<144x3xf32>
    %c7 = arith.constant 7 : index
    %c0_45 = arith.constant 0 : index
    %c0_46 = arith.constant 0 : index
    %69 = vector.load %arg2[%c7, %c0_45, %c0_46] : memref<9x3x32xf32, #tpu.memory_space<vmem>>, vector<1x3x32xf32>
    %70 = vector.shape_cast %69 : vector<1x3x32xf32> to vector<3x32xf32>
    %cst_47 = arith.constant dense<0.000000e+00> : vector<144x32xf32>
    %71 = tpu.matmul %68, %70, %cst_47 {dimension_numbers = #tpu.dot_dimension_numbers<[1], [0], [0], [1], [0, 0, 1, 1], [], []>} : vector<144x3xf32>, vector<3x32xf32>, vector<144x32xf32> -> vector<144x32xf32>
    %72 = arith.addf %66, %71 : vector<144x32xf32>
    %c0_48 = arith.constant 0 : index
    %c38 = arith.constant 38 : index
    %c0_49 = arith.constant 0 : index
    %73 = vector.load %arg1[%c0_48, %c38, %c0_49] : memref<1x342x3xf32, #tpu.memory_space<vmem>>, vector<1x144x3xf32>
    %74 = vector.shape_cast %73 : vector<1x144x3xf32> to vector<144x3xf32>
    %c8 = arith.constant 8 : index
    %c0_50 = arith.constant 0 : index
    %c0_51 = arith.constant 0 : index
    %75 = vector.load %arg2[%c8, %c0_50, %c0_51] : memref<9x3x32xf32, #tpu.memory_space<vmem>>, vector<1x3x32xf32>
    %76 = vector.shape_cast %75 : vector<1x3x32xf32> to vector<3x32xf32>
    %cst_52 = arith.constant dense<0.000000e+00> : vector<144x32xf32>
    %77 = tpu.matmul %74, %76, %cst_52 {dimension_numbers = #tpu.dot_dimension_numbers<[1], [0], [0], [1], [0, 0, 1, 1], [], []>} : vector<144x3xf32>, vector<3x32xf32>, vector<144x32xf32> -> vector<144x32xf32>
    %78 = arith.addf %72, %77 : vector<144x32xf32>
    %c0_53 = arith.constant 0 : index
    %c0_54 = arith.constant 0 : index
    %79 = vector.load %arg3[%c0_53, %c0_54] : memref<1x32xf32, #tpu.memory_space<vmem>>, vector<1x32xf32>
    %80 = vector.broadcast %79 : vector<1x32xf32> to vector<144x32xf32>
    %81 = arith.addf %78, %80 : vector<144x32xf32>
    %cst_55 = arith.constant 0.000000e+00 : f32
    %82 = vector.broadcast %cst_55 : f32 to vector<144x32xf32>
    %83 = arith.maximumf %81, %82 : vector<144x32xf32>
    %84 = vector.broadcast %22 : vector<144x1xf32> to vector<144x32xf32>
    %85 = arith.mulf %83, %84 : vector<144x32xf32>
    %cst_56 = arith.constant dense<0.000000e+00> : vector<32xf32>
    %86 = vector.multi_reduction <add>, %85, %cst_56 [0] : vector<144x32xf32> to vector<32xf32>
    %87 = vector.shape_cast %86 : vector<32xf32> to vector<1x32xf32>
    %88 = arith.addf %23, %87 : vector<1x32xf32>
    %cst_57 = arith.constant 0.000000e+00 : f32
    %89 = vector.broadcast %cst_57 : f32 to vector<144x32xf32>
    %c0_58 = arith.constant 0 : index
    %c144 = arith.constant 144 : index
    %c0_59 = arith.constant 0 : index
    %90 = vector.load %arg1[%c0_58, %c144, %c0_59] : memref<1x342x3xf32, #tpu.memory_space<vmem>>, vector<1x144x3xf32>
    %91 = vector.shape_cast %90 : vector<1x144x3xf32> to vector<144x3xf32>
    %c0_60 = arith.constant 0 : index
    %c0_61 = arith.constant 0 : index
    %c0_62 = arith.constant 0 : index
    %92 = vector.load %arg2[%c0_60, %c0_61, %c0_62] : memref<9x3x32xf32, #tpu.memory_space<vmem>>, vector<1x3x32xf32>
    %93 = vector.shape_cast %92 : vector<1x3x32xf32> to vector<3x32xf32>
    %cst_63 = arith.constant dense<0.000000e+00> : vector<144x32xf32>
    %94 = tpu.matmul %91, %93, %cst_63 {dimension_numbers = #tpu.dot_dimension_numbers<[1], [0], [0], [1], [0, 0, 1, 1], [], []>} : vector<144x3xf32>, vector<3x32xf32>, vector<144x32xf32> -> vector<144x32xf32>
    %95 = arith.addf %89, %94 : vector<144x32xf32>
    %c0_64 = arith.constant 0 : index
    %c145 = arith.constant 145 : index
    %c0_65 = arith.constant 0 : index
    %96 = vector.load %arg1[%c0_64, %c145, %c0_65] : memref<1x342x3xf32, #tpu.memory_space<vmem>>, vector<1x144x3xf32>
    %97 = vector.shape_cast %96 : vector<1x144x3xf32> to vector<144x3xf32>
    %c1_66 = arith.constant 1 : index
    %c0_67 = arith.constant 0 : index
    %c0_68 = arith.constant 0 : index
    %98 = vector.load %arg2[%c1_66, %c0_67, %c0_68] : memref<9x3x32xf32, #tpu.memory_space<vmem>>, vector<1x3x32xf32>
    %99 = vector.shape_cast %98 : vector<1x3x32xf32> to vector<3x32xf32>
    %cst_69 = arith.constant dense<0.000000e+00> : vector<144x32xf32>
    %100 = tpu.matmul %97, %99, %cst_69 {dimension_numbers = #tpu.dot_dimension_numbers<[1], [0], [0], [1], [0, 0, 1, 1], [], []>} : vector<144x3xf32>, vector<3x32xf32>, vector<144x32xf32> -> vector<144x32xf32>
    %101 = arith.addf %95, %100 : vector<144x32xf32>
    %c0_70 = arith.constant 0 : index
    %c146 = arith.constant 146 : index
    %c0_71 = arith.constant 0 : index
    %102 = vector.load %arg1[%c0_70, %c146, %c0_71] : memref<1x342x3xf32, #tpu.memory_space<vmem>>, vector<1x144x3xf32>
    %103 = vector.shape_cast %102 : vector<1x144x3xf32> to vector<144x3xf32>
    %c2_72 = arith.constant 2 : index
    %c0_73 = arith.constant 0 : index
    %c0_74 = arith.constant 0 : index
    %104 = vector.load %arg2[%c2_72, %c0_73, %c0_74] : memref<9x3x32xf32, #tpu.memory_space<vmem>>, vector<1x3x32xf32>
    %105 = vector.shape_cast %104 : vector<1x3x32xf32> to vector<3x32xf32>
    %cst_75 = arith.constant dense<0.000000e+00> : vector<144x32xf32>
    %106 = tpu.matmul %103, %105, %cst_75 {dimension_numbers = #tpu.dot_dimension_numbers<[1], [0], [0], [1], [0, 0, 1, 1], [], []>} : vector<144x3xf32>, vector<3x32xf32>, vector<144x32xf32> -> vector<144x32xf32>
    %107 = arith.addf %101, %106 : vector<144x32xf32>
    %c0_76 = arith.constant 0 : index
    %c162 = arith.constant 162 : index
    %c0_77 = arith.constant 0 : index
    %108 = vector.load %arg1[%c0_76, %c162, %c0_77] : memref<1x342x3xf32, #tpu.memory_space<vmem>>, vector<1x144x3xf32>
    %109 = vector.shape_cast %108 : vector<1x144x3xf32> to vector<144x3xf32>
    %c3_78 = arith.constant 3 : index
    %c0_79 = arith.constant 0 : index
    %c0_80 = arith.constant 0 : index
    %110 = vector.load %arg2[%c3_78, %c0_79, %c0_80] : memref<9x3x32xf32, #tpu.memory_space<vmem>>, vector<1x3x32xf32>
    %111 = vector.shape_cast %110 : vector<1x3x32xf32> to vector<3x32xf32>
    %cst_81 = arith.constant dense<0.000000e+00> : vector<144x32xf32>
    %112 = tpu.matmul %109, %111, %cst_81 {dimension_numbers = #tpu.dot_dimension_numbers<[1], [0], [0], [1], [0, 0, 1, 1], [], []>} : vector<144x3xf32>, vector<3x32xf32>, vector<144x32xf32> -> vector<144x32xf32>
    %113 = arith.addf %107, %112 : vector<144x32xf32>
    %c0_82 = arith.constant 0 : index
    %c163 = arith.constant 163 : index
    %c0_83 = arith.constant 0 : index
    %114 = vector.load %arg1[%c0_82, %c163, %c0_83] : memref<1x342x3xf32, #tpu.memory_space<vmem>>, vector<1x144x3xf32>
    %115 = vector.shape_cast %114 : vector<1x144x3xf32> to vector<144x3xf32>
    %c4_84 = arith.constant 4 : index
    %c0_85 = arith.constant 0 : index
    %c0_86 = arith.constant 0 : index
    %116 = vector.load %arg2[%c4_84, %c0_85, %c0_86] : memref<9x3x32xf32, #tpu.memory_space<vmem>>, vector<1x3x32xf32>
    %117 = vector.shape_cast %116 : vector<1x3x32xf32> to vector<3x32xf32>
    %cst_87 = arith.constant dense<0.000000e+00> : vector<144x32xf32>
    %118 = tpu.matmul %115, %117, %cst_87 {dimension_numbers = #tpu.dot_dimension_numbers<[1], [0], [0], [1], [0, 0, 1, 1], [], []>} : vector<144x3xf32>, vector<3x32xf32>, vector<144x32xf32> -> vector<144x32xf32>
    %119 = arith.addf %113, %118 : vector<144x32xf32>
    %c0_88 = arith.constant 0 : index
    %c164 = arith.constant 164 : index
    %c0_89 = arith.constant 0 : index
    %120 = vector.load %arg1[%c0_88, %c164, %c0_89] : memref<1x342x3xf32, #tpu.memory_space<vmem>>, vector<1x144x3xf32>
    %121 = vector.shape_cast %120 : vector<1x144x3xf32> to vector<144x3xf32>
    %c5_90 = arith.constant 5 : index
    %c0_91 = arith.constant 0 : index
    %c0_92 = arith.constant 0 : index
    %122 = vector.load %arg2[%c5_90, %c0_91, %c0_92] : memref<9x3x32xf32, #tpu.memory_space<vmem>>, vector<1x3x32xf32>
    %123 = vector.shape_cast %122 : vector<1x3x32xf32> to vector<3x32xf32>
    %cst_93 = arith.constant dense<0.000000e+00> : vector<144x32xf32>
    %124 = tpu.matmul %121, %123, %cst_93 {dimension_numbers = #tpu.dot_dimension_numbers<[1], [0], [0], [1], [0, 0, 1, 1], [], []>} : vector<144x3xf32>, vector<3x32xf32>, vector<144x32xf32> -> vector<144x32xf32>
    %125 = arith.addf %119, %124 : vector<144x32xf32>
    %c0_94 = arith.constant 0 : index
    %c180 = arith.constant 180 : index
    %c0_95 = arith.constant 0 : index
    %126 = vector.load %arg1[%c0_94, %c180, %c0_95] : memref<1x342x3xf32, #tpu.memory_space<vmem>>, vector<1x144x3xf32>
    %127 = vector.shape_cast %126 : vector<1x144x3xf32> to vector<144x3xf32>
    %c6_96 = arith.constant 6 : index
    %c0_97 = arith.constant 0 : index
    %c0_98 = arith.constant 0 : index
    %128 = vector.load %arg2[%c6_96, %c0_97, %c0_98] : memref<9x3x32xf32, #tpu.memory_space<vmem>>, vector<1x3x32xf32>
    %129 = vector.shape_cast %128 : vector<1x3x32xf32> to vector<3x32xf32>
    %cst_99 = arith.constant dense<0.000000e+00> : vector<144x32xf32>
    %130 = tpu.matmul %127, %129, %cst_99 {dimension_numbers = #tpu.dot_dimension_numbers<[1], [0], [0], [1], [0, 0, 1, 1], [], []>} : vector<144x3xf32>, vector<3x32xf32>, vector<144x32xf32> -> vector<144x32xf32>
    %131 = arith.addf %125, %130 : vector<144x32xf32>
    %c0_100 = arith.constant 0 : index
    %c181 = arith.constant 181 : index
    %c0_101 = arith.constant 0 : index
    %132 = vector.load %arg1[%c0_100, %c181, %c0_101] : memref<1x342x3xf32, #tpu.memory_space<vmem>>, vector<1x144x3xf32>
    %133 = vector.shape_cast %132 : vector<1x144x3xf32> to vector<144x3xf32>
    %c7_102 = arith.constant 7 : index
    %c0_103 = arith.constant 0 : index
    %c0_104 = arith.constant 0 : index
    %134 = vector.load %arg2[%c7_102, %c0_103, %c0_104] : memref<9x3x32xf32, #tpu.memory_space<vmem>>, vector<1x3x32xf32>
    %135 = vector.shape_cast %134 : vector<1x3x32xf32> to vector<3x32xf32>
    %cst_105 = arith.constant dense<0.000000e+00> : vector<144x32xf32>
    %136 = tpu.matmul %133, %135, %cst_105 {dimension_numbers = #tpu.dot_dimension_numbers<[1], [0], [0], [1], [0, 0, 1, 1], [], []>} : vector<144x3xf32>, vector<3x32xf32>, vector<144x32xf32> -> vector<144x32xf32>
    %137 = arith.addf %131, %136 : vector<144x32xf32>
    %c0_106 = arith.constant 0 : index
    %c182 = arith.constant 182 : index
    %c0_107 = arith.constant 0 : index
    %138 = vector.load %arg1[%c0_106, %c182, %c0_107] : memref<1x342x3xf32, #tpu.memory_space<vmem>>, vector<1x144x3xf32>
    %139 = vector.shape_cast %138 : vector<1x144x3xf32> to vector<144x3xf32>
    %c8_108 = arith.constant 8 : index
    %c0_109 = arith.constant 0 : index
    %c0_110 = arith.constant 0 : index
    %140 = vector.load %arg2[%c8_108, %c0_109, %c0_110] : memref<9x3x32xf32, #tpu.memory_space<vmem>>, vector<1x3x32xf32>
    %141 = vector.shape_cast %140 : vector<1x3x32xf32> to vector<3x32xf32>
    %cst_111 = arith.constant dense<0.000000e+00> : vector<144x32xf32>
    %142 = tpu.matmul %139, %141, %cst_111 {dimension_numbers = #tpu.dot_dimension_numbers<[1], [0], [0], [1], [0, 0, 1, 1], [], []>} : vector<144x3xf32>, vector<3x32xf32>, vector<144x32xf32> -> vector<144x32xf32>
    %143 = arith.addf %137, %142 : vector<144x32xf32>
    %c0_112 = arith.constant 0 : index
    %c0_113 = arith.constant 0 : index
    %144 = vector.load %arg3[%c0_112, %c0_113] : memref<1x32xf32, #tpu.memory_space<vmem>>, vector<1x32xf32>
    %145 = vector.broadcast %144 : vector<1x32xf32> to vector<144x32xf32>
    %146 = arith.addf %143, %145 : vector<144x32xf32>
    %cst_114 = arith.constant 0.000000e+00 : f32
    %147 = vector.broadcast %cst_114 : f32 to vector<144x32xf32>
    %148 = arith.maximumf %146, %147 : vector<144x32xf32>
    %149 = vector.broadcast %22 : vector<144x1xf32> to vector<144x32xf32>
    %150 = arith.mulf %148, %149 : vector<144x32xf32>
    %cst_115 = arith.constant dense<0.000000e+00> : vector<32xf32>
    %151 = vector.multi_reduction <add>, %150, %cst_115 [0] : vector<144x32xf32> to vector<32xf32>
    %152 = vector.shape_cast %151 : vector<32xf32> to vector<1x32xf32>
    %153 = arith.addf %88, %152 : vector<1x32xf32>
    %c0_116 = arith.constant 0 : index
    %c0_117 = arith.constant 0 : index
    %154 = vector.load %arg4[%c0_116, %c0_117] : memref<32x5xf32, #tpu.memory_space<vmem>>, vector<32x5xf32>
    %cst_118 = arith.constant dense<0.000000e+00> : vector<1x5xf32>
    %155 = tpu.matmul %153, %154, %cst_118 {dimension_numbers = #tpu.dot_dimension_numbers<[1], [0], [0], [1], [0, 0, 1, 1], [], []>} : vector<1x32xf32>, vector<32x5xf32>, vector<1x5xf32> -> vector<1x5xf32>
    %c0_119 = arith.constant 0 : index
    %c0_120 = arith.constant 0 : index
    %156 = vector.load %arg5[%c0_119, %c0_120] : memref<1x5xf32, #tpu.memory_space<vmem>>, vector<1x5xf32>
    %157 = arith.addf %155, %156 : vector<1x5xf32>
    %c0_121 = arith.constant 0 : index
    %c0_122 = arith.constant 0 : index
    %c0_123 = arith.constant 0 : index
    %158 = vector.load %arg6[%c0_121, %c0_122, %c0_123] : memref<1x1x5xf32, #tpu.memory_space<vmem>>, vector<1x1x5xf32>
    %159 = vector.shape_cast %158 : vector<1x1x5xf32> to vector<1x5xf32>
    %160 = vector.shape_cast %157 : vector<1x5xf32> to vector<1x1x5xf32>
    tpu.vector_store %arg6[%c0_121, %c0_122, %c0_123], %160 {strides = array<i32>} : memref<1x1x5xf32, #tpu.memory_space<vmem>>, vector<1x1x5xf32>,
    return
  }
  func.func @transform_0(%arg0: i32) -> (i32, i32, i32) {
    %c0_i32 = arith.constant 0 : i32
    %c0_i32_0 = arith.constant 0 : i32
    %c0_i32_1 = arith.constant 0 : i32
    return %arg0, %c0_i32, %c0_i32_0 : i32, i32, i32
  }
  func.func @transform_1(%arg0: i32) -> (i32, i32, i32) {
    %c0_i32 = arith.constant 0 : i32
    %c0_i32_0 = arith.constant 0 : i32
    %c0_i32_1 = arith.constant 0 : i32
    %c0_i32_2 = arith.constant 0 : i32
    return %c0_i32, %c0_i32_0, %c0_i32_1 : i32, i32, i32
  }
  func.func @transform_2(%arg0: i32) -> (i32, i32) {
    %c0_i32 = arith.constant 0 : i32
    %c0_i32_0 = arith.constant 0 : i32
    %c0_i32_1 = arith.constant 0 : i32
    return %c0_i32, %c0_i32_0 : i32, i32
  }
  func.func @transform_3(%arg0: i32) -> (i32, i32) {
    %c0_i32 = arith.constant 0 : i32
    %c0_i32_0 = arith.constant 0 : i32
    %c0_i32_1 = arith.constant 0 : i32
    return %c0_i32, %c0_i32_0 : i32, i32
  }
  func.func @transform_4(%arg0: i32) -> (i32, i32) {
    %c0_i32 = arith.constant 0 : i32
    %c0_i32_0 = arith.constant 0 : i32
    %c0_i32_1 = arith.constant 0 : i32
    return %c0_i32, %c0_i32_0 : i32, i32
  }
  func.func @transform_5(%arg0: i32) -> (i32, i32, i32) {
    %c0_i32 = arith.constant 0 : i32
    %c0_i32_0 = arith.constant 0 : i32
    %c0_i32_1 = arith.constant 0 : i32
    return %arg0, %c0_i32, %c0_i32_0 : i32, i32, i32
  }
}

</mosaic_0001>

<llo_original>
// kernel: tpu_custom_call.1
$region0: #{tpu_custom_call.1}
  #allocation0 [shape = 'u32[]', space=smem, size = 0x4, offset = 0x4, fixed_abs, tag = 'smem constant byte address 0x4 - core index']
  #allocation1 [shape = 'u32[144,128]{1,0:T(1,128)}', space=vmem, size = 0x12000, scoped, tag = 'internal scratch']
  %s0 = inlined_call_operand.vmem [shape: f32[2,342,3], index: 0, kind: input, shape index: {}]
  %s1 = inlined_call_operand.vmem [shape: f32[9,3,32], index: 1, kind: input, shape index: {}]
  %s2 = inlined_call_operand.vmem [shape: f32[1,32], index: 2, kind: input, shape index: {}]
  %s3 = inlined_call_operand.vmem [shape: f32[32,5], index: 3, kind: input, shape index: {}]
  %s4 = inlined_call_operand.vmem [shape: f32[1,5], index: 4, kind: input, shape index: {}]
  %s5 = inlined_call_operand.hbm [shape: f32[2,1,5], index: 5, kind: output, shape index: {}]
  %s6 = sld [smem:[#allocation0]]
  $region53: #{tpu_custom_call.1} parent=0
    _
  %s8 = ssub.s32 1, %s6
  %s9 = scalar_select 0, %s8, %s6
  $region1: #{tpu_custom_call.1} parent=0
    #allocation2 [shape = 'u8[1024]{0}', space=vmem, size = 0x400, scoped, tag = 'output window, operand 0']
    #allocation3 [shape = 's32[2]{0}', space=sflag, size = 0x8, scoped, tag = 'scoped memory for tpu_custom_call.1']
    %10 = vsyncpa [#allocation3], 0
    %s11 = scalar_lea.sflag [#allocation3], 1
    %12 = vsyncpa %s11, 0
    loop: start=0, step=1, limit=4
    $region2: #{tpu_custom_call.1} parent=1 // loop_pre_header
      _
    $region3: #{tpu_custom_call.1} parent=1 // loop_header
      %s14 = sphi 0, %s18
      %p15 = scmp.ge.s32.totalorder %s14, 4
      %s24 = sphi 0, %s26
      %s27 = sphi 0, %s24
      %s28 = sphi 0, %s27
      %s44 = sphi 0, %s28
      %s48 = sphi 0, %s48
      %s50 = sphi 0, %s48
      %s51 = sphi 0, %s50
      %s65 = sphi 0, %s51
      %s69 = sphi 0, %s69
      %s71 = sphi 0, %s69
      %s72 = sphi 0, %s71
      %s86 = sphi 0, %s72
      %s90 = sphi 0, %s90
      %s92 = sphi 0, %s90
      %s93 = sphi 0, %s92
      %s107 = sphi 0, %s93
      %s111 = sphi 0, %s111
      %s113 = sphi 0, %s111
      %s114 = sphi 0, %s113
      %s128 = sphi 0, %s114
      %s134 = sphi 0, %s136
      %s137 = sphi 0, %s134
      %s138 = sphi 0, %s137
      %s154 = sphi 0, %s138
    $region4: #{tpu_custom_call.1} parent=1 // loop_header_branch
      %17 = sbr.rel (%p15) target = $region8
    $region5: #{tpu_custom_call.1} parent=1 // loop_body
      %s19 = ssub.s32 %s14, 1
      %s20 = ssub.s32 %s14, 2
      %s21 = sadd.s32 %s14, 1
      %s22 = ssub.s32 %s14, %s21
      %p23 = scmp.eq.s32.totalorder %s22, 0
      %s25 = sadd.s32 %s24, 1
      %s26 = scalar_select %p23, %s24, %s25
      %p29 = pneg %p23
      %p30 = scmp.eq.s32.totalorder %s14, 1
      %p31 = por %p29, %p30
      %p32 = scmp.ne.s32.totalorder %s24, %s27
      %p33 = scmp.eq.s32.totalorder %s14, 0
      %p34 = por %p32, %p33
      %p35 = scmp.ne.s32.totalorder %s24, %s27
      %p36 = scmp.eq.s32.totalorder %s19, 1
      %p37 = por %p35, %p36
      %p38 = scmp.ne.s32.totalorder %s27, %s28
      %p39 = scmp.eq.s32.totalorder %s19, 0
      %p40 = por %p38, %p39
      %p41 = scmp.ne.s32.totalorder %s27, %s28
      %p42 = scmp.eq.s32.totalorder %s20, 1
      %p43 = por %p41, %p42
      %p45 = scmp.ne.s32.totalorder %s28, %s44
      %p46 = scmp.eq.s32.totalorder %s20, 0
      %p47 = por %p45, %p46
      %s49 = sadd.s32 %s48, 1
      %p52 = scmp.eq.s32.totalorder %s14, 1
      %p53 = scmp.ne.s32.totalorder %s48, %s50
      %p54 = scmp.eq.s32.totalorder %s14, 0
      %p55 = por %p53, %p54
      %p56 = scmp.ne.s32.totalorder %s48, %s50
      %p57 = scmp.eq.s32.totalorder %s19, 1
      %p58 = por %p56, %p57
      %p59 = scmp.ne.s32.totalorder %s50, %s51
      %p60 = scmp.eq.s32.totalorder %s19, 0
      %p61 = por %p59, %p60
      %p62 = scmp.ne.s32.totalorder %s50, %s51
      %p63 = scmp.eq.s32.totalorder %s20, 1
      %p64 = por %p62, %p63
      %p66 = scmp.ne.s32.totalorder %s51, %s65
      %p67 = scmp.eq.s32.totalorder %s20, 0
      %p68 = por %p66, %p67
      %s70 = sadd.s32 %s69, 1
      %p73 = scmp.eq.s32.totalorder %s14, 1
      %p74 = scmp.ne.s32.totalorder %s69, %s71
      %p75 = scmp.eq.s32.totalorder %s14, 0
      %p76 = por %p74, %p75
      %p77 = scmp.ne.s32.totalorder %s69, %s71
      %p78 = scmp.eq.s32.totalorder %s19, 1
      %p79 = por %p77, %p78
      %p80 = scmp.ne.s32.totalorder %s71, %s72
      %p81 = scmp.eq.s32.totalorder %s19, 0
      %p82 = por %p80, %p81
      %p83 = scmp.ne.s32.totalorder %s71, %s72
      %p84 = scmp.eq.s32.totalorder %s20, 1
      %p85 = por %p83, %p84
      %p87 = scmp.ne.s32.totalorder %s72, %s86
      %p88 = scmp.eq.s32.totalorder %s20, 0
      %p89 = por %p87, %p88
      %s91 = sadd.s32 %s90, 1
      %p94 = scmp.eq.s32.totalorder %s14, 1
      %p95 = scmp.ne.s32.totalorder %s90, %s92
      %p96 = scmp.eq.s32.totalorder %s14, 0
      %p97 = por %p95, %p96
      %p98 = scmp.ne.s32.totalorder %s90, %s92
      %p99 = scmp.eq.s32.totalorder %s19, 1
      %p100 = por %p98, %p99
      %p101 = scmp.ne.s32.totalorder %s92, %s93
      %p102 = scmp.eq.s32.totalorder %s19, 0
      %p103 = por %p101, %p102
      %p104 = scmp.ne.s32.totalorder %s92, %s93
      %p105 = scmp.eq.s32.totalorder %s20, 1
      %p106 = por %p104, %p105
      %p108 = scmp.ne.s32.totalorder %s93, %s107
      %p109 = scmp.eq.s32.totalorder %s20, 0
      %p110 = por %p108, %p109
      %s112 = sadd.s32 %s111, 1
      %p115 = scmp.eq.s32.totalorder %s14, 1
      %p116 = scmp.ne.s32.totalorder %s111, %s113
      %p117 = scmp.eq.s32.totalorder %s14, 0
      %p118 = por %p116, %p117
      %p119 = scmp.ne.s32.totalorder %s111, %s113
      %p120 = scmp.eq.s32.totalorder %s19, 1
      %p121 = por %p119, %p120
      %p122 = scmp.ne.s32.totalorder %s113, %s114
      %p123 = scmp.eq.s32.totalorder %s19, 0
      %p124 = por %p122, %p123
      %p125 = scmp.ne.s32.totalorder %s113, %s114
      %p126 = scmp.eq.s32.totalorder %s20, 1
      %p127 = por %p125, %p126
      %p129 = scmp.ne.s32.totalorder %s114, %s128
      %p130 = scmp.eq.s32.totalorder %s20, 0
      %p131 = por %p129, %p130
      %s132 = ssub.s32 %s14, %s21
      %p133 = scmp.eq.s32.totalorder %s132, 0
      %s135 = sadd.s32 %s134, 1
      %s136 = scalar_select %p133, %s134, %s135
      %p139 = pneg %p133
      %p140 = scmp.eq.s32.totalorder %s14, 1
      %p141 = por %p139, %p140
      %p142 = scmp.ne.s32.totalorder %s134, %s137
      %p143 = scmp.eq.s32.totalorder %s14, 0
      %p144 = por %p142, %p143
      %p145 = scmp.ne.s32.totalorder %s134, %s137
      %p146 = scmp.eq.s32.totalorder %s19, 1
      %p147 = por %p145, %p146
      %p148 = scmp.ne.s32.totalorder %s137, %s138
      %p149 = scmp.eq.s32.totalorder %s19, 0
      %p150 = por %p148, %p149
      %p151 = scmp.ne.s32.totalorder %s137, %s138
      %p152 = scmp.eq.s32.totalorder %s20, 1
      %p153 = por %p151, %p152
      %p155 = scmp.ne.s32.totalorder %s138, %s154
      %p156 = scmp.eq.s32.totalorder %s20, 0
      %p157 = por %p155, %p156
      %p158 = scmp.le.s32.totalorder 1, %s14
      %p159 = scmp.lt.s32.totalorder %s14, 3
      %p160 = pnand %p158, %p159
      %p161 = pneg %p160
      // Predicated region
      $region9: #{tpu_custom_call.1} parent=5 // pred_check
        _
      $region10: #{tpu_custom_call.1} parent=5 // pred_check_branch
        %163 = sbr.rel (%p160) target = $region12
      $region11: #{tpu_custom_call.1} parent=5 // pred_region
        %s164 = ssub.s32 %s14, 1
        // Predicated region
        $region13: #{tpu_custom_call.1} parent=11 // pred_check
          %p165 = pneg %p61
        $region14: #{tpu_custom_call.1} parent=11 // pred_check_branch
          %167 = sbr.rel (%p165) target = $region16
        $region15: #{tpu_custom_call.1} parent=11 // pred_region
          _
        $region16: #{tpu_custom_call.1} parent=11 // pred_fallthru
          _
        // Predicated region
        $region17: #{tpu_custom_call.1} parent=11 // pred_check
          %p168 = pneg %p82
        $region18: #{tpu_custom_call.1} parent=11 // pred_check_branch
          %170 = sbr.rel (%p168) target = $region20
        $region19: #{tpu_custom_call.1} parent=11 // pred_region
          _
        $region20: #{tpu_custom_call.1} parent=11 // pred_fallthru
          _
        // Predicated region
        $region21: #{tpu_custom_call.1} parent=11 // pred_check
          %p171 = pneg %p103
        $region22: #{tpu_custom_call.1} parent=11 // pred_check_branch
          %173 = sbr.rel (%p171) target = $region24
        $region23: #{tpu_custom_call.1} parent=11 // pred_region
          _
        $region24: #{tpu_custom_call.1} parent=11 // pred_fallthru
          _
        // Predicated region
        $region25: #{tpu_custom_call.1} parent=11 // pred_check
          %p174 = pneg %p124
        $region26: #{tpu_custom_call.1} parent=11 // pred_check_branch
          %176 = sbr.rel (%p174) target = $region28
        $region27: #{tpu_custom_call.1} parent=11 // pred_region
          _
        $region28: #{tpu_custom_call.1} parent=11 // pred_fallthru
          _
      $region12: #{tpu_custom_call.1} parent=5 // pred_fallthru
        _
      %p177 = scmp.lt.s32.totalorder %s14, 2
      // Predicated region
      $region29: #{tpu_custom_call.1} parent=5 // pred_check
        %p178 = pneg %p177
      $region30: #{tpu_custom_call.1} parent=5 // pred_check_branch
        %180 = sbr.rel (%p178) target = $region32
      $region31: #{tpu_custom_call.1} parent=5 // pred_region
        // Predicated region
        $region33: #{tpu_custom_call.1} parent=31 // pred_check
          %p181 = pneg %p34
        $region34: #{tpu_custom_call.1} parent=31 // pred_check_branch
          %183 = sbr.rel (%p181) target = $region36
        $region35: #{tpu_custom_call.1} parent=31 // pred_region
          %p184 = scmp.lt.s32.totalorder %s14, 1
          %s185 = scalar_select %p184, %s14, 1
          %s186 = smul.addr %s185, 43
          %s187 = smul.addr %s186, 8
          %s188 = scalar_lea.vmem %s0, %s187
        $region36: #{tpu_custom_call.1} parent=31 // pred_fallthru
          _
      $region32: #{tpu_custom_call.1} parent=5 // pred_fallthru
        _
      %p189 = scmp.le.s32.totalorder 1, %s14
      %p190 = scmp.lt.s32.totalorder %s14, 3
      %p191 = pnand %p189, %p190
      %p192 = pneg %p191
      // Predicated region
      $region37: #{tpu_custom_call.1} parent=5 // pred_check
        _
      $region38: #{tpu_custom_call.1} parent=5 // pred_check_branch
        %194 = sbr.rel (%p191) target = $region40
      $region39: #{tpu_custom_call.1} parent=5 // pred_region
        %s195 = ssub.s32 %s14, 1
        %p196 = scmp.lt.s32.totalorder %s19, 1
        %s197 = scalar_select %p196, %s19, 1
        %s198 = smul.addr %s197, 43
        %s199 = smul.addr %s198, 8
        %s200 = scalar_lea.vmem %s0, %s199
        %p201 = pneg %p40
        %p202 = pneg %p37
        %p203 = pneg %p61
        %p204 = pneg %p58
        %p205 = pneg %p82
        %p206 = pneg %p79
        %p207 = pneg %p103
        %p208 = pneg %p100
        %p209 = pneg %p124
        %p210 = pneg %p121
        %p211 = pneg %p150
        %p212 = pneg %p147
        %s213 = sand.u32 %s137, 1
        %s214 = scalar_lea.sflag [#allocation3], %s213
        %s215 = sand.u32 %s137, 1
        %s216 = scalar_lea.vmem [#allocation2], %s215
        %p217 = scmp.lt.s32.totalorder %s19, 1
        %s218 = scalar_select %p217, %s19, 1
        %s219 = smul.addr %s218, 43
        %s220 = smul.addr %s219, 8
        %s221 = scalar_lea.vmem %s0, %s220
        %v222 = vlaneseq
        %v223 = vshrl.u32 %v222, 7
        %v224 = vadd.s32 %v223, 8
        %v225 = vadd.s32 %v223, 16
        %v226 = vadd.s32 %v223, 24
        %v227 = vadd.s32 %v223, 32
        %v228 = vadd.s32 %v223, 40
        %v229 = vadd.s32 %v223, 48
        %v230 = vadd.s32 %v223, 56
        %v231 = vadd.s32 %v223, 64
        %v232 = vadd.s32 %v223, 72
        %v233 = vadd.s32 %v223, 80
        %v234 = vadd.s32 %v223, 88
        %v235 = vadd.s32 %v223, 96
        %v236 = vadd.s32 %v223, 104
        %v237 = vadd.s32 %v223, 112
        %v238 = vadd.s32 %v223, 120
        %v239 = vadd.s32 %v223, 128
        %v240 = vadd.s32 %v223, 136
        %vm241 = vcmp.lt.s32.totalorder %v223, 0
        %v242 = vsub.s32 0, %v223
        %v243 = vsel %vm241, %v242, %v223
        %v244 = vmul.u32.u64.compose %v243, 3817748708
        %v245 = vextract.low.u32 %v244
        %v246 = vextract.high.u32 %v244
        %v247 = vshrl.u32 %v246, 4
        %v248 = vmul.u32 %v247, 18
        %v249 = vsub.s32 %v243, %v248
        %v250 = vsub.s32 0, %v249
        %v251 = vsel %vm241, %v250, %v249
        %vm252 = vcmp.lt.s32.totalorder %v224, 0
        %v253 = vsub.s32 0, %v224
        %v254 = vsel %vm252, %v253, %v224
        %v255 = vmul.u32.u64.compose %v254, 3817748708
        %v256 = vextract.low.u32 %v255
        %v257 = vextract.high.u32 %v255
        %v258 = vshrl.u32 %v257, 4
        %v259 = vmul.u32 %v258, 18
        %v260 = vsub.s32 %v254, %v259
        %v261 = vsub.s32 0, %v260
        %v262 = vsel %vm252, %v261, %v260
        %vm263 = vcmp.lt.s32.totalorder %v225, 0
        %v264 = vsub.s32 0, %v225
        %v265 = vsel %vm263, %v264, %v225
        %v266 = vmul.u32.u64.compose %v265, 3817748708
        %v267 = vextract.low.u32 %v266
        %v268 = vextract.high.u32 %v266
        %v269 = vshrl.u32 %v268, 4
        %v270 = vmul.u32 %v269, 18
        %v271 = vsub.s32 %v265, %v270
        %v272 = vsub.s32 0, %v271
        %v273 = vsel %vm263, %v272, %v271
        %vm274 = vcmp.lt.s32.totalorder %v226, 0
        %v275 = vsub.s32 0, %v226
        %v276 = vsel %vm274, %v275, %v226
        %v277 = vmul.u32.u64.compose %v276, 3817748708
        %v278 = vextract.low.u32 %v277
        %v279 = vextract.high.u32 %v277
        %v280 = vshrl.u32 %v279, 4
        %v281 = vmul.u32 %v280, 18
        %v282 = vsub.s32 %v276, %v281
        %v283 = vsub.s32 0, %v282
        %v284 = vsel %vm274, %v283, %v282
        %vm285 = vcmp.lt.s32.totalorder %v227, 0
        %v286 = vsub.s32 0, %v227
        %v287 = vsel %vm285, %v286, %v227
        %v288 = vmul.u32.u64.compose %v287, 3817748708
        %v289 = vextract.low.u32 %v288
        %v290 = vextract.high.u32 %v288
        %v291 = vshrl.u32 %v290, 4
        %v292 = vmul.u32 %v291, 18
        %v293 = vsub.s32 %v287, %v292
        %v294 = vsub.s32 0, %v293
        %v295 = vsel %vm285, %v294, %v293
        %vm296 = vcmp.lt.s32.totalorder %v228, 0
        %v297 = vsub.s32 0, %v228
        %v298 = vsel %vm296, %v297, %v228
        %v299 = vmul.u32.u64.compose %v298, 3817748708
        %v300 = vextract.low.u32 %v299
        %v301 = vextract.high.u32 %v299
        %v302 = vshrl.u32 %v301, 4
        %v303 = vmul.u32 %v302, 18
        %v304 = vsub.s32 %v298, %v303
        %v305 = vsub.s32 0, %v304
        %v306 = vsel %vm296, %v305, %v304
        %vm307 = vcmp.lt.s32.totalorder %v229, 0
        %v308 = vsub.s32 0, %v229
        %v309 = vsel %vm307, %v308, %v229
        %v310 = vmul.u32.u64.compose %v309, 3817748708
        %v311 = vextract.low.u32 %v310
        %v312 = vextract.high.u32 %v310
        %v313 = vshrl.u32 %v312, 4
        %v314 = vmul.u32 %v313, 18
        %v315 = vsub.s32 %v309, %v314
        %v316 = vsub.s32 0, %v315
        %v317 = vsel %vm307, %v316, %v315
        %vm318 = vcmp.lt.s32.totalorder %v230, 0
        %v319 = vsub.s32 0, %v230
        %v320 = vsel %vm318, %v319, %v230
        %v321 = vmul.u32.u64.compose %v320, 3817748708
        %v322 = vextract.low.u32 %v321
        %v323 = vextract.high.u32 %v321
        %v324 = vshrl.u32 %v323, 4
        %v325 = vmul.u32 %v324, 18
        %v326 = vsub.s32 %v320, %v325
        %v327 = vsub.s32 0, %v326
        %v328 = vsel %vm318, %v327, %v326
        %vm329 = vcmp.lt.s32.totalorder %v231, 0
        %v330 = vsub.s32 0, %v231
        %v331 = vsel %vm329, %v330, %v231
        %v332 = vmul.u32.u64.compose %v331, 3817748708
        %v333 = vextract.low.u32 %v332
        %v334 = vextract.high.u32 %v332
        %v335 = vshrl.u32 %v334, 4
        %v336 = vmul.u32 %v335, 18
        %v337 = vsub.s32 %v331, %v336
        %v338 = vsub.s32 0, %v337
        %v339 = vsel %vm329, %v338, %v337
        %vm340 = vcmp.lt.s32.totalorder %v232, 0
        %v341 = vsub.s32 0, %v232
        %v342 = vsel %vm340, %v341, %v232
        %v343 = vmul.u32.u64.compose %v342, 3817748708
        %v344 = vextract.low.u32 %v343
        %v345 = vextract.high.u32 %v343
        %v346 = vshrl.u32 %v345, 4
        %v347 = vmul.u32 %v346, 18
        %v348 = vsub.s32 %v342, %v347
        %v349 = vsub.s32 0, %v348
        %v350 = vsel %vm340, %v349, %v348
        %vm351 = vcmp.lt.s32.totalorder %v233, 0
        %v352 = vsub.s32 0, %v233
        %v353 = vsel %vm351, %v352, %v233
        %v354 = vmul.u32.u64.compose %v353, 3817748708
        %v355 = vextract.low.u32 %v354
        %v356 = vextract.high.u32 %v354
        %v357 = vshrl.u32 %v356, 4
        %v358 = vmul.u32 %v357, 18
        %v359 = vsub.s32 %v353, %v358
        %v360 = vsub.s32 0, %v359
        %v361 = vsel %vm351, %v360, %v359
        %vm362 = vcmp.lt.s32.totalorder %v234, 0
        %v363 = vsub.s32 0, %v234
        %v364 = vsel %vm362, %v363, %v234
        %v365 = vmul.u32.u64.compose %v364, 3817748708
        %v366 = vextract.low.u32 %v365
        %v367 = vextract.high.u32 %v365
        %v368 = vshrl.u32 %v367, 4
        %v369 = vmul.u32 %v368, 18
        %v370 = vsub.s32 %v364, %v369
        %v371 = vsub.s32 0, %v370
        %v372 = vsel %vm362, %v371, %v370
        %vm373 = vcmp.lt.s32.totalorder %v235, 0
        %v374 = vsub.s32 0, %v235
        %v375 = vsel %vm373, %v374, %v235
        %v376 = vmul.u32.u64.compose %v375, 3817748708
        %v377 = vextract.low.u32 %v376
        %v378 = vextract.high.u32 %v376
        %v379 = vshrl.u32 %v378, 4
        %v380 = vmul.u32 %v379, 18
        %v381 = vsub.s32 %v375, %v380
        %v382 = vsub.s32 0, %v381
        %v383 = vsel %vm373, %v382, %v381
        %vm384 = vcmp.lt.s32.totalorder %v236, 0
        %v385 = vsub.s32 0, %v236
        %v386 = vsel %vm384, %v385, %v236
        %v387 = vmul.u32.u64.compose %v386, 3817748708
        %v388 = vextract.low.u32 %v387
        %v389 = vextract.high.u32 %v387
        %v390 = vshrl.u32 %v389, 4
        %v391 = vmul.u32 %v390, 18
        %v392 = vsub.s32 %v386, %v391
        %v393 = vsub.s32 0, %v392
        %v394 = vsel %vm384, %v393, %v392
        %vm395 = vcmp.lt.s32.totalorder %v237, 0
        %v396 = vsub.s32 0, %v237
        %v397 = vsel %vm395, %v396, %v237
        %v398 = vmul.u32.u64.compose %v397, 3817748708
        %v399 = vextract.low.u32 %v398
        %v400 = vextract.high.u32 %v398
        %v401 = vshrl.u32 %v400, 4
        %v402 = vmul.u32 %v401, 18
        %v403 = vsub.s32 %v397, %v402
        %v404 = vsub.s32 0, %v403
        %v405 = vsel %vm395, %v404, %v403
        %vm406 = vcmp.lt.s32.totalorder %v238, 0
        %v407 = vsub.s32 0, %v238
        %v408 = vsel %vm406, %v407, %v238
        %v409 = vmul.u32.u64.compose %v408, 3817748708
        %v410 = vextract.low.u32 %v409
        %v411 = vextract.high.u32 %v409
        %v412 = vshrl.u32 %v411, 4
        %v413 = vmul.u32 %v412, 18
        %v414 = vsub.s32 %v408, %v413
        %v415 = vsub.s32 0, %v414
        %v416 = vsel %vm406, %v415, %v414
        %vm417 = vcmp.lt.s32.totalorder %v239, 0
        %v418 = vsub.s32 0, %v239
        %v419 = vsel %vm417, %v418, %v239
        %v420 = vmul.u32.u64.compose %v419, 3817748708
        %v421 = vextract.low.u32 %v420
        %v422 = vextract.high.u32 %v420
        %v423 = vshrl.u32 %v422, 4
        %v424 = vmul.u32 %v423, 18
        %v425 = vsub.s32 %v419, %v424
        %v426 = vsub.s32 0, %v425
        %v427 = vsel %vm417, %v426, %v425
        %vm428 = vcmp.lt.s32.totalorder %v240, 0
        %v429 = vsub.s32 0, %v240
        %v430 = vsel %vm428, %v429, %v240
        %v431 = vmul.u32.u64.compose %v430, 3817748708
        %v432 = vextract.low.u32 %v431
        %v433 = vextract.high.u32 %v431
        %v434 = vshrl.u32 %v433, 4
        %v435 = vmul.u32 %v434, 18
        %v436 = vsub.s32 %v430, %v435
        %v437 = vsub.s32 0, %v436
        %v438 = vsel %vm428, %v437, %v436
        %vm439 = vcmp.ne.s32.totalorder %v251, 0
        %vm440 = vcmp.ne.s32.totalorder %v262, 0
        %vm441 = vcmp.ne.s32.totalorder %v273, 0
        %vm442 = vcmp.ne.s32.totalorder %v284, 0
        %vm443 = vcmp.ne.s32.totalorder %v295, 0
        %vm444 = vcmp.ne.s32.totalorder %v306, 0
        %vm445 = vcmp.ne.s32.totalorder %v317, 0
        %vm446 = vcmp.ne.s32.totalorder %v328, 0
        %vm447 = vcmp.ne.s32.totalorder %v339, 0
        %vm448 = vcmp.ne.s32.totalorder %v350, 0
        %vm449 = vcmp.ne.s32.totalorder %v361, 0
        %vm450 = vcmp.ne.s32.totalorder %v372, 0
        %vm451 = vcmp.ne.s32.totalorder %v383, 0
        %vm452 = vcmp.ne.s32.totalorder %v394, 0
        %vm453 = vcmp.ne.s32.totalorder %v405, 0
        %vm454 = vcmp.ne.s32.totalorder %v416, 0
        %vm455 = vcmp.ne.s32.totalorder %v427, 0
        %vm456 = vcmp.ne.s32.totalorder %v438, 0
        %vm457 = vcmp.lt.s32.totalorder %v251, 0
        %vm458 = vcmp.lt.s32.totalorder %v262, 0
        %vm459 = vcmp.lt.s32.totalorder %v273, 0
        %vm460 = vcmp.lt.s32.totalorder %v284, 0
        %vm461 = vcmp.lt.s32.totalorder %v295, 0
        %vm462 = vcmp.lt.s32.totalorder %v306, 0
        %vm463 = vcmp.lt.s32.totalorder %v317, 0
        %vm464 = vcmp.lt.s32.totalorder %v328, 0
        %vm465 = vcmp.lt.s32.totalorder %v339, 0
        %vm466 = vcmp.lt.s32.totalorder %v350, 0
        %vm467 = vcmp.lt.s32.totalorder %v361, 0
        %vm468 = vcmp.lt.s32.totalorder %v372, 0
        %vm469 = vcmp.lt.s32.totalorder %v383, 0
        %vm470 = vcmp.lt.s32.totalorder %v394, 0
        %vm471 = vcmp.lt.s32.totalorder %v405, 0
        %vm472 = vcmp.lt.s32.totalorder %v416, 0
        %vm473 = vcmp.lt.s32.totalorder %v427, 0
        %vm474 = vcmp.lt.s32.totalorder %v438, 0
        %vm475 = vmand %vm457, %vm439
        %vm476 = vmand %vm458, %vm440
        %vm477 = vmand %vm459, %vm441
        %vm478 = vmand %vm460, %vm442
        %vm479 = vmand %vm461, %vm443
        %vm480 = vmand %vm462, %vm444
        %vm481 = vmand %vm463, %vm445
        %vm482 = vmand %vm464, %vm446
        %vm483 = vmand %vm465, %vm447
        %vm484 = vmand %vm466, %vm448
        %vm485 = vmand %vm467, %vm449
        %vm486 = vmand %vm468, %vm450
        %vm487 = vmand %vm469, %vm451
        %vm488 = vmand %vm470, %vm452
        %vm489 = vmand %vm471, %vm453
        %vm490 = vmand %vm472, %vm454
        %vm491 = vmand %vm473, %vm455
        %vm492 = vmand %vm474, %vm456
        %v493 = vadd.s32 %v251, 18
        %v494 = vadd.s32 %v262, 18
        %v495 = vadd.s32 %v273, 18
        %v496 = vadd.s32 %v284, 18
        %v497 = vadd.s32 %v295, 18
        %v498 = vadd.s32 %v306, 18
        %v499 = vadd.s32 %v317, 18
        %v500 = vadd.s32 %v328, 18
        %v501 = vadd.s32 %v339, 18
        %v502 = vadd.s32 %v350, 18
        %v503 = vadd.s32 %v361, 18
        %v504 = vadd.s32 %v372, 18
        %v505 = vadd.s32 %v383, 18
        %v506 = vadd.s32 %v394, 18
        %v507 = vadd.s32 %v405, 18
        %v508 = vadd.s32 %v416, 18
        %v509 = vadd.s32 %v427, 18
        %v510 = vadd.s32 %v438, 18
        %v511 = vsel %vm475, %v493, %v251
        %v512 = vsel %vm476, %v494, %v262
        %v513 = vsel %vm477, %v495, %v273
        %v514 = vsel %vm478, %v496, %v284
        %v515 = vsel %vm479, %v497, %v295
        %v516 = vsel %vm480, %v498, %v306
        %v517 = vsel %vm481, %v499, %v317
        %v518 = vsel %vm482, %v500, %v328
        %v519 = vsel %vm483, %v501, %v339
        %v520 = vsel %vm484, %v502, %v350
        %v521 = vsel %vm485, %v503, %v361
        %v522 = vsel %vm486, %v504, %v372
        %v523 = vsel %vm487, %v505, %v383
        %v524 = vsel %vm488, %v506, %v394
        %v525 = vsel %vm489, %v507, %v405
        %v526 = vsel %vm490, %v508, %v416
        %v527 = vsel %vm491, %v509, %v427
        %v528 = vsel %vm492, %v510, %v438
        %vm529 = vcmp.lt.s32.totalorder %v511, 16
        %vm530 = vcmp.lt.s32.totalorder %v512, 16
        %vm531 = vcmp.lt.s32.totalorder %v513, 16
        %vm532 = vcmp.lt.s32.totalorder %v514, 16
        %vm533 = vcmp.lt.s32.totalorder %v515, 16
        %vm534 = vcmp.lt.s32.totalorder %v516, 16
        %vm535 = vcmp.lt.s32.totalorder %v517, 16
        %vm536 = vcmp.lt.s32.totalorder %v518, 16
        %vm537 = vcmp.lt.s32.totalorder %v519, 16
        %vm538 = vcmp.lt.s32.totalorder %v520, 16
        %vm539 = vcmp.lt.s32.totalorder %v521, 16
        %vm540 = vcmp.lt.s32.totalorder %v522, 16
        %vm541 = vcmp.lt.s32.totalorder %v523, 16
        %vm542 = vcmp.lt.s32.totalorder %v524, 16
        %vm543 = vcmp.lt.s32.totalorder %v525, 16
        %vm544 = vcmp.lt.s32.totalorder %v526, 16
        %vm545 = vcmp.lt.s32.totalorder %v527, 16
        %vm546 = vcmp.lt.s32.totalorder %v528, 16
        %v547 = vsel %vm529, 1, 0
        %v548 = vsel %vm530, 1, 0
        %v549 = vsel %vm531, 1, 0
        %v550 = vsel %vm532, 1, 0
        %v551 = vsel %vm533, 1, 0
        %v552 = vsel %vm534, 1, 0
        %v553 = vsel %vm535, 1, 0
        %v554 = vsel %vm536, 1, 0
        %v555 = vsel %vm537, 1, 0
        %v556 = vsel %vm538, 1, 0
        %v557 = vsel %vm539, 1, 0
        %v558 = vsel %vm540, 1, 0
        %v559 = vsel %vm541, 1, 0
        %v560 = vsel %vm542, 1, 0
        %v561 = vsel %vm543, 1, 0
        %v562 = vsel %vm544, 1, 0
        %v563 = vsel %vm545, 1, 0
        %v564 = vsel %vm546, 1, 0
        %v565 = vcvt.s32.f32 %v547
        %v566 = vcvt.s32.f32 %v548
        %v567 = vcvt.s32.f32 %v549
        %v568 = vcvt.s32.f32 %v550
        %v569 = vcvt.s32.f32 %v551
        %v570 = vcvt.s32.f32 %v552
        %v571 = vcvt.s32.f32 %v553
        %v572 = vcvt.s32.f32 %v554
        %v573 = vcvt.s32.f32 %v555
        %v574 = vcvt.s32.f32 %v556
        %v575 = vcvt.s32.f32 %v557
        %v576 = vcvt.s32.f32 %v558
        %v577 = vcvt.s32.f32 %v559
        %v578 = vcvt.s32.f32 %v560
        %v579 = vcvt.s32.f32 %v561
        %v580 = vcvt.s32.f32 %v562
        %v581 = vcvt.s32.f32 %v563
        %v582 = vcvt.s32.f32 %v564
        %v583 = vmul.f32 %v565, 0.00390625
        %v584 = vmul.f32 %v566, 0.00390625
        %v585 = vmul.f32 %v567, 0.00390625
        %v586 = vmul.f32 %v568, 0.00390625
        %v587 = vmul.f32 %v569, 0.00390625
        %v588 = vmul.f32 %v570, 0.00390625
        %v589 = vmul.f32 %v571, 0.00390625
        %v590 = vmul.f32 %v572, 0.00390625
        %v591 = vmul.f32 %v573, 0.00390625
        %v592 = vmul.f32 %v574, 0.00390625
        %v593 = vmul.f32 %v575, 0.00390625
        %v594 = vmul.f32 %v576, 0.00390625
        %v595 = vmul.f32 %v577, 0.00390625
        %v596 = vmul.f32 %v578, 0.00390625
        %v597 = vmul.f32 %v579, 0.00390625
        %v598 = vmul.f32 %v580, 0.00390625
        %v599 = vmul.f32 %v581, 0.00390625
        %v600 = vmul.f32 %v582, 0.00390625
        %v601 = vld [vmem:[%s221] sm:$0xff]
        %v602 = vld [vmem:[%s221 + $0x8] sm:$0xff]
        %v603 = vld [vmem:[%s221 + $0x10] sm:$0xff]
        %v604 = vld [vmem:[%s221 + $0x18] sm:$0xff]
        %v605 = vld [vmem:[%s221 + $0x20] sm:$0xff]
        %v606 = vld [vmem:[%s221 + $0x28] sm:$0xff]
        %v607 = vld [vmem:[%s221 + $0x30] sm:$0xff]
        %v608 = vld [vmem:[%s221 + $0x38] sm:$0xff]
        %v609 = vld [vmem:[%s221 + $0x40] sm:$0xff]
        %v610 = vld [vmem:[%s221 + $0x48] sm:$0xff]
        %v611 = vld [vmem:[%s221 + $0x50] sm:$0xff]
        %v612 = vld [vmem:[%s221 + $0x58] sm:$0xff]
        %v613 = vld [vmem:[%s221 + $0x60] sm:$0xff]
        %v614 = vld [vmem:[%s221 + $0x68] sm:$0xff]
        %v615 = vld [vmem:[%s221 + $0x70] sm:$0xff]
        %v616 = vld [vmem:[%s221 + $0x78] sm:$0xff]
        %v617 = vld [vmem:[%s221 + $0x80] sm:$0xff]
        %v618 = vld [vmem:[%s221 + $0x88] sm:$0xff]
        %v619 = vld [vmem:[%s1] sm:$0x7]
        %v620 = vld [vmem:[%s221 + $0x1] sm:$0xff]
        %v621 = vld [vmem:[%s221 + $0x9] sm:$0xff]
        %v622 = vld [vmem:[%s221 + $0x11] sm:$0xff]
        %v623 = vld [vmem:[%s221 + $0x19] sm:$0xff]
        %v624 = vld [vmem:[%s221 + $0x21] sm:$0xff]
        %v625 = vld [vmem:[%s221 + $0x29] sm:$0xff]
        %v626 = vld [vmem:[%s221 + $0x31] sm:$0xff]
        %v627 = vld [vmem:[%s221 + $0x39] sm:$0xff]
        %v628 = vld [vmem:[%s221 + $0x41] sm:$0xff]
        %v629 = vld [vmem:[%s221 + $0x49] sm:$0xff]
        %v630 = vld [vmem:[%s221 + $0x51] sm:$0xff]
        %v631 = vld [vmem:[%s221 + $0x59] sm:$0xff]
        %v632 = vld [vmem:[%s221 + $0x61] sm:$0xff]
        %v633 = vld [vmem:[%s221 + $0x69] sm:$0xff]
        %v634 = vld [vmem:[%s221 + $0x71] sm:$0xff]
        %v635 = vld [vmem:[%s221 + $0x79] sm:$0xff]
        %v636 = vld [vmem:[%s221 + $0x81] sm:$0xff]
        %v637 = vld [vmem:[%s221 + $0x89] sm:$0xff]
        %s638 = scalar_lea.vmem %s1, 4
        %v639 = vld [vmem:[%s638] sm:$0x7]
        %vm640 = vcmask 23552
        %v642 = vsel %vm640, %v620, 0
        %v645 = vsel %vm640, %v621, 0
        %v648 = vsel %vm640, %v622, 0
        %v651 = vsel %vm640, %v623, 0
        %v654 = vsel %vm640, %v624, 0
        %v657 = vsel %vm640, %v625, 0
        %v660 = vsel %vm640, %v626, 0
        %v663 = vsel %vm640, %v627, 0
        %v666 = vsel %vm640, %v628, 0
        %v669 = vsel %vm640, %v629, 0
        %v672 = vsel %vm640, %v630, 0
        %v675 = vsel %vm640, %v631, 0
        %v678 = vsel %vm640, %v632, 0
        %v681 = vsel %vm640, %v633, 0
        %v684 = vsel %vm640, %v634, 0
        %v687 = vsel %vm640, %v635, 0
        %v690 = vsel %vm640, %v636, 0
        %v693 = vsel %vm640, %v637, 0
        %vm695 = vcmask 1042432
        %v697 = vsel %vm695, %v639, 0
        %699 = vmatprep.subr.mxu0 0.0
        %700 = vmatpush1.msra.mxu0 %v697
        %701 = vmatprep.subr.mxu0 0.0
        %702 = vmatpush1.msra.mxu0 0.0
        %703 = vmatprep.subr.mxu0 0.0
        %704 = vmatpush1.msra.mxu0 0.0
        %705 = vmatprep.subr.mxu0 0.0
        %706 = vmatpush1.msra.mxu0 0.0
        %707 = vmatprep.subr.mxu0 0.0
        %708 = vmatpush1.msra.mxu0 0.0
        %709 = vmatprep.subr.mxu0 0.0
        %710 = vmatpush1.msra.mxu0 0.0
        %711 = vmatprep.subr.mxu0 0.0
        %712 = vmatpush1.msra.mxu0 0.0
        %713 = vmatprep.subr.mxu0 0.0
        %714 = vmatpush1.msra.mxu0 0.0
        %715 = vmatprep.subr.mxu0 0.0
        %716 = vmatpush1.msra.mxu0 0.0
        %717 = vmatprep.subr.mxu0 0.0
        %718 = vmatpush1.msra.mxu0 0.0
        %719 = vmatprep.subr.mxu0 0.0
        %720 = vmatpush1.msra.mxu0 0.0
        %721 = vmatprep.subr.mxu0 0.0
        %722 = vmatpush1.msra.mxu0 0.0
        %723 = vmatprep.subr.mxu0 0.0
        %724 = vmatpush1.msra.mxu0 0.0
        %725 = vmatprep.subr.mxu0 0.0
        %726 = vmatpush1.msra.mxu0 0.0
        %727 = vmatprep.subr.mxu0 0.0
        %728 = vmatpush1.msra.mxu0 0.0
        %729 = vmatprep.subr.mxu0 0.0
        %730 = vmatpush1.msra.mxu0 0.0
        %731 = vmatprep.subr.mxu0 0.0
        %732 = vmatpush1.msra.mxu0 0.0
        %733 = vmatprep.subr.mxu0 0.0
        %734 = vmatpush1.msra.mxu0 0.0
        %735 = vmatprep.subr.mxu0 0.0
        %736 = vmatpush1.msra.mxu0 0.0
        %737 = vmatprep.subr.mxu0 0.0
        %738 = vmatpush1.msra.mxu0 0.0
        %739 = vmatprep.subr.mxu0 0.0
        %740 = vmatpush1.msra.mxu0 0.0
        %741 = vmatprep.subr.mxu0 0.0
        %742 = vmatpush1.msra.mxu0 0.0
        %743 = vmatprep.subr.mxu0 0.0
        %744 = vmatpush1.msra.mxu0 0.0
        %745 = vmatprep.subr.mxu0 0.0
        %746 = vmatpush1.msra.mxu0 0.0
        %747 = vmatprep.subr.mxu0 0.0
        %748 = vmatpush1.msra.mxu0 0.0
        %749 = vmatprep.subr.mxu0 0.0
        %750 = vmatpush1.msra.mxu0 0.0
        %751 = vmatprep.subr.mxu0 0.0
        %752 = vmatpush1.msra.mxu0 0.0
        %753 = vmatprep.subr.mxu0 0.0
        %754 = vmatpush1.msra.mxu0 0.0
        %755 = vmatprep.subr.mxu0 0.0
        %756 = vmatpush1.msra.mxu0 0.0
        %757 = vmatprep.subr.mxu0 0.0
        %758 = vmatpush1.msra.mxu0 0.0
        %759 = vmatprep.subr.mxu0 0.0
        %760 = vmatpush1.msra.mxu0 0.0
        %761 = vmatprep.subr.mxu0 0.0
        %762 = vmatpush1.msra.mxu0 0.0
        %763 = vmatprep.mubr.f32.mxu0 0.0
        %764 = vmatmul.mubr.f32.gmra.mrb[0].mxu0 %v642
        %v765 = vpop.f32.mrb[0].mxu0
        %v766 = vadd.f32 0.0, %v765
        %v767 = vpop.f32.mrb[0].mxu0
        %768 = vmatprep.mubr.f32.mxu0 0.0
        %769 = vmatmul.mubr.f32.gmra.mrb[0].mxu0 %v645
        %v770 = vpop.f32.mrb[0].mxu0
        %v771 = vadd.f32 0.0, %v770
        %v772 = vpop.f32.mrb[0].mxu0
        %773 = vmatprep.mubr.f32.mxu0 0.0
        %774 = vmatmul.mubr.f32.gmra.mrb[0].mxu0 %v648
        %v775 = vpop.f32.mrb[0].mxu0
        %v776 = vadd.f32 0.0, %v775
        %v777 = vpop.f32.mrb[0].mxu0
        %778 = vmatprep.mubr.f32.mxu0 0.0
        %779 = vmatmul.mubr.f32.gmra.mrb[0].mxu0 %v651
        %v780 = vpop.f32.mrb[0].mxu0
        %v781 = vadd.f32 0.0, %v780
        %v782 = vpop.f32.mrb[0].mxu0
        %783 = vmatprep.mubr.f32.mxu0 0.0
        %784 = vmatmul.mubr.f32.gmra.mrb[0].mxu0 %v654
        %v785 = vpop.f32.mrb[0].mxu0
        %v786 = vadd.f32 0.0, %v785
        %v787 = vpop.f32.mrb[0].mxu0
        %788 = vmatprep.mubr.f32.mxu0 0.0
        %789 = vmatmul.mubr.f32.gmra.mrb[0].mxu0 %v657
        %v790 = vpop.f32.mrb[0].mxu0
        %v791 = vadd.f32 0.0, %v790
        %v792 = vpop.f32.mrb[0].mxu0
        %793 = vmatprep.mubr.f32.mxu0 0.0
        %794 = vmatmul.mubr.f32.gmra.mrb[0].mxu0 %v660
        %v795 = vpop.f32.mrb[0].mxu0
        %v796 = vadd.f32 0.0, %v795
        %v797 = vpop.f32.mrb[0].mxu0
        %798 = vmatprep.mubr.f32.mxu0 0.0
        %799 = vmatmul.mubr.f32.gmra.mrb[0].mxu0 %v663
        %v800 = vpop.f32.mrb[0].mxu0
        %v801 = vadd.f32 0.0, %v800
        %v802 = vpop.f32.mrb[0].mxu0
        %803 = vmatprep.mubr.f32.mxu0 0.0
        %804 = vmatmul.mubr.f32.gmra.mrb[0].mxu0 %v666
        %v805 = vpop.f32.mrb[0].mxu0
        %v806 = vadd.f32 0.0, %v805
        %v807 = vpop.f32.mrb[0].mxu0
        %808 = vmatprep.mubr.f32.mxu0 0.0
        %809 = vmatmul.mubr.f32.gmra.mrb[0].mxu0 %v669
        %v810 = vpop.f32.mrb[0].mxu0
        %v811 = vadd.f32 0.0, %v810
        %v812 = vpop.f32.mrb[0].mxu0
        %813 = vmatprep.mubr.f32.mxu0 0.0
        %814 = vmatmul.mubr.f32.gmra.mrb[0].mxu0 %v672
        %v815 = vpop.f32.mrb[0].mxu0
        %v816 = vadd.f32 0.0, %v815
        %v817 = vpop.f32.mrb[0].mxu0
        %818 = vmatprep.mubr.f32.mxu0 0.0
        %819 = vmatmul.mubr.f32.gmra.mrb[0].mxu0 %v675
        %v820 = vpop.f32.mrb[0].mxu0
        %v821 = vadd.f32 0.0, %v820
        %v822 = vpop.f32.mrb[0].mxu0
        %823 = vmatprep.mubr.f32.mxu0 0.0
        %824 = vmatmul.mubr.f32.gmra.mrb[0].mxu0 %v678
        %v825 = vpop.f32.mrb[0].mxu0
        %v826 = vadd.f32 0.0, %v825
        %v827 = vpop.f32.mrb[0].mxu0
        %828 = vmatprep.mubr.f32.mxu0 0.0
        %829 = vmatmul.mubr.f32.gmra.mrb[0].mxu0 %v681
        %v830 = vpop.f32.mrb[0].mxu0
        %v831 = vadd.f32 0.0, %v830
        %v832 = vpop.f32.mrb[0].mxu0
        %833 = vmatprep.mubr.f32.mxu0 0.0
        %834 = vmatmul.mubr.f32.gmra.mrb[0].mxu0 %v684
        %v835 = vpop.f32.mrb[0].mxu0
        %v836 = vadd.f32 0.0, %v835
        %v837 = vpop.f32.mrb[0].mxu0
        %838 = vmatprep.mubr.f32.mxu0 0.0
        %839 = vmatmul.mubr.f32.gmra.mrb[0].mxu0 %v687
        %v840 = vpop.f32.mrb[0].mxu0
        %v841 = vadd.f32 0.0, %v840
        %v842 = vpop.f32.mrb[0].mxu0
        %843 = vmatprep.mubr.f32.mxu0 0.0
        %844 = vmatmul.mubr.f32.gmra.mrb[0].mxu0 %v690
        %v845 = vpop.f32.mrb[0].mxu0
        %v846 = vadd.f32 0.0, %v845
        %v847 = vpop.f32.mrb[0].mxu0
        %848 = vmatprep.mubr.f32.mxu0 0.0
        %849 = vmatmul.mubr.f32.gmra.mrb[0].mxu0 %v693
        %v850 = vpop.f32.mrb[0].mxu0
        %v851 = vadd.f32 0.0, %v850
        %v852 = vpop.f32.mrb[0].mxu0
        %853 = vdwg.mxu0
        %v855 = vsel %vm640, %v601, 0
        %v858 = vsel %vm640, %v602, 0
        %v861 = vsel %vm640, %v603, 0
        %v864 = vsel %vm640, %v604, 0
        %v867 = vsel %vm640, %v605, 0
        %v870 = vsel %vm640, %v606, 0
        %v873 = vsel %vm640, %v607, 0
        %v876 = vsel %vm640, %v608, 0
        %v879 = vsel %vm640, %v609, 0
        %v882 = vsel %vm640, %v610, 0
        %v885 = vsel %vm640, %v611, 0
        %v888 = vsel %vm640, %v612, 0
        %v891 = vsel %vm640, %v613, 0
        %v894 = vsel %vm640, %v614, 0
        %v897 = vsel %vm640, %v615, 0
        %v900 = vsel %vm640, %v616, 0
        %v903 = vsel %vm640, %v617, 0
        %v906 = vsel %vm640, %v618, 0
        %v909 = vsel %vm695, %v619, 0
        %911 = vmatprep.subr.mxu0 0.0
        %912 = vmatpush1.msra.mxu0 %v909
        %913 = vmatprep.subr.mxu0 0.0
        %914 = vmatpush1.msra.mxu0 0.0
        %915 = vmatprep.subr.mxu0 0.0
        %916 = vmatpush1.msra.mxu0 0.0
        %917 = vmatprep.subr.mxu0 0.0
        %918 = vmatpush1.msra.mxu0 0.0
        %919 = vmatprep.subr.mxu0 0.0
        %920 = vmatpush1.msra.mxu0 0.0
        %921 = vmatprep.subr.mxu0 0.0
        %922 = vmatpush1.msra.mxu0 0.0
        %923 = vmatprep.subr.mxu0 0.0
        %924 = vmatpush1.msra.mxu0 0.0
        %925 = vmatprep.subr.mxu0 0.0
        %926 = vmatpush1.msra.mxu0 0.0
        %927 = vmatprep.subr.mxu0 0.0
        %928 = vmatpush1.msra.mxu0 0.0
        %929 = vmatprep.subr.mxu0 0.0
        %930 = vmatpush1.msra.mxu0 0.0
        %931 = vmatprep.subr.mxu0 0.0
        %932 = vmatpush1.msra.mxu0 0.0
        %933 = vmatprep.subr.mxu0 0.0
        %934 = vmatpush1.msra.mxu0 0.0
        %935 = vmatprep.subr.mxu0 0.0
        %936 = vmatpush1.msra.mxu0 0.0
        %937 = vmatprep.subr.mxu0 0.0
        %938 = vmatpush1.msra.mxu0 0.0
        %939 = vmatprep.subr.mxu0 0.0
        %940 = vmatpush1.msra.mxu0 0.0
        %941 = vmatprep.subr.mxu0 0.0
        %942 = vmatpush1.msra.mxu0 0.0
        %943 = vmatprep.subr.mxu0 0.0
        %944 = vmatpush1.msra.mxu0 0.0
        %945 = vmatprep.subr.mxu0 0.0
        %946 = vmatpush1.msra.mxu0 0.0
        %947 = vmatprep.subr.mxu0 0.0
        %948 = vmatpush1.msra.mxu0 0.0
        %949 = vmatprep.subr.mxu0 0.0
        %950 = vmatpush1.msra.mxu0 0.0
        %951 = vmatprep.subr.mxu0 0.0
        %952 = vmatpush1.msra.mxu0 0.0
        %953 = vmatprep.subr.mxu0 0.0
        %954 = vmatpush1.msra.mxu0 0.0
        %955 = vmatprep.subr.mxu0 0.0
        %956 = vmatpush1.msra.mxu0 0.0
        %957 = vmatprep.subr.mxu0 0.0
        %958 = vmatpush1.msra.mxu0 0.0
        %959 = vmatprep.subr.mxu0 0.0
        %960 = vmatpush1.msra.mxu0 0.0
        %961 = vmatprep.subr.mxu0 0.0
        %962 = vmatpush1.msra.mxu0 0.0
        %963 = vmatprep.subr.mxu0 0.0
        %964 = vmatpush1.msra.mxu0 0.0
        %965 = vmatprep.subr.mxu0 0.0
        %966 = vmatpush1.msra.mxu0 0.0
        %967 = vmatprep.subr.mxu0 0.0
        %968 = vmatpush1.msra.mxu0 0.0
        %969 = vmatprep.subr.mxu0 0.0
        %970 = vmatpush1.msra.mxu0 0.0
        %971 = vmatprep.subr.mxu0 0.0
        %972 = vmatpush1.msra.mxu0 0.0
        %973 = vmatprep.subr.mxu0 0.0
        %974 = vmatpush1.msra.mxu0 0.0
        %975 = vmatprep.mubr.f32.mxu0 0.0
        %976 = vmatmul.mubr.f32.gmra.mrb[0].mxu0 %v855
        %v977 = vpop.f32.mrb[0].mxu0
        %v978 = vadd.f32 %v766, %v977
        %v979 = vpop.f32.mrb[0].mxu0
        %980 = vmatprep.mubr.f32.mxu0 0.0
        %981 = vmatmul.mubr.f32.gmra.mrb[0].mxu0 %v858
        %v982 = vpop.f32.mrb[0].mxu0
        %v983 = vadd.f32 %v771, %v982
        %v984 = vpop.f32.mrb[0].mxu0
        %985 = vmatprep.mubr.f32.mxu0 0.0
        %986 = vmatmul.mubr.f32.gmra.mrb[0].mxu0 %v861
        %v987 = vpop.f32.mrb[0].mxu0
        %v988 = vadd.f32 %v776, %v987
        %v989 = vpop.f32.mrb[0].mxu0
        %990 = vmatprep.mubr.f32.mxu0 0.0
        %991 = vmatmul.mubr.f32.gmra.mrb[0].mxu0 %v864
        %v992 = vpop.f32.mrb[0].mxu0
        %v993 = vadd.f32 %v781, %v992
        %v994 = vpop.f32.mrb[0].mxu0
        %995 = vmatprep.mubr.f32.mxu0 0.0
        %996 = vmatmul.mubr.f32.gmra.mrb[0].mxu0 %v867
        %v997 = vpop.f32.mrb[0].mxu0
        %v998 = vadd.f32 %v786, %v997
        %v999 = vpop.f32.mrb[0].mxu0
        %1000 = vmatprep.mubr.f32.mxu0 0.0
        %1001 = vmatmul.mubr.f32.gmra.mrb[0].mxu0 %v870
        %v1002 = vpop.f32.mrb[0].mxu0
        %v1003 = vadd.f32 %v791, %v1002
        %v1004 = vpop.f32.mrb[0].mxu0
        %1005 = vmatprep.mubr.f32.mxu0 0.0
        %1006 = vmatmul.mubr.f32.gmra.mrb[0].mxu0 %v873
        %v1007 = vpop.f32.mrb[0].mxu0
        %v1008 = vadd.f32 %v796, %v1007
        %v1009 = vpop.f32.mrb[0].mxu0
        %1010 = vmatprep.mubr.f32.mxu0 0.0
        %1011 = vmatmul.mubr.f32.gmra.mrb[0].mxu0 %v876
        %v1012 = vpop.f32.mrb[0].mxu0
        %v1013 = vadd.f32 %v801, %v1012
        %v1014 = vpop.f32.mrb[0].mxu0
        %1015 = vmatprep.mubr.f32.mxu0 0.0
        %1016 = vmatmul.mubr.f32.gmra.mrb[0].mxu0 %v879
        %v1017 = vpop.f32.mrb[0].mxu0
        %v1018 = vadd.f32 %v806, %v1017
        %v1019 = vpop.f32.mrb[0].mxu0
        %1020 = vmatprep.mubr.f32.mxu0 0.0
        %1021 = vmatmul.mubr.f32.gmra.mrb[0].mxu0 %v882
        %v1022 = vpop.f32.mrb[0].mxu0
        %v1023 = vadd.f32 %v811, %v1022
        %v1024 = vpop.f32.mrb[0].mxu0
        %1025 = vmatprep.mubr.f32.mxu0 0.0
        %1026 = vmatmul.mubr.f32.gmra.mrb[0].mxu0 %v885
        %v1027 = vpop.f32.mrb[0].mxu0
        %v1028 = vadd.f32 %v816, %v1027
        %v1029 = vpop.f32.mrb[0].mxu0
        %1030 = vmatprep.mubr.f32.mxu0 0.0
        %1031 = vmatmul.mubr.f32.gmra.mrb[0].mxu0 %v888
        %v1032 = vpop.f32.mrb[0].mxu0
        %v1033 = vadd.f32 %v821, %v1032
        %v1034 = vpop.f32.mrb[0].mxu0
        %1035 = vmatprep.mubr.f32.mxu0 0.0
        %1036 = vmatmul.mubr.f32.gmra.mrb[0].mxu0 %v891
        %v1037 = vpop.f32.mrb[0].mxu0
        %v1038 = vadd.f32 %v826, %v1037
        %v1039 = vpop.f32.mrb[0].mxu0
        %1040 = vmatprep.mubr.f32.mxu0 0.0
        %1041 = vmatmul.mubr.f32.gmra.mrb[0].mxu0 %v894
        %v1042 = vpop.f32.mrb[0].mxu0
        %v1043 = vadd.f32 %v831, %v1042
        %v1044 = vpop.f32.mrb[0].mxu0
        %1045 = vmatprep.mubr.f32.mxu0 0.0
        %1046 = vmatmul.mubr.f32.gmra.mrb[0].mxu0 %v897
        %v1047 = vpop.f32.mrb[0].mxu0
        %v1048 = vadd.f32 %v836, %v1047
        %v1049 = vpop.f32.mrb[0].mxu0
        %1050 = vmatprep.mubr.f32.mxu0 0.0
        %1051 = vmatmul.mubr.f32.gmra.mrb[0].mxu0 %v900
        %v1052 = vpop.f32.mrb[0].mxu0
        %v1053 = vadd.f32 %v841, %v1052
        %v1054 = vpop.f32.mrb[0].mxu0
        %1055 = vmatprep.mubr.f32.mxu0 0.0
        %1056 = vmatmul.mubr.f32.gmra.mrb[0].mxu0 %v903
        %v1057 = vpop.f32.mrb[0].mxu0
        %v1058 = vadd.f32 %v846, %v1057
        %v1059 = vpop.f32.mrb[0].mxu0
        %1060 = vmatprep.mubr.f32.mxu0 0.0
        %1061 = vmatmul.mubr.f32.gmra.mrb[0].mxu0 %v906
        %v1062 = vpop.f32.mrb[0].mxu0
        %v1063 = vadd.f32 %v851, %v1062
        %v1064 = vpop.f32.mrb[0].mxu0
        %1065 = vdwg.mxu0
        %v1066 = vld [vmem:[%s221 + $0x2] sm:$0xff]
        %v1067 = vld [vmem:[%s221 + $0xa] sm:$0xff]
        %v1068 = vld [vmem:[%s221 + $0x12] sm:$0xff]
        %v1069 = vld [vmem:[%s221 + $0x1a] sm:$0xff]
        %v1070 = vld [vmem:[%s221 + $0x22] sm:$0xff]
        %v1071 = vld [vmem:[%s221 + $0x2a] sm:$0xff]
        %v1072 = vld [vmem:[%s221 + $0x32] sm:$0xff]
        %v1073 = vld [vmem:[%s221 + $0x3a] sm:$0xff]
        %v1074 = vld [vmem:[%s221 + $0x42] sm:$0xff]
        %v1075 = vld [vmem:[%s221 + $0x4a] sm:$0xff]
        %v1076 = vld [vmem:[%s221 + $0x52] sm:$0xff]
        %v1077 = vld [vmem:[%s221 + $0x5a] sm:$0xff]
        %v1078 = vld [vmem:[%s221 + $0x62] sm:$0xff]
        %v1079 = vld [vmem:[%s221 + $0x6a] sm:$0xff]
        %v1080 = vld [vmem:[%s221 + $0x72] sm:$0xff]
        %v1081 = vld [vmem:[%s221 + $0x7a] sm:$0xff]
        %v1082 = vld [vmem:[%s221 + $0x82] sm:$0xff]
        %v1083 = vld [vmem:[%s221 + $0x8a] sm:$0xff]
        %s1084 = scalar_lea.vmem %s1, 8
        %v1085 = vld [vmem:[%s1084] sm:$0x7]
        %v1087 = vsel %vm640, %v1066, 0
        %v1090 = vsel %vm640, %v1067, 0
        %v1093 = vsel %vm640, %v1068, 0
        %v1096 = vsel %vm640, %v1069, 0
        %v1099 = vsel %vm640, %v1070, 0
        %v1102 = vsel %vm640, %v1071, 0
        %v1105 = vsel %vm640, %v1072, 0
        %v1108 = vsel %vm640, %v1073, 0
        %v1111 = vsel %vm640, %v1074, 0
        %v1114 = vsel %vm640, %v1075, 0
        %v1117 = vsel %vm640, %v1076, 0
        %v1120 = vsel %vm640, %v1077, 0
        %v1123 = vsel %vm640, %v1078, 0
        %v1126 = vsel %vm640, %v1079, 0
        %v1129 = vsel %vm640, %v1080, 0
        %v1132 = vsel %vm640, %v1081, 0
        %v1135 = vsel %vm640, %v1082, 0
        %v1138 = vsel %vm640, %v1083, 0
        %v1141 = vsel %vm695, %v1085, 0
        %1143 = vmatprep.subr.mxu0 0.0
        %1144 = vmatpush1.msra.mxu0 %v1141
        %1145 = vmatprep.subr.mxu0 0.0
        %1146 = vmatpush1.msra.mxu0 0.0
        %1147 = vmatprep.subr.mxu0 0.0
        %1148 = vmatpush1.msra.mxu0 0.0
        %1149 = vmatprep.subr.mxu0 0.0
        %1150 = vmatpush1.msra.mxu0 0.0
        %1151 = vmatprep.subr.mxu0 0.0
        %1152 = vmatpush1.msra.mxu0 0.0
        %1153 = vmatprep.subr.mxu0 0.0
        %1154 = vmatpush1.msra.mxu0 0.0
        %1155 = vmatprep.subr.mxu0 0.0
        %1156 = vmatpush1.msra.mxu0 0.0
        %1157 = vmatprep.subr.mxu0 0.0
        %1158 = vmatpush1.msra.mxu0 0.0
        %1159 = vmatprep.subr.mxu0 0.0
        %1160 = vmatpush1.msra.mxu0 0.0
        %1161 = vmatprep.subr.mxu0 0.0
        %1162 = vmatpush1.msra.mxu0 0.0
        %1163 = vmatprep.subr.mxu0 0.0
        %1164 = vmatpush1.msra.mxu0 0.0
        %1165 = vmatprep.subr.mxu0 0.0
        %1166 = vmatpush1.msra.mxu0 0.0
        %1167 = vmatprep.subr.mxu0 0.0
        %1168 = vmatpush1.msra.mxu0 0.0
        %1169 = vmatprep.subr.mxu0 0.0
        %1170 = vmatpush1.msra.mxu0 0.0
        %1171 = vmatprep.subr.mxu0 0.0
        %1172 = vmatpush1.msra.mxu0 0.0
        %1173 = vmatprep.subr.mxu0 0.0
        %1174 = vmatpush1.msra.mxu0 0.0
        %1175 = vmatprep.subr.mxu0 0.0
        %1176 = vmatpush1.msra.mxu0 0.0
        %1177 = vmatprep.subr.mxu0 0.0
        %1178 = vmatpush1.msra.mxu0 0.0
        %1179 = vmatprep.subr.mxu0 0.0
        %1180 = vmatpush1.msra.mxu0 0.0
        %1181 = vmatprep.subr.mxu0 0.0
        %1182 = vmatpush1.msra.mxu0 0.0
        %1183 = vmatprep.subr.mxu0 0.0
        %1184 = vmatpush1.msra.mxu0 0.0
        %1185 = vmatprep.subr.mxu0 0.0
        %1186 = vmatpush1.msra.mxu0 0.0
        %1187 = vmatprep.subr.mxu0 0.0
        %1188 = vmatpush1.msra.mxu0 0.0
        %1189 = vmatprep.subr.mxu0 0.0
        %1190 = vmatpush1.msra.mxu0 0.0
        %1191 = vmatprep.subr.mxu0 0.0
        %1192 = vmatpush1.msra.mxu0 0.0
        %1193 = vmatprep.subr.mxu0 0.0
        %1194 = vmatpush1.msra.mxu0 0.0
        %1195 = vmatprep.subr.mxu0 0.0
        %1196 = vmatpush1.msra.mxu0 0.0
        %1197 = vmatprep.subr.mxu0 0.0
        %1198 = vmatpush1.msra.mxu0 0.0
        %1199 = vmatprep.subr.mxu0 0.0
        %1200 = vmatpush1.msra.mxu0 0.0
        %1201 = vmatprep.subr.mxu0 0.0
        %1202 = vmatpush1.msra.mxu0 0.0
        %1203 = vmatprep.subr.mxu0 0.0
        %1204 = vmatpush1.msra.mxu0 0.0
        %1205 = vmatprep.subr.mxu0 0.0
        %1206 = vmatpush1.msra.mxu0 0.0
        %1207 = vmatprep.mubr.f32.mxu0 0.0
        %1208 = vmatmul.mubr.f32.gmra.mrb[0].mxu0 %v1087
        %v1209 = vpop.f32.mrb[0].mxu0
        %v1210 = vadd.f32 0.0, %v1209
        %v1211 = vpop.f32.mrb[0].mxu0
        %1212 = vmatprep.mubr.f32.mxu0 0.0
        %1213 = vmatmul.mubr.f32.gmra.mrb[0].mxu0 %v1090
        %v1214 = vpop.f32.mrb[0].mxu0
        %v1215 = vadd.f32 0.0, %v1214
        %v1216 = vpop.f32.mrb[0].mxu0
        %1217 = vmatprep.mubr.f32.mxu0 0.0
        %1218 = vmatmul.mubr.f32.gmra.mrb[0].mxu0 %v1093
        %v1219 = vpop.f32.mrb[0].mxu0
        %v1220 = vadd.f32 0.0, %v1219
        %v1221 = vpop.f32.mrb[0].mxu0
        %1222 = vmatprep.mubr.f32.mxu0 0.0
        %1223 = vmatmul.mubr.f32.gmra.mrb[0].mxu0 %v1096
        %v1224 = vpop.f32.mrb[0].mxu0
        %v1225 = vadd.f32 0.0, %v1224
        %v1226 = vpop.f32.mrb[0].mxu0
        %1227 = vmatprep.mubr.f32.mxu0 0.0
        %1228 = vmatmul.mubr.f32.gmra.mrb[0].mxu0 %v1099
        %v1229 = vpop.f32.mrb[0].mxu0
        %v1230 = vadd.f32 0.0, %v1229
        %v1231 = vpop.f32.mrb[0].mxu0
        %1232 = vmatprep.mubr.f32.mxu0 0.0
        %1233 = vmatmul.mubr.f32.gmra.mrb[0].mxu0 %v1102
        %v1234 = vpop.f32.mrb[0].mxu0
        %v1235 = vadd.f32 0.0, %v1234
        %v1236 = vpop.f32.mrb[0].mxu0
        %1237 = vmatprep.mubr.f32.mxu0 0.0
        %1238 = vmatmul.mubr.f32.gmra.mrb[0].mxu0 %v1105
        %v1239 = vpop.f32.mrb[0].mxu0
        %v1240 = vadd.f32 0.0, %v1239
        %v1241 = vpop.f32.mrb[0].mxu0
        %1242 = vmatprep.mubr.f32.mxu0 0.0
        %1243 = vmatmul.mubr.f32.gmra.mrb[0].mxu0 %v1108
        %v1244 = vpop.f32.mrb[0].mxu0
        %v1245 = vadd.f32 0.0, %v1244
        %v1246 = vpop.f32.mrb[0].mxu0
        %1247 = vmatprep.mubr.f32.mxu0 0.0
        %1248 = vmatmul.mubr.f32.gmra.mrb[0].mxu0 %v1111
        %v1249 = vpop.f32.mrb[0].mxu0
        %v1250 = vadd.f32 0.0, %v1249
        %v1251 = vpop.f32.mrb[0].mxu0
        %1252 = vmatprep.mubr.f32.mxu0 0.0
        %1253 = vmatmul.mubr.f32.gmra.mrb[0].mxu0 %v1114
        %v1254 = vpop.f32.mrb[0].mxu0
        %v1255 = vadd.f32 0.0, %v1254
        %v1256 = vpop.f32.mrb[0].mxu0
        %1257 = vmatprep.mubr.f32.mxu0 0.0
        %1258 = vmatmul.mubr.f32.gmra.mrb[0].mxu0 %v1117
        %v1259 = vpop.f32.mrb[0].mxu0
        %v1260 = vadd.f32 0.0, %v1259
        %v1261 = vpop.f32.mrb[0].mxu0
        %1262 = vmatprep.mubr.f32.mxu0 0.0
        %1263 = vmatmul.mubr.f32.gmra.mrb[0].mxu0 %v1120
        %v1264 = vpop.f32.mrb[0].mxu0
        %v1265 = vadd.f32 0.0, %v1264
        %v1266 = vpop.f32.mrb[0].mxu0
        %1267 = vmatprep.mubr.f32.mxu0 0.0
        %1268 = vmatmul.mubr.f32.gmra.mrb[0].mxu0 %v1123
        %v1269 = vpop.f32.mrb[0].mxu0
        %v1270 = vadd.f32 0.0, %v1269
        %v1271 = vpop.f32.mrb[0].mxu0
        %1272 = vmatprep.mubr.f32.mxu0 0.0
        %1273 = vmatmul.mubr.f32.gmra.mrb[0].mxu0 %v1126
        %v1274 = vpop.f32.mrb[0].mxu0
        %v1275 = vadd.f32 0.0, %v1274
        %v1276 = vpop.f32.mrb[0].mxu0
        %1277 = vmatprep.mubr.f32.mxu0 0.0
        %1278 = vmatmul.mubr.f32.gmra.mrb[0].mxu0 %v1129
        %v1279 = vpop.f32.mrb[0].mxu0
        %v1280 = vadd.f32 0.0, %v1279
        %v1281 = vpop.f32.mrb[0].mxu0
        %1282 = vmatprep.mubr.f32.mxu0 0.0
        %1283 = vmatmul.mubr.f32.gmra.mrb[0].mxu0 %v1132
        %v1284 = vpop.f32.mrb[0].mxu0
        %v1285 = vadd.f32 0.0, %v1284
        %v1286 = vpop.f32.mrb[0].mxu0
        %1287 = vmatprep.mubr.f32.mxu0 0.0
        %1288 = vmatmul.mubr.f32.gmra.mrb[0].mxu0 %v1135
        %v1289 = vpop.f32.mrb[0].mxu0
        %v1290 = vadd.f32 0.0, %v1289
        %v1291 = vpop.f32.mrb[0].mxu0
        %1292 = vmatprep.mubr.f32.mxu0 0.0
        %1293 = vmatmul.mubr.f32.gmra.mrb[0].mxu0 %v1138
        %v1294 = vpop.f32.mrb[0].mxu0
        %v1295 = vadd.f32 0.0, %v1294
        %v1296 = vpop.f32.mrb[0].mxu0
        %1297 = vdwg.mxu0
        %v1298 = vadd.f32 %v978, %v1210
        %v1299 = vadd.f32 %v983, %v1215
        %v1300 = vadd.f32 %v988, %v1220
        %v1301 = vadd.f32 %v993, %v1225
        %v1302 = vadd.f32 %v998, %v1230
        %v1303 = vadd.f32 %v1003, %v1235
        %v1304 = vadd.f32 %v1008, %v1240
        %v1305 = vadd.f32 %v1013, %v1245
        %v1306 = vadd.f32 %v1018, %v1250
        %v1307 = vadd.f32 %v1023, %v1255
        %v1308 = vadd.f32 %v1028, %v1260
        %v1309 = vadd.f32 %v1033, %v1265
        %v1310 = vadd.f32 %v1038, %v1270
        %v1311 = vadd.f32 %v1043, %v1275
        %v1312 = vadd.f32 %v1048, %v1280
        %v1313 = vadd.f32 %v1053, %v1285
        %v1314 = vadd.f32 %v1058, %v1290
        %v1315 = vadd.f32 %v1063, %v1295
        %v1316 = vld [vmem:[%s221 + $0x12] sm:$0xff]
        %v1317 = vld [vmem:[%s221 + $0x1a] sm:$0xff]
        %v1318 = vld [vmem:[%s221 + $0x22] sm:$0xff]
        %v1319 = vld [vmem:[%s221 + $0x2a] sm:$0xff]
        %v1320 = vld [vmem:[%s221 + $0x32] sm:$0xff]
        %v1321 = vld [vmem:[%s221 + $0x3a] sm:$0xff]
        %v1322 = vld [vmem:[%s221 + $0x42] sm:$0xff]
        %v1323 = vld [vmem:[%s221 + $0x4a] sm:$0xff]
        %v1324 = vld [vmem:[%s221 + $0x52] sm:$0xff]
        %v1325 = vld [vmem:[%s221 + $0x5a] sm:$0xff]
        %v1326 = vld [vmem:[%s221 + $0x62] sm:$0xff]
        %v1327 = vld [vmem:[%s221 + $0x6a] sm:$0xff]
        %v1328 = vld [vmem:[%s221 + $0x72] sm:$0xff]
        %v1329 = vld [vmem:[%s221 + $0x7a] sm:$0xff]
        %v1330 = vld [vmem:[%s221 + $0x82] sm:$0xff]
        %v1331 = vld [vmem:[%s221 + $0x8a] sm:$0xff]
        %v1332 = vld [vmem:[%s221 + $0x92] sm:$0xff]
        %v1333 = vld [vmem:[%s221 + $0x9a] sm:$0xff]
        %s1334 = scalar_lea.vmem %s1, 12
        %v1335 = vld [vmem:[%s1334] sm:$0x7]
        %v1337 = vsel %vm640, %v1316, 0
        %v1340 = vsel %vm640, %v1317, 0
        %v1343 = vsel %vm640, %v1318, 0
        %v1346 = vsel %vm640, %v1319, 0
        %v1349 = vsel %vm640, %v1320, 0
        %v1352 = vsel %vm640, %v1321, 0
        %v1355 = vsel %vm640, %v1322, 0
        %v1358 = vsel %vm640, %v1323, 0
        %v1361 = vsel %vm640, %v1324, 0
        %v1364 = vsel %vm640, %v1325, 0
        %v1367 = vsel %vm640, %v1326, 0
        %v1370 = vsel %vm640, %v1327, 0
        %v1373 = vsel %vm640, %v1328, 0
        %v1376 = vsel %vm640, %v1329, 0
        %v1379 = vsel %vm640, %v1330, 0
        %v1382 = vsel %vm640, %v1331, 0
        %v1385 = vsel %vm640, %v1332, 0
        %v1388 = vsel %vm640, %v1333, 0
        %v1391 = vsel %vm695, %v1335, 0
        %1393 = vmatprep.subr.mxu0 0.0
        %1394 = vmatpush1.msra.mxu0 %v1391
        %1395 = vmatprep.subr.mxu0 0.0
        %1396 = vmatpush1.msra.mxu0 0.0
        %1397 = vmatprep.subr.mxu0 0.0
        %1398 = vmatpush1.msra.mxu0 0.0
        %1399 = vmatprep.subr.mxu0 0.0
        %1400 = vmatpush1.msra.mxu0 0.0
        %1401 = vmatprep.subr.mxu0 0.0
        %1402 = vmatpush1.msra.mxu0 0.0
        %1403 = vmatprep.subr.mxu0 0.0
        %1404 = vmatpush1.msra.mxu0 0.0
        %1405 = vmatprep.subr.mxu0 0.0
        %1406 = vmatpush1.msra.mxu0 0.0
        %1407 = vmatprep.subr.mxu0 0.0
        %1408 = vmatpush1.msra.mxu0 0.0
        %1409 = vmatprep.subr.mxu0 0.0
        %1410 = vmatpush1.msra.mxu0 0.0
        %1411 = vmatprep.subr.mxu0 0.0
        %1412 = vmatpush1.msra.mxu0 0.0
        %1413 = vmatprep.subr.mxu0 0.0
        %1414 = vmatpush1.msra.mxu0 0.0
        %1415 = vmatprep.subr.mxu0 0.0
        %1416 = vmatpush1.msra.mxu0 0.0
        %1417 = vmatprep.subr.mxu0 0.0
        %1418 = vmatpush1.msra.mxu0 0.0
        %1419 = vmatprep.subr.mxu0 0.0
        %1420 = vmatpush1.msra.mxu0 0.0
        %1421 = vmatprep.subr.mxu0 0.0
        %1422 = vmatpush1.msra.mxu0 0.0
        %1423 = vmatprep.subr.mxu0 0.0
        %1424 = vmatpush1.msra.mxu0 0.0
        %1425 = vmatprep.subr.mxu0 0.0
        %1426 = vmatpush1.msra.mxu0 0.0
        %1427 = vmatprep.subr.mxu0 0.0
        %1428 = vmatpush1.msra.mxu0 0.0
        %1429 = vmatprep.subr.mxu0 0.0
        %1430 = vmatpush1.msra.mxu0 0.0
        %1431 = vmatprep.subr.mxu0 0.0
        %1432 = vmatpush1.msra.mxu0 0.0
        %1433 = vmatprep.subr.mxu0 0.0
        %1434 = vmatpush1.msra.mxu0 0.0
        %1435 = vmatprep.subr.mxu0 0.0
        %1436 = vmatpush1.msra.mxu0 0.0
        %1437 = vmatprep.subr.mxu0 0.0
        %1438 = vmatpush1.msra.mxu0 0.0
        %1439 = vmatprep.subr.mxu0 0.0
        %1440 = vmatpush1.msra.mxu0 0.0
        %1441 = vmatprep.subr.mxu0 0.0
        %1442 = vmatpush1.msra.mxu0 0.0
        %1443 = vmatprep.subr.mxu0 0.0
        %1444 = vmatpush1.msra.mxu0 0.0
        %1445 = vmatprep.subr.mxu0 0.0
        %1446 = vmatpush1.msra.mxu0 0.0
        %1447 = vmatprep.subr.mxu0 0.0
        %1448 = vmatpush1.msra.mxu0 0.0
        %1449 = vmatprep.subr.mxu0 0.0
        %1450 = vmatpush1.msra.mxu0 0.0
        %1451 = vmatprep.subr.mxu0 0.0
        %1452 = vmatpush1.msra.mxu0 0.0
        %1453 = vmatprep.subr.mxu0 0.0
        %1454 = vmatpush1.msra.mxu0 0.0
        %1455 = vmatprep.subr.mxu0 0.0
        %1456 = vmatpush1.msra.mxu0 0.0
        %1457 = vmatprep.mubr.f32.mxu0 0.0
        %1458 = vmatmul.mubr.f32.gmra.mrb[0].mxu0 %v1337
        %v1459 = vpop.f32.mrb[0].mxu0
        %v1460 = vadd.f32 0.0, %v1459
        %v1461 = vpop.f32.mrb[0].mxu0
        %1462 = vmatprep.mubr.f32.mxu0 0.0
        %1463 = vmatmul.mubr.f32.gmra.mrb[0].mxu0 %v1340
        %v1464 = vpop.f32.mrb[0].mxu0
        %v1465 = vadd.f32 0.0, %v1464
        %v1466 = vpop.f32.mrb[0].mxu0
        %1467 = vmatprep.mubr.f32.mxu0 0.0
        %1468 = vmatmul.mubr.f32.gmra.mrb[0].mxu0 %v1343
        %v1469 = vpop.f32.mrb[0].mxu0
        %v1470 = vadd.f32 0.0, %v1469
        %v1471 = vpop.f32.mrb[0].mxu0
        %1472 = vmatprep.mubr.f32.mxu0 0.0
        %1473 = vmatmul.mubr.f32.gmra.mrb[0].mxu0 %v1346
        %v1474 = vpop.f32.mrb[0].mxu0
        %v1475 = vadd.f32 0.0, %v1474
        %v1476 = vpop.f32.mrb[0].mxu0
        %1477 = vmatprep.mubr.f32.mxu0 0.0
        %1478 = vmatmul.mubr.f32.gmra.mrb[0].mxu0 %v1349
        %v1479 = vpop.f32.mrb[0].mxu0
        %v1480 = vadd.f32 0.0, %v1479
        %v1481 = vpop.f32.mrb[0].mxu0
        %1482 = vmatprep.mubr.f32.mxu0 0.0
        %1483 = vmatmul.mubr.f32.gmra.mrb[0].mxu0 %v1352
        %v1484 = vpop.f32.mrb[0].mxu0
        %v1485 = vadd.f32 0.0, %v1484
        %v1486 = vpop.f32.mrb[0].mxu0
        %1487 = vmatprep.mubr.f32.mxu0 0.0
        %1488 = vmatmul.mubr.f32.gmra.mrb[0].mxu0 %v1355
        %v1489 = vpop.f32.mrb[0].mxu0
        %v1490 = vadd.f32 0.0, %v1489
        %v1491 = vpop.f32.mrb[0].mxu0
        %1492 = vmatprep.mubr.f32.mxu0 0.0
        %1493 = vmatmul.mubr.f32.gmra.mrb[0].mxu0 %v1358
        %v1494 = vpop.f32.mrb[0].mxu0
        %v1495 = vadd.f32 0.0, %v1494
        %v1496 = vpop.f32.mrb[0].mxu0
        %1497 = vmatprep.mubr.f32.mxu0 0.0
        %1498 = vmatmul.mubr.f32.gmra.mrb[0].mxu0 %v1361
        %v1499 = vpop.f32.mrb[0].mxu0
        %v1500 = vadd.f32 0.0, %v1499
        %v1501 = vpop.f32.mrb[0].mxu0
        %1502 = vmatprep.mubr.f32.mxu0 0.0
        %1503 = vmatmul.mubr.f32.gmra.mrb[0].mxu0 %v1364
        %v1504 = vpop.f32.mrb[0].mxu0
        %v1505 = vadd.f32 0.0, %v1504
        %v1506 = vpop.f32.mrb[0].mxu0
        %1507 = vmatprep.mubr.f32.mxu0 0.0
        %1508 = vmatmul.mubr.f32.gmra.mrb[0].mxu0 %v1367
        %v1509 = vpop.f32.mrb[0].mxu0
        %v1510 = vadd.f32 0.0, %v1509
        %v1511 = vpop.f32.mrb[0].mxu0
        %1512 = vmatprep.mubr.f32.mxu0 0.0
        %1513 = vmatmul.mubr.f32.gmra.mrb[0].mxu0 %v1370
        %v1514 = vpop.f32.mrb[0].mxu0
        %v1515 = vadd.f32 0.0, %v1514
        %v1516 = vpop.f32.mrb[0].mxu0
        %1517 = vmatprep.mubr.f32.mxu0 0.0
        %1518 = vmatmul.mubr.f32.gmra.mrb[0].mxu0 %v1373
        %v1519 = vpop.f32.mrb[0].mxu0
        %v1520 = vadd.f32 0.0, %v1519
        %v1521 = vpop.f32.mrb[0].mxu0
        %1522 = vmatprep.mubr.f32.mxu0 0.0
        %1523 = vmatmul.mubr.f32.gmra.mrb[0].mxu0 %v1376
        %v1524 = vpop.f32.mrb[0].mxu0
        %v1525 = vadd.f32 0.0, %v1524
        %v1526 = vpop.f32.mrb[0].mxu0
        %1527 = vmatprep.mubr.f32.mxu0 0.0
        %1528 = vmatmul.mubr.f32.gmra.mrb[0].mxu0 %v1379
        %v1529 = vpop.f32.mrb[0].mxu0
        %v1530 = vadd.f32 0.0, %v1529
        %v1531 = vpop.f32.mrb[0].mxu0
        %1532 = vmatprep.mubr.f32.mxu0 0.0
        %1533 = vmatmul.mubr.f32.gmra.mrb[0].mxu0 %v1382
        %v1534 = vpop.f32.mrb[0].mxu0
        %v1535 = vadd.f32 0.0, %v1534
        %v1536 = vpop.f32.mrb[0].mxu0
        %1537 = vmatprep.mubr.f32.mxu0 0.0
        %1538 = vmatmul.mubr.f32.gmra.mrb[0].mxu0 %v1385
        %v1539 = vpop.f32.mrb[0].mxu0
        %v1540 = vadd.f32 0.0, %v1539
        %v1541 = vpop.f32.mrb[0].mxu0
        %1542 = vmatprep.mubr.f32.mxu0 0.0
        %1543 = vmatmul.mubr.f32.gmra.mrb[0].mxu0 %v1388
        %v1544 = vpop.f32.mrb[0].mxu0
        %v1545 = vadd.f32 0.0, %v1544
        %v1546 = vpop.f32.mrb[0].mxu0
        %1547 = vdwg.mxu0
        %v1548 = vadd.f32 %v1298, %v1460
        %v1549 = vadd.f32 %v1299, %v1465
        %v1550 = vadd.f32 %v1300, %v1470
        %v1551 = vadd.f32 %v1301, %v1475
        %v1552 = vadd.f32 %v1302, %v1480
        %v1553 = vadd.f32 %v1303, %v1485
        %v1554 = vadd.f32 %v1304, %v1490
        %v1555 = vadd.f32 %v1305, %v1495
        %v1556 = vadd.f32 %v1306, %v1500
        %v1557 = vadd.f32 %v1307, %v1505
        %v1558 = vadd.f32 %v1308, %v1510
        %v1559 = vadd.f32 %v1309, %v1515
        %v1560 = vadd.f32 %v1310, %v1520
        %v1561 = vadd.f32 %v1311, %v1525
        %v1562 = vadd.f32 %v1312, %v1530
        %v1563 = vadd.f32 %v1313, %v1535
        %v1564 = vadd.f32 %v1314, %v1540
        %v1565 = vadd.f32 %v1315, %v1545
        %v1566 = vld [vmem:[%s221 + $0x13] sm:$0xff]
        %v1567 = vld [vmem:[%s221 + $0x1b] sm:$0xff]
        %v1568 = vld [vmem:[%s221 + $0x23] sm:$0xff]
        %v1569 = vld [vmem:[%s221 + $0x2b] sm:$0xff]
        %v1570 = vld [vmem:[%s221 + $0x33] sm:$0xff]
        %v1571 = vld [vmem:[%s221 + $0x3b] sm:$0xff]
        %v1572 = vld [vmem:[%s221 + $0x43] sm:$0xff]
        %v1573 = vld [vmem:[%s221 + $0x4b] sm:$0xff]
        %v1574 = vld [vmem:[%s221 + $0x53] sm:$0xff]
        %v1575 = vld [vmem:[%s221 + $0x5b] sm:$0xff]
        %v1576 = vld [vmem:[%s221 + $0x63] sm:$0xff]
        %v1577 = vld [vmem:[%s221 + $0x6b] sm:$0xff]
        %v1578 = vld [vmem:[%s221 + $0x73] sm:$0xff]
        %v1579 = vld [vmem:[%s221 + $0x7b] sm:$0xff]
        %v1580 = vld [vmem:[%s221 + $0x83] sm:$0xff]
        %v1581 = vld [vmem:[%s221 + $0x8b] sm:$0xff]
        %v1582 = vld [vmem:[%s221 + $0x93] sm:$0xff]
        %v1583 = vld [vmem:[%s221 + $0x9b] sm:$0xff]
        %s1584 = scalar_lea.vmem %s1, 16
        %v1585 = vld [vmem:[%s1584] sm:$0x7]
        %v1587 = vsel %vm640, %v1566, 0
        %v1590 = vsel %vm640, %v1567, 0
        %v1593 = vsel %vm640, %v1568, 0
        %v1596 = vsel %vm640, %v1569, 0
        %v1599 = vsel %vm640, %v1570, 0
        %v1602 = vsel %vm640, %v1571, 0
        %v1605 = vsel %vm640, %v1572, 0
        %v1608 = vsel %vm640, %v1573, 0
        %v1611 = vsel %vm640, %v1574, 0
        %v1614 = vsel %vm640, %v1575, 0
        %v1617 = vsel %vm640, %v1576, 0
        %v1620 = vsel %vm640, %v1577, 0
        %v1623 = vsel %vm640, %v1578, 0
        %v1626 = vsel %vm640, %v1579, 0
        %v1629 = vsel %vm640, %v1580, 0
        %v1632 = vsel %vm640, %v1581, 0
        %v1635 = vsel %vm640, %v1582, 0
        %v1638 = vsel %vm640, %v1583, 0
        %v1641 = vsel %vm695, %v1585, 0
        %1643 = vmatprep.subr.mxu0 0.0
        %1644 = vmatpush1.msra.mxu0 %v1641
        %1645 = vmatprep.subr.mxu0 0.0
        %1646 = vmatpush1.msra.mxu0 0.0
        %1647 = vmatprep.subr.mxu0 0.0
        %1648 = vmatpush1.msra.mxu0 0.0
        %1649 = vmatprep.subr.mxu0 0.0
        %1650 = vmatpush1.msra.mxu0 0.0
        %1651 = vmatprep.subr.mxu0 0.0
        %1652 = vmatpush1.msra.mxu0 0.0
        %1653 = vmatprep.subr.mxu0 0.0
        %1654 = vmatpush1.msra.mxu0 0.0
        %1655 = vmatprep.subr.mxu0 0.0
        %1656 = vmatpush1.msra.mxu0 0.0
        %1657 = vmatprep.subr.mxu0 0.0
        %1658 = vmatpush1.msra.mxu0 0.0
        %1659 = vmatprep.subr.mxu0 0.0
        %1660 = vmatpush1.msra.mxu0 0.0
        %1661 = vmatprep.subr.mxu0 0.0
        %1662 = vmatpush1.msra.mxu0 0.0
        %1663 = vmatprep.subr.mxu0 0.0
        %1664 = vmatpush1.msra.mxu0 0.0
        %1665 = vmatprep.subr.mxu0 0.0
        %1666 = vmatpush1.msra.mxu0 0.0
        %1667 = vmatprep.subr.mxu0 0.0
        %1668 = vmatpush1.msra.mxu0 0.0
        %1669 = vmatprep.subr.mxu0 0.0
        %1670 = vmatpush1.msra.mxu0 0.0
        %1671 = vmatprep.subr.mxu0 0.0
        %1672 = vmatpush1.msra.mxu0 0.0
        %1673 = vmatprep.subr.mxu0 0.0
        %1674 = vmatpush1.msra.mxu0 0.0
        %1675 = vmatprep.subr.mxu0 0.0
        %1676 = vmatpush1.msra.mxu0 0.0
        %1677 = vmatprep.subr.mxu0 0.0
        %1678 = vmatpush1.msra.mxu0 0.0
        %1679 = vmatprep.subr.mxu0 0.0
        %1680 = vmatpush1.msra.mxu0 0.0
        %1681 = vmatprep.subr.mxu0 0.0
        %1682 = vmatpush1.msra.mxu0 0.0
        %1683 = vmatprep.subr.mxu0 0.0
        %1684 = vmatpush1.msra.mxu0 0.0
        %1685 = vmatprep.subr.mxu0 0.0
        %1686 = vmatpush1.msra.mxu0 0.0
        %1687 = vmatprep.subr.mxu0 0.0
        %1688 = vmatpush1.msra.mxu0 0.0
        %1689 = vmatprep.subr.mxu0 0.0
        %1690 = vmatpush1.msra.mxu0 0.0
        %1691 = vmatprep.subr.mxu0 0.0
        %1692 = vmatpush1.msra.mxu0 0.0
        %1693 = vmatprep.subr.mxu0 0.0
        %1694 = vmatpush1.msra.mxu0 0.0
        %1695 = vmatprep.subr.mxu0 0.0
        %1696 = vmatpush1.msra.mxu0 0.0
        %1697 = vmatprep.subr.mxu0 0.0
        %1698 = vmatpush1.msra.mxu0 0.0
        %1699 = vmatprep.subr.mxu0 0.0
        %1700 = vmatpush1.msra.mxu0 0.0
        %1701 = vmatprep.subr.mxu0 0.0
        %1702 = vmatpush1.msra.mxu0 0.0
        %1703 = vmatprep.subr.mxu0 0.0
        %1704 = vmatpush1.msra.mxu0 0.0
        %1705 = vmatprep.subr.mxu0 0.0
        %1706 = vmatpush1.msra.mxu0 0.0
        %1707 = vmatprep.mubr.f32.mxu0 0.0
        %1708 = vmatmul.mubr.f32.gmra.mrb[0].mxu0 %v1587
        %v1709 = vpop.f32.mrb[0].mxu0
        %v1710 = vadd.f32 0.0, %v1709
        %v1711 = vpop.f32.mrb[0].mxu0
        %1712 = vmatprep.mubr.f32.mxu0 0.0
        %1713 = vmatmul.mubr.f32.gmra.mrb[0].mxu0 %v1590
        %v1714 = vpop.f32.mrb[0].mxu0
        %v1715 = vadd.f32 0.0, %v1714
        %v1716 = vpop.f32.mrb[0].mxu0
        %1717 = vmatprep.mubr.f32.mxu0 0.0
        %1718 = vmatmul.mubr.f32.gmra.mrb[0].mxu0 %v1593
        %v1719 = vpop.f32.mrb[0].mxu0
        %v1720 = vadd.f32 0.0, %v1719
        %v1721 = vpop.f32.mrb[0].mxu0
        %1722 = vmatprep.mubr.f32.mxu0 0.0
        %1723 = vmatmul.mubr.f32.gmra.mrb[0].mxu0 %v1596
        %v1724 = vpop.f32.mrb[0].mxu0
        %v1725 = vadd.f32 0.0, %v1724
        %v1726 = vpop.f32.mrb[0].mxu0
        %1727 = vmatprep.mubr.f32.mxu0 0.0
        %1728 = vmatmul.mubr.f32.gmra.mrb[0].mxu0 %v1599
        %v1729 = vpop.f32.mrb[0].mxu0
        %v1730 = vadd.f32 0.0, %v1729
        %v1731 = vpop.f32.mrb[0].mxu0
        %1732 = vmatprep.mubr.f32.mxu0 0.0
        %1733 = vmatmul.mubr.f32.gmra.mrb[0].mxu0 %v1602
        %v1734 = vpop.f32.mrb[0].mxu0
        %v1735 = vadd.f32 0.0, %v1734
        %v1736 = vpop.f32.mrb[0].mxu0
        %1737 = vmatprep.mubr.f32.mxu0 0.0
        %1738 = vmatmul.mubr.f32.gmra.mrb[0].mxu0 %v1605
        %v1739 = vpop.f32.mrb[0].mxu0
        %v1740 = vadd.f32 0.0, %v1739
        %v1741 = vpop.f32.mrb[0].mxu0
        %1742 = vmatprep.mubr.f32.mxu0 0.0
        %1743 = vmatmul.mubr.f32.gmra.mrb[0].mxu0 %v1608
        %v1744 = vpop.f32.mrb[0].mxu0
        %v1745 = vadd.f32 0.0, %v1744
        %v1746 = vpop.f32.mrb[0].mxu0
        %1747 = vmatprep.mubr.f32.mxu0 0.0
        %1748 = vmatmul.mubr.f32.gmra.mrb[0].mxu0 %v1611
        %v1749 = vpop.f32.mrb[0].mxu0
        %v1750 = vadd.f32 0.0, %v1749
        %v1751 = vpop.f32.mrb[0].mxu0
        %1752 = vmatprep.mubr.f32.mxu0 0.0
        %1753 = vmatmul.mubr.f32.gmra.mrb[0].mxu0 %v1614
        %v1754 = vpop.f32.mrb[0].mxu0
        %v1755 = vadd.f32 0.0, %v1754
        %v1756 = vpop.f32.mrb[0].mxu0
        %1757 = vmatprep.mubr.f32.mxu0 0.0
        %1758 = vmatmul.mubr.f32.gmra.mrb[0].mxu0 %v1617
        %v1759 = vpop.f32.mrb[0].mxu0
        %v1760 = vadd.f32 0.0, %v1759
        %v1761 = vpop.f32.mrb[0].mxu0
        %1762 = vmatprep.mubr.f32.mxu0 0.0
        %1763 = vmatmul.mubr.f32.gmra.mrb[0].mxu0 %v1620
        %v1764 = vpop.f32.mrb[0].mxu0
        %v1765 = vadd.f32 0.0, %v1764
        %v1766 = vpop.f32.mrb[0].mxu0
        %1767 = vmatprep.mubr.f32.mxu0 0.0
        %1768 = vmatmul.mubr.f32.gmra.mrb[0].mxu0 %v1623
        %v1769 = vpop.f32.mrb[0].mxu0
        %v1770 = vadd.f32 0.0, %v1769
        %v1771 = vpop.f32.mrb[0].mxu0
        %1772 = vmatprep.mubr.f32.mxu0 0.0
        %1773 = vmatmul.mubr.f32.gmra.mrb[0].mxu0 %v1626
        %v1774 = vpop.f32.mrb[0].mxu0
        %v1775 = vadd.f32 0.0, %v1774
        %v1776 = vpop.f32.mrb[0].mxu0
        %1777 = vmatprep.mubr.f32.mxu0 0.0
        %1778 = vmatmul.mubr.f32.gmra.mrb[0].mxu0 %v1629
        %v1779 = vpop.f32.mrb[0].mxu0
        %v1780 = vadd.f32 0.0, %v1779
        %v1781 = vpop.f32.mrb[0].mxu0
        %1782 = vmatprep.mubr.f32.mxu0 0.0
        %1783 = vmatmul.mubr.f32.gmra.mrb[0].mxu0 %v1632
        %v1784 = vpop.f32.mrb[0].mxu0
        %v1785 = vadd.f32 0.0, %v1784
        %v1786 = vpop.f32.mrb[0].mxu0
        %1787 = vmatprep.mubr.f32.mxu0 0.0
        %1788 = vmatmul.mubr.f32.gmra.mrb[0].mxu0 %v1635
        %v1789 = vpop.f32.mrb[0].mxu0
        %v1790 = vadd.f32 0.0, %v1789
        %v1791 = vpop.f32.mrb[0].mxu0
        %1792 = vmatprep.mubr.f32.mxu0 0.0
        %1793 = vmatmul.mubr.f32.gmra.mrb[0].mxu0 %v1638
        %v1794 = vpop.f32.mrb[0].mxu0
        %v1795 = vadd.f32 0.0, %v1794
        %v1796 = vpop.f32.mrb[0].mxu0
        %1797 = vdwg.mxu0
        %v1798 = vadd.f32 %v1548, %v1710
        %v1799 = vadd.f32 %v1549, %v1715
        %v1800 = vadd.f32 %v1550, %v1720
        %v1801 = vadd.f32 %v1551, %v1725
        %v1802 = vadd.f32 %v1552, %v1730
        %v1803 = vadd.f32 %v1553, %v1735
        %v1804 = vadd.f32 %v1554, %v1740
        %v1805 = vadd.f32 %v1555, %v1745
        %v1806 = vadd.f32 %v1556, %v1750
        %v1807 = vadd.f32 %v1557, %v1755
        %v1808 = vadd.f32 %v1558, %v1760
        %v1809 = vadd.f32 %v1559, %v1765
        %v1810 = vadd.f32 %v1560, %v1770
        %v1811 = vadd.f32 %v1561, %v1775
        %v1812 = vadd.f32 %v1562, %v1780
        %v1813 = vadd.f32 %v1563, %v1785
        %v1814 = vadd.f32 %v1564, %v1790
        %v1815 = vadd.f32 %v1565, %v1795
        %v1816 = vld [vmem:[%s221 + $0x14] sm:$0xff]
        %v1817 = vld [vmem:[%s221 + $0x1c] sm:$0xff]
        %v1818 = vld [vmem:[%s221 + $0x24] sm:$0xff]
        %v1819 = vld [vmem:[%s221 + $0x2c] sm:$0xff]
        %v1820 = vld [vmem:[%s221 + $0x34] sm:$0xff]
        %v1821 = vld [vmem:[%s221 + $0x3c] sm:$0xff]
        %v1822 = vld [vmem:[%s221 + $0x44] sm:$0xff]
        %v1823 = vld [vmem:[%s221 + $0x4c] sm:$0xff]
        %v1824 = vld [vmem:[%s221 + $0x54] sm:$0xff]
        %v1825 = vld [vmem:[%s221 + $0x5c] sm:$0xff]
        %v1826 = vld [vmem:[%s221 + $0x64] sm:$0xff]
        %v1827 = vld [vmem:[%s221 + $0x6c] sm:$0xff]
        %v1828 = vld [vmem:[%s221 + $0x74] sm:$0xff]
        %v1829 = vld [vmem:[%s221 + $0x7c] sm:$0xff]
        %v1830 = vld [vmem:[%s221 + $0x84] sm:$0xff]
        %v1831 = vld [vmem:[%s221 + $0x8c] sm:$0xff]
        %v1832 = vld [vmem:[%s221 + $0x94] sm:$0xff]
        %v1833 = vld [vmem:[%s221 + $0x9c] sm:$0xff]
        %s1834 = scalar_lea.vmem %s1, 20
        %v1835 = vld [vmem:[%s1834] sm:$0x7]
        %v1837 = vsel %vm640, %v1816, 0
        %v1840 = vsel %vm640, %v1817, 0
        %v1843 = vsel %vm640, %v1818, 0
        %v1846 = vsel %vm640, %v1819, 0
        %v1849 = vsel %vm640, %v1820, 0
        %v1852 = vsel %vm640, %v1821, 0
        %v1855 = vsel %vm640, %v1822, 0
        %v1858 = vsel %vm640, %v1823, 0
        %v1861 = vsel %vm640, %v1824, 0
        %v1864 = vsel %vm640, %v1825, 0
        %v1867 = vsel %vm640, %v1826, 0
        %v1870 = vsel %vm640, %v1827, 0
        %v1873 = vsel %vm640, %v1828, 0
        %v1876 = vsel %vm640, %v1829, 0
        %v1879 = vsel %vm640, %v1830, 0
        %v1882 = vsel %vm640, %v1831, 0
        %v1885 = vsel %vm640, %v1832, 0
        %v1888 = vsel %vm640, %v1833, 0
        %v1891 = vsel %vm695, %v1835, 0
        %1893 = vmatprep.subr.mxu0 0.0
        %1894 = vmatpush1.msra.mxu0 %v1891
        %1895 = vmatprep.subr.mxu0 0.0
        %1896 = vmatpush1.msra.mxu0 0.0
        %1897 = vmatprep.subr.mxu0 0.0
        %1898 = vmatpush1.msra.mxu0 0.0
        %1899 = vmatprep.subr.mxu0 0.0
        %1900 = vmatpush1.msra.mxu0 0.0
        %1901 = vmatprep.subr.mxu0 0.0
        %1902 = vmatpush1.msra.mxu0 0.0
        %1903 = vmatprep.subr.mxu0 0.0
        %1904 = vmatpush1.msra.mxu0 0.0
        %1905 = vmatprep.subr.mxu0 0.0
        %1906 = vmatpush1.msra.mxu0 0.0
        %1907 = vmatprep.subr.mxu0 0.0
        %1908 = vmatpush1.msra.mxu0 0.0
        %1909 = vmatprep.subr.mxu0 0.0
        %1910 = vmatpush1.msra.mxu0 0.0
        %1911 = vmatprep.subr.mxu0 0.0
        %1912 = vmatpush1.msra.mxu0 0.0
        %1913 = vmatprep.subr.mxu0 0.0
        %1914 = vmatpush1.msra.mxu0 0.0
        %1915 = vmatprep.subr.mxu0 0.0
        %1916 = vmatpush1.msra.mxu0 0.0
        %1917 = vmatprep.subr.mxu0 0.0
        %1918 = vmatpush1.msra.mxu0 0.0
        %1919 = vmatprep.subr.mxu0 0.0
        %1920 = vmatpush1.msra.mxu0 0.0
        %1921 = vmatprep.subr.mxu0 0.0
        %1922 = vmatpush1.msra.mxu0 0.0
        %1923 = vmatprep.subr.mxu0 0.0
        %1924 = vmatpush1.msra.mxu0 0.0
        %1925 = vmatprep.subr.mxu0 0.0
        %1926 = vmatpush1.msra.mxu0 0.0
        %1927 = vmatprep.subr.mxu0 0.0
        %1928 = vmatpush1.msra.mxu0 0.0
        %1929 = vmatprep.subr.mxu0 0.0
        %1930 = vmatpush1.msra.mxu0 0.0
        %1931 = vmatprep.subr.mxu0 0.0
        %1932 = vmatpush1.msra.mxu0 0.0
        %1933 = vmatprep.subr.mxu0 0.0
        %1934 = vmatpush1.msra.mxu0 0.0
        %1935 = vmatprep.subr.mxu0 0.0
        %1936 = vmatpush1.msra.mxu0 0.0
        %1937 = vmatprep.subr.mxu0 0.0
        %1938 = vmatpush1.msra.mxu0 0.0
        %1939 = vmatprep.subr.mxu0 0.0
        %1940 = vmatpush1.msra.mxu0 0.0
        %1941 = vmatprep.subr.mxu0 0.0
        %1942 = vmatpush1.msra.mxu0 0.0
        %1943 = vmatprep.subr.mxu0 0.0
        %1944 = vmatpush1.msra.mxu0 0.0
        %1945 = vmatprep.subr.mxu0 0.0
        %1946 = vmatpush1.msra.mxu0 0.0
        %1947 = vmatprep.subr.mxu0 0.0
        %1948 = vmatpush1.msra.mxu0 0.0
        %1949 = vmatprep.subr.mxu0 0.0
        %1950 = vmatpush1.msra.mxu0 0.0
        %1951 = vmatprep.subr.mxu0 0.0
        %1952 = vmatpush1.msra.mxu0 0.0
        %1953 = vmatprep.subr.mxu0 0.0
        %1954 = vmatpush1.msra.mxu0 0.0
        %1955 = vmatprep.subr.mxu0 0.0
        %1956 = vmatpush1.msra.mxu0 0.0
        %1957 = vmatprep.mubr.f32.mxu0 0.0
        %1958 = vmatmul.mubr.f32.gmra.mrb[0].mxu0 %v1837
        %v1959 = vpop.f32.mrb[0].mxu0
        %v1960 = vadd.f32 0.0, %v1959
        %v1961 = vpop.f32.mrb[0].mxu0
        %1962 = vmatprep.mubr.f32.mxu0 0.0
        %1963 = vmatmul.mubr.f32.gmra.mrb[0].mxu0 %v1840
        %v1964 = vpop.f32.mrb[0].mxu0
        %v1965 = vadd.f32 0.0, %v1964
        %v1966 = vpop.f32.mrb[0].mxu0
        %1967 = vmatprep.mubr.f32.mxu0 0.0
        %1968 = vmatmul.mubr.f32.gmra.mrb[0].mxu0 %v1843
        %v1969 = vpop.f32.mrb[0].mxu0
        %v1970 = vadd.f32 0.0, %v1969
        %v1971 = vpop.f32.mrb[0].mxu0
        %1972 = vmatprep.mubr.f32.mxu0 0.0
        %1973 = vmatmul.mubr.f32.gmra.mrb[0].mxu0 %v1846
        %v1974 = vpop.f32.mrb[0].mxu0
        %v1975 = vadd.f32 0.0, %v1974
        %v1976 = vpop.f32.mrb[0].mxu0
        %1977 = vmatprep.mubr.f32.mxu0 0.0
        %1978 = vmatmul.mubr.f32.gmra.mrb[0].mxu0 %v1849
        %v1979 = vpop.f32.mrb[0].mxu0
        %v1980 = vadd.f32 0.0, %v1979
        %v1981 = vpop.f32.mrb[0].mxu0
        %1982 = vmatprep.mubr.f32.mxu0 0.0
        %1983 = vmatmul.mubr.f32.gmra.mrb[0].mxu0 %v1852
        %v1984 = vpop.f32.mrb[0].mxu0
        %v1985 = vadd.f32 0.0, %v1984
        %v1986 = vpop.f32.mrb[0].mxu0
        %1987 = vmatprep.mubr.f32.mxu0 0.0
        %1988 = vmatmul.mubr.f32.gmra.mrb[0].mxu0 %v1855
        %v1989 = vpop.f32.mrb[0].mxu0
        %v1990 = vadd.f32 0.0, %v1989
        %v1991 = vpop.f32.mrb[0].mxu0
        %1992 = vmatprep.mubr.f32.mxu0 0.0
        %1993 = vmatmul.mubr.f32.gmra.mrb[0].mxu0 %v1858
        %v1994 = vpop.f32.mrb[0].mxu0
        %v1995 = vadd.f32 0.0, %v1994
        %v1996 = vpop.f32.mrb[0].mxu0
        %1997 = vmatprep.mubr.f32.mxu0 0.0
        %1998 = vmatmul.mubr.f32.gmra.mrb[0].mxu0 %v1861
        %v1999 = vpop.f32.mrb[0].mxu0
        %v2000 = vadd.f32 0.0, %v1999
        %v2001 = vpop.f32.mrb[0].mxu0
        %2002 = vmatprep.mubr.f32.mxu0 0.0
        %2003 = vmatmul.mubr.f32.gmra.mrb[0].mxu0 %v1864
        %v2004 = vpop.f32.mrb[0].mxu0
        %v2005 = vadd.f32 0.0, %v2004
        %v2006 = vpop.f32.mrb[0].mxu0
        %2007 = vmatprep.mubr.f32.mxu0 0.0
        %2008 = vmatmul.mubr.f32.gmra.mrb[0].mxu0 %v1867
        %v2009 = vpop.f32.mrb[0].mxu0
        %v2010 = vadd.f32 0.0, %v2009
        %v2011 = vpop.f32.mrb[0].mxu0
        %2012 = vmatprep.mubr.f32.mxu0 0.0
        %2013 = vmatmul.mubr.f32.gmra.mrb[0].mxu0 %v1870
        %v2014 = vpop.f32.mrb[0].mxu0
        %v2015 = vadd.f32 0.0, %v2014
        %v2016 = vpop.f32.mrb[0].mxu0
        %2017 = vmatprep.mubr.f32.mxu0 0.0
        %2018 = vmatmul.mubr.f32.gmra.mrb[0].mxu0 %v1873
        %v2019 = vpop.f32.mrb[0].mxu0
        %v2020 = vadd.f32 0.0, %v2019
        %v2021 = vpop.f32.mrb[0].mxu0
        %2022 = vmatprep.mubr.f32.mxu0 0.0
        %2023 = vmatmul.mubr.f32.gmra.mrb[0].mxu0 %v1876
        %v2024 = vpop.f32.mrb[0].mxu0
        %v2025 = vadd.f32 0.0, %v2024
        %v2026 = vpop.f32.mrb[0].mxu0
        %2027 = vmatprep.mubr.f32.mxu0 0.0
        %2028 = vmatmul.mubr.f32.gmra.mrb[0].mxu0 %v1879
        %v2029 = vpop.f32.mrb[0].mxu0
        %v2030 = vadd.f32 0.0, %v2029
        %v2031 = vpop.f32.mrb[0].mxu0
        %2032 = vmatprep.mubr.f32.mxu0 0.0
        %2033 = vmatmul.mubr.f32.gmra.mrb[0].mxu0 %v1882
        %v2034 = vpop.f32.mrb[0].mxu0
        %v2035 = vadd.f32 0.0, %v2034
        %v2036 = vpop.f32.mrb[0].mxu0
        %2037 = vmatprep.mubr.f32.mxu0 0.0
        %2038 = vmatmul.mubr.f32.gmra.mrb[0].mxu0 %v1885
        %v2039 = vpop.f32.mrb[0].mxu0
        %v2040 = vadd.f32 0.0, %v2039
        %v2041 = vpop.f32.mrb[0].mxu0
        %2042 = vmatprep.mubr.f32.mxu0 0.0
        %2043 = vmatmul.mubr.f32.gmra.mrb[0].mxu0 %v1888
        %v2044 = vpop.f32.mrb[0].mxu0
        %v2045 = vadd.f32 0.0, %v2044
        %v2046 = vpop.f32.mrb[0].mxu0
        %2047 = vdwg.mxu0
        %v2048 = vadd.f32 %v1798, %v1960
        %v2049 = vadd.f32 %v1799, %v1965
        %v2050 = vadd.f32 %v1800, %v1970
        %v2051 = vadd.f32 %v1801, %v1975
        %v2052 = vadd.f32 %v1802, %v1980
        %v2053 = vadd.f32 %v1803, %v1985
        %v2054 = vadd.f32 %v1804, %v1990
        %v2055 = vadd.f32 %v1805, %v1995
        %v2056 = vadd.f32 %v1806, %v2000
        %v2057 = vadd.f32 %v1807, %v2005
        %v2058 = vadd.f32 %v1808, %v2010
        %v2059 = vadd.f32 %v1809, %v2015
        %v2060 = vadd.f32 %v1810, %v2020
        %v2061 = vadd.f32 %v1811, %v2025
        %v2062 = vadd.f32 %v1812, %v2030
        %v2063 = vadd.f32 %v1813, %v2035
        %v2064 = vadd.f32 %v1814, %v2040
        %v2065 = vadd.f32 %v1815, %v2045
        %v2066 = vld [vmem:[%s221 + $0x24] sm:$0xff]
        %v2067 = vld [vmem:[%s221 + $0x2c] sm:$0xff]
        %v2068 = vld [vmem:[%s221 + $0x34] sm:$0xff]
        %v2069 = vld [vmem:[%s221 + $0x3c] sm:$0xff]
        %v2070 = vld [vmem:[%s221 + $0x44] sm:$0xff]
        %v2071 = vld [vmem:[%s221 + $0x4c] sm:$0xff]
        %v2072 = vld [vmem:[%s221 + $0x54] sm:$0xff]
        %v2073 = vld [vmem:[%s221 + $0x5c] sm:$0xff]
        %v2074 = vld [vmem:[%s221 + $0x64] sm:$0xff]
        %v2075 = vld [vmem:[%s221 + $0x6c] sm:$0xff]
        %v2076 = vld [vmem:[%s221 + $0x74] sm:$0xff]
        %v2077 = vld [vmem:[%s221 + $0x7c] sm:$0xff]
        %v2078 = vld [vmem:[%s221 + $0x84] sm:$0xff]
        %v2079 = vld [vmem:[%s221 + $0x8c] sm:$0xff]
        %v2080 = vld [vmem:[%s221 + $0x94] sm:$0xff]
        %v2081 = vld [vmem:[%s221 + $0x9c] sm:$0xff]
        %v2082 = vld [vmem:[%s221 + $0xa4] sm:$0xff]
        %v2083 = vld [vmem:[%s221 + $0xac] sm:$0xff]
        %s2084 = scalar_lea.vmem %s1, 24
        %v2085 = vld [vmem:[%s2084] sm:$0x7]
        %v2087 = vsel %vm640, %v2066, 0
        %v2090 = vsel %vm640, %v2067, 0
        %v2093 = vsel %vm640, %v2068, 0
        %v2096 = vsel %vm640, %v2069, 0
        %v2099 = vsel %vm640, %v2070, 0
        %v2102 = vsel %vm640, %v2071, 0
        %v2105 = vsel %vm640, %v2072, 0
        %v2108 = vsel %vm640, %v2073, 0
        %v2111 = vsel %vm640, %v2074, 0
        %v2114 = vsel %vm640, %v2075, 0
        %v2117 = vsel %vm640, %v2076, 0
        %v2120 = vsel %vm640, %v2077, 0
        %v2123 = vsel %vm640, %v2078, 0
        %v2126 = vsel %vm640, %v2079, 0
        %v2129 = vsel %vm640, %v2080, 0
        %v2132 = vsel %vm640, %v2081, 0
        %v2135 = vsel %vm640, %v2082, 0
        %v2138 = vsel %vm640, %v2083, 0
        %v2141 = vsel %vm695, %v2085, 0
        %2143 = vmatprep.subr.mxu0 0.0
        %2144 = vmatpush1.msra.mxu0 %v2141
        %2145 = vmatprep.subr.mxu0 0.0
        %2146 = vmatpush1.msra.mxu0 0.0
        %2147 = vmatprep.subr.mxu0 0.0
        %2148 = vmatpush1.msra.mxu0 0.0
        %2149 = vmatprep.subr.mxu0 0.0
        %2150 = vmatpush1.msra.mxu0 0.0
        %2151 = vmatprep.subr.mxu0 0.0
        %2152 = vmatpush1.msra.mxu0 0.0
        %2153 = vmatprep.subr.mxu0 0.0
        %2154 = vmatpush1.msra.mxu0 0.0
        %2155 = vmatprep.subr.mxu0 0.0
        %2156 = vmatpush1.msra.mxu0 0.0
        %2157 = vmatprep.subr.mxu0 0.0
        %2158 = vmatpush1.msra.mxu0 0.0
        %2159 = vmatprep.subr.mxu0 0.0
        %2160 = vmatpush1.msra.mxu0 0.0
        %2161 = vmatprep.subr.mxu0 0.0
        %2162 = vmatpush1.msra.mxu0 0.0
        %2163 = vmatprep.subr.mxu0 0.0
        %2164 = vmatpush1.msra.mxu0 0.0
        %2165 = vmatprep.subr.mxu0 0.0
        %2166 = vmatpush1.msra.mxu0 0.0
        %2167 = vmatprep.subr.mxu0 0.0
        %2168 = vmatpush1.msra.mxu0 0.0
        %2169 = vmatprep.subr.mxu0 0.0
        %2170 = vmatpush1.msra.mxu0 0.0
        %2171 = vmatprep.subr.mxu0 0.0
        %2172 = vmatpush1.msra.mxu0 0.0
        %2173 = vmatprep.subr.mxu0 0.0
        %2174 = vmatpush1.msra.mxu0 0.0
        %2175 = vmatprep.subr.mxu0 0.0
        %2176 = vmatpush1.msra.mxu0 0.0
        %2177 = vmatprep.subr.mxu0 0.0
        %2178 = vmatpush1.msra.mxu0 0.0
        %2179 = vmatprep.subr.mxu0 0.0
        %2180 = vmatpush1.msra.mxu0 0.0
        %2181 = vmatprep.subr.mxu0 0.0
        %2182 = vmatpush1.msra.mxu0 0.0
        %2183 = vmatprep.subr.mxu0 0.0
        %2184 = vmatpush1.msra.mxu0 0.0
        %2185 = vmatprep.subr.mxu0 0.0
        %2186 = vmatpush1.msra.mxu0 0.0
        %2187 = vmatprep.subr.mxu0 0.0
        %2188 = vmatpush1.msra.mxu0 0.0
        %2189 = vmatprep.subr.mxu0 0.0
        %2190 = vmatpush1.msra.mxu0 0.0
        %2191 = vmatprep.subr.mxu0 0.0
        %2192 = vmatpush1.msra.mxu0 0.0
        %2193 = vmatprep.subr.mxu0 0.0
        %2194 = vmatpush1.msra.mxu0 0.0
        %2195 = vmatprep.subr.mxu0 0.0
        %2196 = vmatpush1.msra.mxu0 0.0
        %2197 = vmatprep.subr.mxu0 0.0
        %2198 = vmatpush1.msra.mxu0 0.0
        %2199 = vmatprep.subr.mxu0 0.0
        %2200 = vmatpush1.msra.mxu0 0.0
        %2201 = vmatprep.subr.mxu0 0.0
        %2202 = vmatpush1.msra.mxu0 0.0
        %2203 = vmatprep.subr.mxu0 0.0
        %2204 = vmatpush1.msra.mxu0 0.0
        %2205 = vmatprep.subr.mxu0 0.0
        %2206 = vmatpush1.msra.mxu0 0.0
        %2207 = vmatprep.mubr.f32.mxu0 0.0
        %2208 = vmatmul.mubr.f32.gmra.mrb[0].mxu0 %v2087
        %v2209 = vpop.f32.mrb[0].mxu0
        %v2210 = vadd.f32 0.0, %v2209
        %v2211 = vpop.f32.mrb[0].mxu0
        %2212 = vmatprep.mubr.f32.mxu0 0.0
        %2213 = vmatmul.mubr.f32.gmra.mrb[0].mxu0 %v2090
        %v2214 = vpop.f32.mrb[0].mxu0
        %v2215 = vadd.f32 0.0, %v2214
        %v2216 = vpop.f32.mrb[0].mxu0
        %2217 = vmatprep.mubr.f32.mxu0 0.0
        %2218 = vmatmul.mubr.f32.gmra.mrb[0].mxu0 %v2093
        %v2219 = vpop.f32.mrb[0].mxu0
        %v2220 = vadd.f32 0.0, %v2219
        %v2221 = vpop.f32.mrb[0].mxu0
        %2222 = vmatprep.mubr.f32.mxu0 0.0
        %2223 = vmatmul.mubr.f32.gmra.mrb[0].mxu0 %v2096
        %v2224 = vpop.f32.mrb[0].mxu0
        %v2225 = vadd.f32 0.0, %v2224
        %v2226 = vpop.f32.mrb[0].mxu0
        %2227 = vmatprep.mubr.f32.mxu0 0.0
        %2228 = vmatmul.mubr.f32.gmra.mrb[0].mxu0 %v2099
        %v2229 = vpop.f32.mrb[0].mxu0
        %v2230 = vadd.f32 0.0, %v2229
        %v2231 = vpop.f32.mrb[0].mxu0
        %2232 = vmatprep.mubr.f32.mxu0 0.0
        %2233 = vmatmul.mubr.f32.gmra.mrb[0].mxu0 %v2102
        %v2234 = vpop.f32.mrb[0].mxu0
        %v2235 = vadd.f32 0.0, %v2234
        %v2236 = vpop.f32.mrb[0].mxu0
        %2237 = vmatprep.mubr.f32.mxu0 0.0
        %2238 = vmatmul.mubr.f32.gmra.mrb[0].mxu0 %v2105
        %v2239 = vpop.f32.mrb[0].mxu0
        %v2240 = vadd.f32 0.0, %v2239
        %v2241 = vpop.f32.mrb[0].mxu0
        %2242 = vmatprep.mubr.f32.mxu0 0.0
        %2243 = vmatmul.mubr.f32.gmra.mrb[0].mxu0 %v2108
        %v2244 = vpop.f32.mrb[0].mxu0
        %v2245 = vadd.f32 0.0, %v2244
        %v2246 = vpop.f32.mrb[0].mxu0
        %2247 = vmatprep.mubr.f32.mxu0 0.0
        %2248 = vmatmul.mubr.f32.gmra.mrb[0].mxu0 %v2111
        %v2249 = vpop.f32.mrb[0].mxu0
        %v2250 = vadd.f32 0.0, %v2249
        %v2251 = vpop.f32.mrb[0].mxu0
        %2252 = vmatprep.mubr.f32.mxu0 0.0
        %2253 = vmatmul.mubr.f32.gmra.mrb[0].mxu0 %v2114
        %v2254 = vpop.f32.mrb[0].mxu0
        %v2255 = vadd.f32 0.0, %v2254
        %v2256 = vpop.f32.mrb[0].mxu0
        %2257 = vmatprep.mubr.f32.mxu0 0.0
        %2258 = vmatmul.mubr.f32.gmra.mrb[0].mxu0 %v2117
        %v2259 = vpop.f32.mrb[0].mxu0
        %v2260 = vadd.f32 0.0, %v2259
        %v2261 = vpop.f32.mrb[0].mxu0
        %2262 = vmatprep.mubr.f32.mxu0 0.0
        %2263 = vmatmul.mubr.f32.gmra.mrb[0].mxu0 %v2120
        %v2264 = vpop.f32.mrb[0].mxu0
        %v2265 = vadd.f32 0.0, %v2264
        %v2266 = vpop.f32.mrb[0].mxu0
        %2267 = vmatprep.mubr.f32.mxu0 0.0
        %2268 = vmatmul.mubr.f32.gmra.mrb[0].mxu0 %v2123
        %v2269 = vpop.f32.mrb[0].mxu0
        %v2270 = vadd.f32 0.0, %v2269
        %v2271 = vpop.f32.mrb[0].mxu0
        %2272 = vmatprep.mubr.f32.mxu0 0.0
        %2273 = vmatmul.mubr.f32.gmra.mrb[0].mxu0 %v2126
        %v2274 = vpop.f32.mrb[0].mxu0
        %v2275 = vadd.f32 0.0, %v2274
        %v2276 = vpop.f32.mrb[0].mxu0
        %2277 = vmatprep.mubr.f32.mxu0 0.0
        %2278 = vmatmul.mubr.f32.gmra.mrb[0].mxu0 %v2129
        %v2279 = vpop.f32.mrb[0].mxu0
        %v2280 = vadd.f32 0.0, %v2279
        %v2281 = vpop.f32.mrb[0].mxu0
        %2282 = vmatprep.mubr.f32.mxu0 0.0
        %2283 = vmatmul.mubr.f32.gmra.mrb[0].mxu0 %v2132
        %v2284 = vpop.f32.mrb[0].mxu0
        %v2285 = vadd.f32 0.0, %v2284
        %v2286 = vpop.f32.mrb[0].mxu0
        %2287 = vmatprep.mubr.f32.mxu0 0.0
        %2288 = vmatmul.mubr.f32.gmra.mrb[0].mxu0 %v2135
        %v2289 = vpop.f32.mrb[0].mxu0
        %v2290 = vadd.f32 0.0, %v2289
        %v2291 = vpop.f32.mrb[0].mxu0
        %2292 = vmatprep.mubr.f32.mxu0 0.0
        %2293 = vmatmul.mubr.f32.gmra.mrb[0].mxu0 %v2138
        %v2294 = vpop.f32.mrb[0].mxu0
        %v2295 = vadd.f32 0.0, %v2294
        %v2296 = vpop.f32.mrb[0].mxu0
        %2297 = vdwg.mxu0
        %v2298 = vadd.f32 %v2048, %v2210
        %v2299 = vadd.f32 %v2049, %v2215
        %v2300 = vadd.f32 %v2050, %v2220
        %v2301 = vadd.f32 %v2051, %v2225
        %v2302 = vadd.f32 %v2052, %v2230
        %v2303 = vadd.f32 %v2053, %v2235
        %v2304 = vadd.f32 %v2054, %v2240
        %v2305 = vadd.f32 %v2055, %v2245
        %v2306 = vadd.f32 %v2056, %v2250
        %v2307 = vadd.f32 %v2057, %v2255
        %v2308 = vadd.f32 %v2058, %v2260
        %v2309 = vadd.f32 %v2059, %v2265
        %v2310 = vadd.f32 %v2060, %v2270
        %v2311 = vadd.f32 %v2061, %v2275
        %v2312 = vadd.f32 %v2062, %v2280
        %v2313 = vadd.f32 %v2063, %v2285
        %v2314 = vadd.f32 %v2064, %v2290
        %v2315 = vadd.f32 %v2065, %v2295
        %v2316 = vld [vmem:[%s221 + $0x25] sm:$0xff]
        %v2317 = vld [vmem:[%s221 + $0x2d] sm:$0xff]
        %v2318 = vld [vmem:[%s221 + $0x35] sm:$0xff]
        %v2319 = vld [vmem:[%s221 + $0x3d] sm:$0xff]
        %v2320 = vld [vmem:[%s221 + $0x45] sm:$0xff]
        %v2321 = vld [vmem:[%s221 + $0x4d] sm:$0xff]
        %v2322 = vld [vmem:[%s221 + $0x55] sm:$0xff]
        %v2323 = vld [vmem:[%s221 + $0x5d] sm:$0xff]
        %v2324 = vld [vmem:[%s221 + $0x65] sm:$0xff]
        %v2325 = vld [vmem:[%s221 + $0x6d] sm:$0xff]
        %v2326 = vld [vmem:[%s221 + $0x75] sm:$0xff]
        %v2327 = vld [vmem:[%s221 + $0x7d] sm:$0xff]
        %v2328 = vld [vmem:[%s221 + $0x85] sm:$0xff]
        %v2329 = vld [vmem:[%s221 + $0x8d] sm:$0xff]
        %v2330 = vld [vmem:[%s221 + $0x95] sm:$0xff]
        %v2331 = vld [vmem:[%s221 + $0x9d] sm:$0xff]
        %v2332 = vld [vmem:[%s221 + $0xa5] sm:$0xff]
        %v2333 = vld [vmem:[%s221 + $0xad] sm:$0xff]
        %s2334 = scalar_lea.vmem %s1, 28
        %v2335 = vld [vmem:[%s2334] sm:$0x7]
        %v2337 = vsel %vm640, %v2316, 0
        %v2340 = vsel %vm640, %v2317, 0
        %v2343 = vsel %vm640, %v2318, 0
        %v2346 = vsel %vm640, %v2319, 0
        %v2349 = vsel %vm640, %v2320, 0
        %v2352 = vsel %vm640, %v2321, 0
        %v2355 = vsel %vm640, %v2322, 0
        %v2358 = vsel %vm640, %v2323, 0
        %v2361 = vsel %vm640, %v2324, 0
        %v2364 = vsel %vm640, %v2325, 0
        %v2367 = vsel %vm640, %v2326, 0
        %v2370 = vsel %vm640, %v2327, 0
        %v2373 = vsel %vm640, %v2328, 0
        %v2376 = vsel %vm640, %v2329, 0
        %v2379 = vsel %vm640, %v2330, 0
        %v2382 = vsel %vm640, %v2331, 0
        %v2385 = vsel %vm640, %v2332, 0
        %v2388 = vsel %vm640, %v2333, 0
        %v2391 = vsel %vm695, %v2335, 0
        %2393 = vmatprep.subr.mxu0 0.0
        %2394 = vmatpush1.msra.mxu0 %v2391
        %2395 = vmatprep.subr.mxu0 0.0
        %2396 = vmatpush1.msra.mxu0 0.0
        %2397 = vmatprep.subr.mxu0 0.0
        %2398 = vmatpush1.msra.mxu0 0.0
        %2399 = vmatprep.subr.mxu0 0.0
        %2400 = vmatpush1.msra.mxu0 0.0
        %2401 = vmatprep.subr.mxu0 0.0
        %2402 = vmatpush1.msra.mxu0 0.0
        %2403 = vmatprep.subr.mxu0 0.0
        %2404 = vmatpush1.msra.mxu0 0.0
        %2405 = vmatprep.subr.mxu0 0.0
        %2406 = vmatpush1.msra.mxu0 0.0
        %2407 = vmatprep.subr.mxu0 0.0
        %2408 = vmatpush1.msra.mxu0 0.0
        %2409 = vmatprep.subr.mxu0 0.0
        %2410 = vmatpush1.msra.mxu0 0.0
        %2411 = vmatprep.subr.mxu0 0.0
        %2412 = vmatpush1.msra.mxu0 0.0
        %2413 = vmatprep.subr.mxu0 0.0
        %2414 = vmatpush1.msra.mxu0 0.0
        %2415 = vmatprep.subr.mxu0 0.0
        %2416 = vmatpush1.msra.mxu0 0.0
        %2417 = vmatprep.subr.mxu0 0.0
        %2418 = vmatpush1.msra.mxu0 0.0
        %2419 = vmatprep.subr.mxu0 0.0
        %2420 = vmatpush1.msra.mxu0 0.0
        %2421 = vmatprep.subr.mxu0 0.0
        %2422 = vmatpush1.msra.mxu0 0.0
        %2423 = vmatprep.subr.mxu0 0.0
        %2424 = vmatpush1.msra.mxu0 0.0
        %2425 = vmatprep.subr.mxu0 0.0
        %2426 = vmatpush1.msra.mxu0 0.0
        %2427 = vmatprep.subr.mxu0 0.0
        %2428 = vmatpush1.msra.mxu0 0.0
        %2429 = vmatprep.subr.mxu0 0.0
        %2430 = vmatpush1.msra.mxu0 0.0
        %2431 = vmatprep.subr.mxu0 0.0
        %2432 = vmatpush1.msra.mxu0 0.0
        %2433 = vmatprep.subr.mxu0 0.0
        %2434 = vmatpush1.msra.mxu0 0.0
        %2435 = vmatprep.subr.mxu0 0.0
        %2436 = vmatpush1.msra.mxu0 0.0
        %2437 = vmatprep.subr.mxu0 0.0
        %2438 = vmatpush1.msra.mxu0 0.0
        %2439 = vmatprep.subr.mxu0 0.0
        %2440 = vmatpush1.msra.mxu0 0.0
        %2441 = vmatprep.subr.mxu0 0.0
        %2442 = vmatpush1.msra.mxu0 0.0
        %2443 = vmatprep.subr.mxu0 0.0
        %2444 = vmatpush1.msra.mxu0 0.0
        %2445 = vmatprep.subr.mxu0 0.0
        %2446 = vmatpush1.msra.mxu0 0.0
        %2447 = vmatprep.subr.mxu0 0.0
        %2448 = vmatpush1.msra.mxu0 0.0
        %2449 = vmatprep.subr.mxu0 0.0
        %2450 = vmatpush1.msra.mxu0 0.0
        %2451 = vmatprep.subr.mxu0 0.0
        %2452 = vmatpush1.msra.mxu0 0.0
        %2453 = vmatprep.subr.mxu0 0.0
        %2454 = vmatpush1.msra.mxu0 0.0
        %2455 = vmatprep.subr.mxu0 0.0
        %2456 = vmatpush1.msra.mxu0 0.0
        %2457 = vmatprep.mubr.f32.mxu0 0.0
        %2458 = vmatmul.mubr.f32.gmra.mrb[0].mxu0 %v2337
        %v2459 = vpop.f32.mrb[0].mxu0
        %v2460 = vadd.f32 0.0, %v2459
        %v2461 = vpop.f32.mrb[0].mxu0
        %2462 = vmatprep.mubr.f32.mxu0 0.0
        %2463 = vmatmul.mubr.f32.gmra.mrb[0].mxu0 %v2340
        %v2464 = vpop.f32.mrb[0].mxu0
        %v2465 = vadd.f32 0.0, %v2464
        %v2466 = vpop.f32.mrb[0].mxu0
        %2467 = vmatprep.mubr.f32.mxu0 0.0
        %2468 = vmatmul.mubr.f32.gmra.mrb[0].mxu0 %v2343
        %v2469 = vpop.f32.mrb[0].mxu0
        %v2470 = vadd.f32 0.0, %v2469
        %v2471 = vpop.f32.mrb[0].mxu0
        %2472 = vmatprep.mubr.f32.mxu0 0.0
        %2473 = vmatmul.mubr.f32.gmra.mrb[0].mxu0 %v2346
        %v2474 = vpop.f32.mrb[0].mxu0
        %v2475 = vadd.f32 0.0, %v2474
        %v2476 = vpop.f32.mrb[0].mxu0
        %2477 = vmatprep.mubr.f32.mxu0 0.0
        %2478 = vmatmul.mubr.f32.gmra.mrb[0].mxu0 %v2349
        %v2479 = vpop.f32.mrb[0].mxu0
        %v2480 = vadd.f32 0.0, %v2479
        %v2481 = vpop.f32.mrb[0].mxu0
        %2482 = vmatprep.mubr.f32.mxu0 0.0
        %2483 = vmatmul.mubr.f32.gmra.mrb[0].mxu0 %v2352
        %v2484 = vpop.f32.mrb[0].mxu0
        %v2485 = vadd.f32 0.0, %v2484
        %v2486 = vpop.f32.mrb[0].mxu0
        %2487 = vmatprep.mubr.f32.mxu0 0.0
        %2488 = vmatmul.mubr.f32.gmra.mrb[0].mxu0 %v2355
        %v2489 = vpop.f32.mrb[0].mxu0
        %v2490 = vadd.f32 0.0, %v2489
        %v2491 = vpop.f32.mrb[0].mxu0
        %2492 = vmatprep.mubr.f32.mxu0 0.0
        %2493 = vmatmul.mubr.f32.gmra.mrb[0].mxu0 %v2358
        %v2494 = vpop.f32.mrb[0].mxu0
        %v2495 = vadd.f32 0.0, %v2494
        %v2496 = vpop.f32.mrb[0].mxu0
        %2497 = vmatprep.mubr.f32.mxu0 0.0
        %2498 = vmatmul.mubr.f32.gmra.mrb[0].mxu0 %v2361
        %v2499 = vpop.f32.mrb[0].mxu0
        %v2500 = vadd.f32 0.0, %v2499
        %v2501 = vpop.f32.mrb[0].mxu0
        %2502 = vmatprep.mubr.f32.mxu0 0.0
        %2503 = vmatmul.mubr.f32.gmra.mrb[0].mxu0 %v2364
        %v2504 = vpop.f32.mrb[0].mxu0
        %v2505 = vadd.f32 0.0, %v2504
        %v2506 = vpop.f32.mrb[0].mxu0
        %2507 = vmatprep.mubr.f32.mxu0 0.0
        %2508 = vmatmul.mubr.f32.gmra.mrb[0].mxu0 %v2367
        %v2509 = vpop.f32.mrb[0].mxu0
        %v2510 = vadd.f32 0.0, %v2509
        %v2511 = vpop.f32.mrb[0].mxu0
        %2512 = vmatprep.mubr.f32.mxu0 0.0
        %2513 = vmatmul.mubr.f32.gmra.mrb[0].mxu0 %v2370
        %v2514 = vpop.f32.mrb[0].mxu0
        %v2515 = vadd.f32 0.0, %v2514
        %v2516 = vpop.f32.mrb[0].mxu0
        %2517 = vmatprep.mubr.f32.mxu0 0.0
        %2518 = vmatmul.mubr.f32.gmra.mrb[0].mxu0 %v2373
        %v2519 = vpop.f32.mrb[0].mxu0
        %v2520 = vadd.f32 0.0, %v2519
        %v2521 = vpop.f32.mrb[0].mxu0
        %2522 = vmatprep.mubr.f32.mxu0 0.0
        %2523 = vmatmul.mubr.f32.gmra.mrb[0].mxu0 %v2376
        %v2524 = vpop.f32.mrb[0].mxu0
        %v2525 = vadd.f32 0.0, %v2524
        %v2526 = vpop.f32.mrb[0].mxu0
        %2527 = vmatprep.mubr.f32.mxu0 0.0
        %2528 = vmatmul.mubr.f32.gmra.mrb[0].mxu0 %v2379
        %v2529 = vpop.f32.mrb[0].mxu0
        %v2530 = vadd.f32 0.0, %v2529
        %v2531 = vpop.f32.mrb[0].mxu0
        %2532 = vmatprep.mubr.f32.mxu0 0.0
        %2533 = vmatmul.mubr.f32.gmra.mrb[0].mxu0 %v2382
        %v2534 = vpop.f32.mrb[0].mxu0
        %v2535 = vadd.f32 0.0, %v2534
        %v2536 = vpop.f32.mrb[0].mxu0
        %2537 = vmatprep.mubr.f32.mxu0 0.0
        %2538 = vmatmul.mubr.f32.gmra.mrb[0].mxu0 %v2385
        %v2539 = vpop.f32.mrb[0].mxu0
        %v2540 = vadd.f32 0.0, %v2539
        %v2541 = vpop.f32.mrb[0].mxu0
        %2542 = vmatprep.mubr.f32.mxu0 0.0
        %2543 = vmatmul.mubr.f32.gmra.mrb[0].mxu0 %v2388
        %v2544 = vpop.f32.mrb[0].mxu0
        %v2545 = vadd.f32 0.0, %v2544
        %v2546 = vpop.f32.mrb[0].mxu0
        %2547 = vdwg.mxu0
        %v2548 = vadd.f32 %v2298, %v2460
        %v2549 = vadd.f32 %v2299, %v2465
        %v2550 = vadd.f32 %v2300, %v2470
        %v2551 = vadd.f32 %v2301, %v2475
        %v2552 = vadd.f32 %v2302, %v2480
        %v2553 = vadd.f32 %v2303, %v2485
        %v2554 = vadd.f32 %v2304, %v2490
        %v2555 = vadd.f32 %v2305, %v2495
        %v2556 = vadd.f32 %v2306, %v2500
        %v2557 = vadd.f32 %v2307, %v2505
        %v2558 = vadd.f32 %v2308, %v2510
        %v2559 = vadd.f32 %v2309, %v2515
        %v2560 = vadd.f32 %v2310, %v2520
        %v2561 = vadd.f32 %v2311, %v2525
        %v2562 = vadd.f32 %v2312, %v2530
        %v2563 = vadd.f32 %v2313, %v2535
        %v2564 = vadd.f32 %v2314, %v2540
        %v2565 = vadd.f32 %v2315, %v2545
        %v2566 = vld [vmem:[%s221 + $0x26] sm:$0xff]
        %v2567 = vld [vmem:[%s221 + $0x2e] sm:$0xff]
        %v2568 = vld [vmem:[%s221 + $0x36] sm:$0xff]
        %v2569 = vld [vmem:[%s221 + $0x3e] sm:$0xff]
        %v2570 = vld [vmem:[%s221 + $0x46] sm:$0xff]
        %v2571 = vld [vmem:[%s221 + $0x4e] sm:$0xff]
        %v2572 = vld [vmem:[%s221 + $0x56] sm:$0xff]
        %v2573 = vld [vmem:[%s221 + $0x5e] sm:$0xff]
        %v2574 = vld [vmem:[%s221 + $0x66] sm:$0xff]
        %v2575 = vld [vmem:[%s221 + $0x6e] sm:$0xff]
        %v2576 = vld [vmem:[%s221 + $0x76] sm:$0xff]
        %v2577 = vld [vmem:[%s221 + $0x7e] sm:$0xff]
        %v2578 = vld [vmem:[%s221 + $0x86] sm:$0xff]
        %v2579 = vld [vmem:[%s221 + $0x8e] sm:$0xff]
        %v2580 = vld [vmem:[%s221 + $0x96] sm:$0xff]
        %v2581 = vld [vmem:[%s221 + $0x9e] sm:$0xff]
        %v2582 = vld [vmem:[%s221 + $0xa6] sm:$0xff]
        %v2583 = vld [vmem:[%s221 + $0xae] sm:$0xff]
        %s2584 = scalar_lea.vmem %s1, 32
        %v2585 = vld [vmem:[%s2584] sm:$0x7]
        %v2587 = vsel %vm640, %v2566, 0
        %v2590 = vsel %vm640, %v2567, 0
        %v2593 = vsel %vm640, %v2568, 0
        %v2596 = vsel %vm640, %v2569, 0
        %v2599 = vsel %vm640, %v2570, 0
        %v2602 = vsel %vm640, %v2571, 0
        %v2605 = vsel %vm640, %v2572, 0
        %v2608 = vsel %vm640, %v2573, 0
        %v2611 = vsel %vm640, %v2574, 0
        %v2614 = vsel %vm640, %v2575, 0
        %v2617 = vsel %vm640, %v2576, 0
        %v2620 = vsel %vm640, %v2577, 0
        %v2623 = vsel %vm640, %v2578, 0
        %v2626 = vsel %vm640, %v2579, 0
        %v2629 = vsel %vm640, %v2580, 0
        %v2632 = vsel %vm640, %v2581, 0
        %v2635 = vsel %vm640, %v2582, 0
        %v2638 = vsel %vm640, %v2583, 0
        %v2641 = vsel %vm695, %v2585, 0
        %2643 = vmatprep.subr.mxu0 0.0
        %2644 = vmatpush1.msra.mxu0 %v2641
        %2645 = vmatprep.subr.mxu0 0.0
        %2646 = vmatpush1.msra.mxu0 0.0
        %2647 = vmatprep.subr.mxu0 0.0
        %2648 = vmatpush1.msra.mxu0 0.0
        %2649 = vmatprep.subr.mxu0 0.0
        %2650 = vmatpush1.msra.mxu0 0.0
        %2651 = vmatprep.subr.mxu0 0.0
        %2652 = vmatpush1.msra.mxu0 0.0
        %2653 = vmatprep.subr.mxu0 0.0
        %2654 = vmatpush1.msra.mxu0 0.0
        %2655 = vmatprep.subr.mxu0 0.0
        %2656 = vmatpush1.msra.mxu0 0.0
        %2657 = vmatprep.subr.mxu0 0.0
        %2658 = vmatpush1.msra.mxu0 0.0
        %2659 = vmatprep.subr.mxu0 0.0
        %2660 = vmatpush1.msra.mxu0 0.0
        %2661 = vmatprep.subr.mxu0 0.0
        %2662 = vmatpush1.msra.mxu0 0.0
        %2663 = vmatprep.subr.mxu0 0.0
        %2664 = vmatpush1.msra.mxu0 0.0
        %2665 = vmatprep.subr.mxu0 0.0
        %2666 = vmatpush1.msra.mxu0 0.0
        %2667 = vmatprep.subr.mxu0 0.0
        %2668 = vmatpush1.msra.mxu0 0.0
        %2669 = vmatprep.subr.mxu0 0.0
        %2670 = vmatpush1.msra.mxu0 0.0
        %2671 = vmatprep.subr.mxu0 0.0
        %2672 = vmatpush1.msra.mxu0 0.0
        %2673 = vmatprep.subr.mxu0 0.0
        %2674 = vmatpush1.msra.mxu0 0.0
        %2675 = vmatprep.subr.mxu0 0.0
        %2676 = vmatpush1.msra.mxu0 0.0
        %2677 = vmatprep.subr.mxu0 0.0
        %2678 = vmatpush1.msra.mxu0 0.0
        %2679 = vmatprep.subr.mxu0 0.0
        %2680 = vmatpush1.msra.mxu0 0.0
        %2681 = vmatprep.subr.mxu0 0.0
        %2682 = vmatpush1.msra.mxu0 0.0
        %2683 = vmatprep.subr.mxu0 0.0
        %2684 = vmatpush1.msra.mxu0 0.0
        %2685 = vmatprep.subr.mxu0 0.0
        %2686 = vmatpush1.msra.mxu0 0.0
        %2687 = vmatprep.subr.mxu0 0.0
        %2688 = vmatpush1.msra.mxu0 0.0
        %2689 = vmatprep.subr.mxu0 0.0
        %2690 = vmatpush1.msra.mxu0 0.0
        %2691 = vmatprep.subr.mxu0 0.0
        %2692 = vmatpush1.msra.mxu0 0.0
        %2693 = vmatprep.subr.mxu0 0.0
        %2694 = vmatpush1.msra.mxu0 0.0
        %2695 = vmatprep.subr.mxu0 0.0
        %2696 = vmatpush1.msra.mxu0 0.0
        %2697 = vmatprep.subr.mxu0 0.0
        %2698 = vmatpush1.msra.mxu0 0.0
        %2699 = vmatprep.subr.mxu0 0.0
        %2700 = vmatpush1.msra.mxu0 0.0
        %2701 = vmatprep.subr.mxu0 0.0
        %2702 = vmatpush1.msra.mxu0 0.0
        %2703 = vmatprep.subr.mxu0 0.0
        %2704 = vmatpush1.msra.mxu0 0.0
        %2705 = vmatprep.subr.mxu0 0.0
        %2706 = vmatpush1.msra.mxu0 0.0
        %2707 = vmatprep.mubr.f32.mxu0 0.0
        %2708 = vmatmul.mubr.f32.gmra.mrb[0].mxu0 %v2587
        %v2709 = vpop.f32.mrb[0].mxu0
        %v2710 = vadd.f32 0.0, %v2709
        %v2711 = vpop.f32.mrb[0].mxu0
        %2712 = vmatprep.mubr.f32.mxu0 0.0
        %2713 = vmatmul.mubr.f32.gmra.mrb[0].mxu0 %v2590
        %v2714 = vpop.f32.mrb[0].mxu0
        %v2715 = vadd.f32 0.0, %v2714
        %v2716 = vpop.f32.mrb[0].mxu0
        %2717 = vmatprep.mubr.f32.mxu0 0.0
        %2718 = vmatmul.mubr.f32.gmra.mrb[0].mxu0 %v2593
        %v2719 = vpop.f32.mrb[0].mxu0
        %v2720 = vadd.f32 0.0, %v2719
        %v2721 = vpop.f32.mrb[0].mxu0
        %2722 = vmatprep.mubr.f32.mxu0 0.0
        %2723 = vmatmul.mubr.f32.gmra.mrb[0].mxu0 %v2596
        %v2724 = vpop.f32.mrb[0].mxu0
        %v2725 = vadd.f32 0.0, %v2724
        %v2726 = vpop.f32.mrb[0].mxu0
        %2727 = vmatprep.mubr.f32.mxu0 0.0
        %2728 = vmatmul.mubr.f32.gmra.mrb[0].mxu0 %v2599
        %v2729 = vpop.f32.mrb[0].mxu0
        %v2730 = vadd.f32 0.0, %v2729
        %v2731 = vpop.f32.mrb[0].mxu0
        %2732 = vmatprep.mubr.f32.mxu0 0.0
        %2733 = vmatmul.mubr.f32.gmra.mrb[0].mxu0 %v2602
        %v2734 = vpop.f32.mrb[0].mxu0
        %v2735 = vadd.f32 0.0, %v2734
        %v2736 = vpop.f32.mrb[0].mxu0
        %2737 = vmatprep.mubr.f32.mxu0 0.0
        %2738 = vmatmul.mubr.f32.gmra.mrb[0].mxu0 %v2605
        %v2739 = vpop.f32.mrb[0].mxu0
        %v2740 = vadd.f32 0.0, %v2739
        %v2741 = vpop.f32.mrb[0].mxu0
        %2742 = vmatprep.mubr.f32.mxu0 0.0
        %2743 = vmatmul.mubr.f32.gmra.mrb[0].mxu0 %v2608
        %v2744 = vpop.f32.mrb[0].mxu0
        %v2745 = vadd.f32 0.0, %v2744
        %v2746 = vpop.f32.mrb[0].mxu0
        %2747 = vmatprep.mubr.f32.mxu0 0.0
        %2748 = vmatmul.mubr.f32.gmra.mrb[0].mxu0 %v2611
        %v2749 = vpop.f32.mrb[0].mxu0
        %v2750 = vadd.f32 0.0, %v2749
        %v2751 = vpop.f32.mrb[0].mxu0
        %2752 = vmatprep.mubr.f32.mxu0 0.0
        %2753 = vmatmul.mubr.f32.gmra.mrb[0].mxu0 %v2614
        %v2754 = vpop.f32.mrb[0].mxu0
        %v2755 = vadd.f32 0.0, %v2754
        %v2756 = vpop.f32.mrb[0].mxu0
        %2757 = vmatprep.mubr.f32.mxu0 0.0
        %2758 = vmatmul.mubr.f32.gmra.mrb[0].mxu0 %v2617
        %v2759 = vpop.f32.mrb[0].mxu0
        %v2760 = vadd.f32 0.0, %v2759
        %v2761 = vpop.f32.mrb[0].mxu0
        %2762 = vmatprep.mubr.f32.mxu0 0.0
        %2763 = vmatmul.mubr.f32.gmra.mrb[0].mxu0 %v2620
        %v2764 = vpop.f32.mrb[0].mxu0
        %v2765 = vadd.f32 0.0, %v2764
        %v2766 = vpop.f32.mrb[0].mxu0
        %2767 = vmatprep.mubr.f32.mxu0 0.0
        %2768 = vmatmul.mubr.f32.gmra.mrb[0].mxu0 %v2623
        %v2769 = vpop.f32.mrb[0].mxu0
        %v2770 = vadd.f32 0.0, %v2769
        %v2771 = vpop.f32.mrb[0].mxu0
        %2772 = vmatprep.mubr.f32.mxu0 0.0
        %2773 = vmatmul.mubr.f32.gmra.mrb[0].mxu0 %v2626
        %v2774 = vpop.f32.mrb[0].mxu0
        %v2775 = vadd.f32 0.0, %v2774
        %v2776 = vpop.f32.mrb[0].mxu0
        %2777 = vmatprep.mubr.f32.mxu0 0.0
        %2778 = vmatmul.mubr.f32.gmra.mrb[0].mxu0 %v2629
        %v2779 = vpop.f32.mrb[0].mxu0
        %v2780 = vadd.f32 0.0, %v2779
        %v2781 = vpop.f32.mrb[0].mxu0
        %2782 = vmatprep.mubr.f32.mxu0 0.0
        %2783 = vmatmul.mubr.f32.gmra.mrb[0].mxu0 %v2632
        %v2784 = vpop.f32.mrb[0].mxu0
        %v2785 = vadd.f32 0.0, %v2784
        %v2786 = vpop.f32.mrb[0].mxu0
        %2787 = vmatprep.mubr.f32.mxu0 0.0
        %2788 = vmatmul.mubr.f32.gmra.mrb[0].mxu0 %v2635
        %v2789 = vpop.f32.mrb[0].mxu0
        %v2790 = vadd.f32 0.0, %v2789
        %v2791 = vpop.f32.mrb[0].mxu0
        %2792 = vmatprep.mubr.f32.mxu0 0.0
        %2793 = vmatmul.mubr.f32.gmra.mrb[0].mxu0 %v2638
        %v2794 = vpop.f32.mrb[0].mxu0
        %v2795 = vadd.f32 0.0, %v2794
        %v2796 = vpop.f32.mrb[0].mxu0
        %2797 = vdwg.mxu0
        %v2798 = vadd.f32 %v2548, %v2710
        %v2799 = vadd.f32 %v2549, %v2715
        %v2800 = vadd.f32 %v2550, %v2720
        %v2801 = vadd.f32 %v2551, %v2725
        %v2802 = vadd.f32 %v2552, %v2730
        %v2803 = vadd.f32 %v2553, %v2735
        %v2804 = vadd.f32 %v2554, %v2740
        %v2805 = vadd.f32 %v2555, %v2745
        %v2806 = vadd.f32 %v2556, %v2750
        %v2807 = vadd.f32 %v2557, %v2755
        %v2808 = vadd.f32 %v2558, %v2760
        %v2809 = vadd.f32 %v2559, %v2765
        %v2810 = vadd.f32 %v2560, %v2770
        %v2811 = vadd.f32 %v2561, %v2775
        %v2812 = vadd.f32 %v2562, %v2780
        %v2813 = vadd.f32 %v2563, %v2785
        %v2814 = vadd.f32 %v2564, %v2790
        %v2815 = vadd.f32 %v2565, %v2795
        %v2816 = vld [vmem:[%s2] sm:$0x1]
        %v2818 = vlaneseq
        %v2819 = vshrl.u32 %v2818, 7
        %v2820 = vsub.s32 0, %v2819
        %v2821 = vrot.slane %v2816, %v2820
        %v2823 = vadd.f32 %v2798, %v2821
        %v2824 = vadd.f32 %v2799, %v2821
        %v2825 = vadd.f32 %v2800, %v2821
        %v2826 = vadd.f32 %v2801, %v2821
        %v2827 = vadd.f32 %v2802, %v2821
        %v2828 = vadd.f32 %v2803, %v2821
        %v2829 = vadd.f32 %v2804, %v2821
        %v2830 = vadd.f32 %v2805, %v2821
        %v2831 = vadd.f32 %v2806, %v2821
        %v2832 = vadd.f32 %v2807, %v2821
        %v2833 = vadd.f32 %v2808, %v2821
        %v2834 = vadd.f32 %v2809, %v2821
        %v2835 = vadd.f32 %v2810, %v2821
        %v2836 = vadd.f32 %v2811, %v2821
        %v2837 = vadd.f32 %v2812, %v2821
        %v2838 = vadd.f32 %v2813, %v2821
        %v2839 = vadd.f32 %v2814, %v2821
        %v2840 = vadd.f32 %v2815, %v2821
        %v2841 = vmax.f32 %v2823, 0.0
        %v2842 = vmax.f32 %v2824, 0.0
        %v2843 = vmax.f32 %v2825, 0.0
        %v2844 = vmax.f32 %v2826, 0.0
        %v2845 = vmax.f32 %v2827, 0.0
        %v2846 = vmax.f32 %v2828, 0.0
        %v2847 = vmax.f32 %v2829, 0.0
        %v2848 = vmax.f32 %v2830, 0.0
        %v2849 = vmax.f32 %v2831, 0.0
        %v2850 = vmax.f32 %v2832, 0.0
        %v2851 = vmax.f32 %v2833, 0.0
        %v2852 = vmax.f32 %v2834, 0.0
        %v2853 = vmax.f32 %v2835, 0.0
        %v2854 = vmax.f32 %v2836, 0.0
        %v2855 = vmax.f32 %v2837, 0.0
        %v2856 = vmax.f32 %v2838, 0.0
        %v2857 = vmax.f32 %v2839, 0.0
        %v2858 = vmax.f32 %v2840, 0.0
        %v2859 = vmul.f32 %v2841, %v583
        %v2860 = vmul.f32 %v2842, %v584
        %v2861 = vmul.f32 %v2843, %v585
        %v2862 = vmul.f32 %v2844, %v586
        %v2863 = vmul.f32 %v2845, %v587
        %v2864 = vmul.f32 %v2846, %v588
        %v2865 = vmul.f32 %v2847, %v589
        %v2866 = vmul.f32 %v2848, %v590
        %v2867 = vmul.f32 %v2849, %v591
        %v2868 = vmul.f32 %v2850, %v592
        %v2869 = vmul.f32 %v2851, %v593
        %v2870 = vmul.f32 %v2852, %v594
        %v2871 = vmul.f32 %v2853, %v595
        %v2872 = vmul.f32 %v2854, %v596
        %v2873 = vmul.f32 %v2855, %v597
        %v2874 = vmul.f32 %v2856, %v598
        %v2875 = vmul.f32 %v2857, %v599
        %v2876 = vmul.f32 %v2858, %v600
        %vm2877 = vcmask 261120
        %v2878 = vsel %vm2877, %v2859, 0.0
        %v2879 = vsel %vm2877, %v2860, 0.0
        %v2880 = vadd.f32 %v2878, %v2879
        %v2881 = vsel %vm2877, %v2861, 0.0
        %v2882 = vadd.f32 %v2880, %v2881
        %v2883 = vsel %vm2877, %v2862, 0.0
        %v2884 = vadd.f32 %v2882, %v2883
        %v2885 = vsel %vm2877, %v2863, 0.0
        %v2886 = vadd.f32 %v2884, %v2885
        %v2887 = vsel %vm2877, %v2864, 0.0
        %v2888 = vadd.f32 %v2886, %v2887
        %v2889 = vsel %vm2877, %v2865, 0.0
        %v2890 = vadd.f32 %v2888, %v2889
        %v2891 = vsel %vm2877, %v2866, 0.0
        %v2892 = vadd.f32 %v2890, %v2891
        %v2893 = vsel %vm2877, %v2867, 0.0
        %v2894 = vadd.f32 %v2892, %v2893
        %v2895 = vsel %vm2877, %v2868, 0.0
        %v2896 = vadd.f32 %v2894, %v2895
        %v2897 = vsel %vm2877, %v2869, 0.0
        %v2898 = vadd.f32 %v2896, %v2897
        %v2899 = vsel %vm2877, %v2870, 0.0
        %v2900 = vadd.f32 %v2898, %v2899
        %v2901 = vsel %vm2877, %v2871, 0.0
        %v2902 = vadd.f32 %v2900, %v2901
        %v2903 = vsel %vm2877, %v2872, 0.0
        %v2904 = vadd.f32 %v2902, %v2903
        %v2905 = vsel %vm2877, %v2873, 0.0
        %v2906 = vadd.f32 %v2904, %v2905
        %v2907 = vsel %vm2877, %v2874, 0.0
        %v2908 = vadd.f32 %v2906, %v2907
        %v2909 = vsel %vm2877, %v2875, 0.0
        %v2910 = vadd.f32 %v2908, %v2909
        %v2911 = vsel %vm2877, %v2876, 0.0
        %v2912 = vadd.f32 %v2910, %v2911
        %v2913 = vrot.slane %v2912, 4
        %v2914 = vadd.f32 %v2912, %v2913
        %v2915 = vrot.slane %v2914, 2
        %v2916 = vadd.f32 %v2914, %v2915
        %v2917 = vrot.slane %v2916, 1
        %v2918 = vadd.f32 %v2916, %v2917
        %v2919 = vadd.f32 %v2918, 0.0
        %v2920 = vld [vmem:[%s221 + $0x90] sm:$0xff]
        %v2921 = vld [vmem:[%s221 + $0x98] sm:$0xff]
        %v2922 = vld [vmem:[%s221 + $0xa0] sm:$0xff]
        %v2923 = vld [vmem:[%s221 + $0xa8] sm:$0xff]
        %v2924 = vld [vmem:[%s221 + $0xb0] sm:$0xff]
        %v2925 = vld [vmem:[%s221 + $0xb8] sm:$0xff]
        %v2926 = vld [vmem:[%s221 + $0xc0] sm:$0xff]
        %v2927 = vld [vmem:[%s221 + $0xc8] sm:$0xff]
        %v2928 = vld [vmem:[%s221 + $0xd0] sm:$0xff]
        %v2929 = vld [vmem:[%s221 + $0xd8] sm:$0xff]
        %v2930 = vld [vmem:[%s221 + $0xe0] sm:$0xff]
        %v2931 = vld [vmem:[%s221 + $0xe8] sm:$0xff]
        %v2932 = vld [vmem:[%s221 + $0xf0] sm:$0xff]
        %v2933 = vld [vmem:[%s221 + $0xf8] sm:$0xff]
        %v2934 = vld [vmem:[%s221 + $0x100] sm:$0xff]
        %v2935 = vld [vmem:[%s221 + $0x108] sm:$0xff]
        %v2936 = vld [vmem:[%s221 + $0x110] sm:$0xff]
        %v2937 = vld [vmem:[%s221 + $0x118] sm:$0xff]
        %v2938 = vld [vmem:[%s221 + $0x91] sm:$0xff]
        %v2939 = vld [vmem:[%s221 + $0x99] sm:$0xff]
        %v2940 = vld [vmem:[%s221 + $0xa1] sm:$0xff]
        %v2941 = vld [vmem:[%s221 + $0xa9] sm:$0xff]
        %v2942 = vld [vmem:[%s221 + $0xb1] sm:$0xff]
        %v2943 = vld [vmem:[%s221 + $0xb9] sm:$0xff]
        %v2944 = vld [vmem:[%s221 + $0xc1] sm:$0xff]
        %v2945 = vld [vmem:[%s221 + $0xc9] sm:$0xff]
        %v2946 = vld [vmem:[%s221 + $0xd1] sm:$0xff]
        %v2947 = vld [vmem:[%s221 + $0xd9] sm:$0xff]
        %v2948 = vld [vmem:[%s221 + $0xe1] sm:$0xff]
        %v2949 = vld [vmem:[%s221 + $0xe9] sm:$0xff]
        %v2950 = vld [vmem:[%s221 + $0xf1] sm:$0xff]
        %v2951 = vld [vmem:[%s221 + $0xf9] sm:$0xff]
        %v2952 = vld [vmem:[%s221 + $0x101] sm:$0xff]
        %v2953 = vld [vmem:[%s221 + $0x109] sm:$0xff]
        %v2954 = vld [vmem:[%s221 + $0x111] sm:$0xff]
        %v2955 = vld [vmem:[%s221 + $0x119] sm:$0xff]
        %v2957 = vsel %vm640, %v2938, 0
        %v2960 = vsel %vm640, %v2939, 0
        %v2963 = vsel %vm640, %v2940, 0
        %v2966 = vsel %vm640, %v2941, 0
        %v2969 = vsel %vm640, %v2942, 0
        %v2972 = vsel %vm640, %v2943, 0
        %v2975 = vsel %vm640, %v2944, 0
        %v2978 = vsel %vm640, %v2945, 0
        %v2981 = vsel %vm640, %v2946, 0
        %v2984 = vsel %vm640, %v2947, 0
        %v2987 = vsel %vm640, %v2948, 0
        %v2990 = vsel %vm640, %v2949, 0
        %v2993 = vsel %vm640, %v2950, 0
        %v2996 = vsel %vm640, %v2951, 0
        %v2999 = vsel %vm640, %v2952, 0
        %v3002 = vsel %vm640, %v2953, 0
        %v3005 = vsel %vm640, %v2954, 0
        %v3008 = vsel %vm640, %v2955, 0
        %3010 = vmatprep.subr.mxu0 0.0
        %3011 = vmatpush1.msra.mxu0 %v697
        %3012 = vmatprep.subr.mxu0 0.0
        %3013 = vmatpush1.msra.mxu0 0.0
        %3014 = vmatprep.subr.mxu0 0.0
        %3015 = vmatpush1.msra.mxu0 0.0
        %3016 = vmatprep.subr.mxu0 0.0
        %3017 = vmatpush1.msra.mxu0 0.0
        %3018 = vmatprep.subr.mxu0 0.0
        %3019 = vmatpush1.msra.mxu0 0.0
        %3020 = vmatprep.subr.mxu0 0.0
        %3021 = vmatpush1.msra.mxu0 0.0
        %3022 = vmatprep.subr.mxu0 0.0
        %3023 = vmatpush1.msra.mxu0 0.0
        %3024 = vmatprep.subr.mxu0 0.0
        %3025 = vmatpush1.msra.mxu0 0.0
        %3026 = vmatprep.subr.mxu0 0.0
        %3027 = vmatpush1.msra.mxu0 0.0
        %3028 = vmatprep.subr.mxu0 0.0
        %3029 = vmatpush1.msra.mxu0 0.0
        %3030 = vmatprep.subr.mxu0 0.0
        %3031 = vmatpush1.msra.mxu0 0.0
        %3032 = vmatprep.subr.mxu0 0.0
        %3033 = vmatpush1.msra.mxu0 0.0
        %3034 = vmatprep.subr.mxu0 0.0
        %3035 = vmatpush1.msra.mxu0 0.0
        %3036 = vmatprep.subr.mxu0 0.0
        %3037 = vmatpush1.msra.mxu0 0.0
        %3038 = vmatprep.subr.mxu0 0.0
        %3039 = vmatpush1.msra.mxu0 0.0
        %3040 = vmatprep.subr.mxu0 0.0
        %3041 = vmatpush1.msra.mxu0 0.0
        %3042 = vmatprep.subr.mxu0 0.0
        %3043 = vmatpush1.msra.mxu0 0.0
        %3044 = vmatprep.subr.mxu0 0.0
        %3045 = vmatpush1.msra.mxu0 0.0
        %3046 = vmatprep.subr.mxu0 0.0
        %3047 = vmatpush1.msra.mxu0 0.0
        %3048 = vmatprep.subr.mxu0 0.0
        %3049 = vmatpush1.msra.mxu0 0.0
        %3050 = vmatprep.subr.mxu0 0.0
        %3051 = vmatpush1.msra.mxu0 0.0
        %3052 = vmatprep.subr.mxu0 0.0
        %3053 = vmatpush1.msra.mxu0 0.0
        %3054 = vmatprep.subr.mxu0 0.0
        %3055 = vmatpush1.msra.mxu0 0.0
        %3056 = vmatprep.subr.mxu0 0.0
        %3057 = vmatpush1.msra.mxu0 0.0
        %3058 = vmatprep.subr.mxu0 0.0
        %3059 = vmatpush1.msra.mxu0 0.0
        %3060 = vmatprep.subr.mxu0 0.0
        %3061 = vmatpush1.msra.mxu0 0.0
        %3062 = vmatprep.subr.mxu0 0.0
        %3063 = vmatpush1.msra.mxu0 0.0
        %3064 = vmatprep.subr.mxu0 0.0
        %3065 = vmatpush1.msra.mxu0 0.0
        %3066 = vmatprep.subr.mxu0 0.0
        %3067 = vmatpush1.msra.mxu0 0.0
        %3068 = vmatprep.subr.mxu0 0.0
        %3069 = vmatpush1.msra.mxu0 0.0
        %3070 = vmatprep.subr.mxu0 0.0
        %3071 = vmatpush1.msra.mxu0 0.0
        %3072 = vmatprep.subr.mxu0 0.0
        %3073 = vmatpush1.msra.mxu0 0.0
        %3074 = vmatprep.mubr.f32.mxu0 0.0
        %3075 = vmatmul.mubr.f32.gmra.mrb[0].mxu0 %v2957
        %v3076 = vpop.f32.mrb[0].mxu0
        %v3077 = vadd.f32 0.0, %v3076
        %v3078 = vpop.f32.mrb[0].mxu0
        %3079 = vmatprep.mubr.f32.mxu0 0.0
        %3080 = vmatmul.mubr.f32.gmra.mrb[0].mxu0 %v2960
        %v3081 = vpop.f32.mrb[0].mxu0
        %v3082 = vadd.f32 0.0, %v3081
        %v3083 = vpop.f32.mrb[0].mxu0
        %3084 = vmatprep.mubr.f32.mxu0 0.0
        %3085 = vmatmul.mubr.f32.gmra.mrb[0].mxu0 %v2963
        %v3086 = vpop.f32.mrb[0].mxu0
        %v3087 = vadd.f32 0.0, %v3086
        %v3088 = vpop.f32.mrb[0].mxu0
        %3089 = vmatprep.mubr.f32.mxu0 0.0
        %3090 = vmatmul.mubr.f32.gmra.mrb[0].mxu0 %v2966
        %v3091 = vpop.f32.mrb[0].mxu0
        %v3092 = vadd.f32 0.0, %v3091
        %v3093 = vpop.f32.mrb[0].mxu0
        %3094 = vmatprep.mubr.f32.mxu0 0.0
        %3095 = vmatmul.mubr.f32.gmra.mrb[0].mxu0 %v2969
        %v3096 = vpop.f32.mrb[0].mxu0
        %v3097 = vadd.f32 0.0, %v3096
        %v3098 = vpop.f32.mrb[0].mxu0
        %3099 = vmatprep.mubr.f32.mxu0 0.0
        %3100 = vmatmul.mubr.f32.gmra.mrb[0].mxu0 %v2972
        %v3101 = vpop.f32.mrb[0].mxu0
        %v3102 = vadd.f32 0.0, %v3101
        %v3103 = vpop.f32.mrb[0].mxu0
        %3104 = vmatprep.mubr.f32.mxu0 0.0
        %3105 = vmatmul.mubr.f32.gmra.mrb[0].mxu0 %v2975
        %v3106 = vpop.f32.mrb[0].mxu0
        %v3107 = vadd.f32 0.0, %v3106
        %v3108 = vpop.f32.mrb[0].mxu0
        %3109 = vmatprep.mubr.f32.mxu0 0.0
        %3110 = vmatmul.mubr.f32.gmra.mrb[0].mxu0 %v2978
        %v3111 = vpop.f32.mrb[0].mxu0
        %v3112 = vadd.f32 0.0, %v3111
        %v3113 = vpop.f32.mrb[0].mxu0
        %3114 = vmatprep.mubr.f32.mxu0 0.0
        %3115 = vmatmul.mubr.f32.gmra.mrb[0].mxu0 %v2981
        %v3116 = vpop.f32.mrb[0].mxu0
        %v3117 = vadd.f32 0.0, %v3116
        %v3118 = vpop.f32.mrb[0].mxu0
        %3119 = vmatprep.mubr.f32.mxu0 0.0
        %3120 = vmatmul.mubr.f32.gmra.mrb[0].mxu0 %v2984
        %v3121 = vpop.f32.mrb[0].mxu0
        %v3122 = vadd.f32 0.0, %v3121
        %v3123 = vpop.f32.mrb[0].mxu0
        %3124 = vmatprep.mubr.f32.mxu0 0.0
        %3125 = vmatmul.mubr.f32.gmra.mrb[0].mxu0 %v2987
        %v3126 = vpop.f32.mrb[0].mxu0
        %v3127 = vadd.f32 0.0, %v3126
        %v3128 = vpop.f32.mrb[0].mxu0
        %3129 = vmatprep.mubr.f32.mxu0 0.0
        %3130 = vmatmul.mubr.f32.gmra.mrb[0].mxu0 %v2990
        %v3131 = vpop.f32.mrb[0].mxu0
        %v3132 = vadd.f32 0.0, %v3131
        %v3133 = vpop.f32.mrb[0].mxu0
        %3134 = vmatprep.mubr.f32.mxu0 0.0
        %3135 = vmatmul.mubr.f32.gmra.mrb[0].mxu0 %v2993
        %v3136 = vpop.f32.mrb[0].mxu0
        %v3137 = vadd.f32 0.0, %v3136
        %v3138 = vpop.f32.mrb[0].mxu0
        %3139 = vmatprep.mubr.f32.mxu0 0.0
        %3140 = vmatmul.mubr.f32.gmra.mrb[0].mxu0 %v2996
        %v3141 = vpop.f32.mrb[0].mxu0
        %v3142 = vadd.f32 0.0, %v3141
        %v3143 = vpop.f32.mrb[0].mxu0
        %3144 = vmatprep.mubr.f32.mxu0 0.0
        %3145 = vmatmul.mubr.f32.gmra.mrb[0].mxu0 %v2999
        %v3146 = vpop.f32.mrb[0].mxu0
        %v3147 = vadd.f32 0.0, %v3146
        %v3148 = vpop.f32.mrb[0].mxu0
        %3149 = vmatprep.mubr.f32.mxu0 0.0
        %3150 = vmatmul.mubr.f32.gmra.mrb[0].mxu0 %v3002
        %v3151 = vpop.f32.mrb[0].mxu0
        %v3152 = vadd.f32 0.0, %v3151
        %v3153 = vpop.f32.mrb[0].mxu0
        %3154 = vmatprep.mubr.f32.mxu0 0.0
        %3155 = vmatmul.mubr.f32.gmra.mrb[0].mxu0 %v3005
        %v3156 = vpop.f32.mrb[0].mxu0
        %v3157 = vadd.f32 0.0, %v3156
        %v3158 = vpop.f32.mrb[0].mxu0
        %3159 = vmatprep.mubr.f32.mxu0 0.0
        %3160 = vmatmul.mubr.f32.gmra.mrb[0].mxu0 %v3008
        %v3161 = vpop.f32.mrb[0].mxu0
        %v3162 = vadd.f32 0.0, %v3161
        %v3163 = vpop.f32.mrb[0].mxu0
        %3164 = vdwg.mxu0
        %v3166 = vsel %vm640, %v2920, 0
        %v3169 = vsel %vm640, %v2921, 0
        %v3172 = vsel %vm640, %v2922, 0
        %v3175 = vsel %vm640, %v2923, 0
        %v3178 = vsel %vm640, %v2924, 0
        %v3181 = vsel %vm640, %v2925, 0
        %v3184 = vsel %vm640, %v2926, 0
        %v3187 = vsel %vm640, %v2927, 0
        %v3190 = vsel %vm640, %v2928, 0
        %v3193 = vsel %vm640, %v2929, 0
        %v3196 = vsel %vm640, %v2930, 0
        %v3199 = vsel %vm640, %v2931, 0
        %v3202 = vsel %vm640, %v2932, 0
        %v3205 = vsel %vm640, %v2933, 0
        %v3208 = vsel %vm640, %v2934, 0
        %v3211 = vsel %vm640, %v2935, 0
        %v3214 = vsel %vm640, %v2936, 0
        %v3217 = vsel %vm640, %v2937, 0
        %3219 = vmatprep.subr.mxu0 0.0
        %3220 = vmatpush1.msra.mxu0 %v909
        %3221 = vmatprep.subr.mxu0 0.0
        %3222 = vmatpush1.msra.mxu0 0.0
        %3223 = vmatprep.subr.mxu0 0.0
        %3224 = vmatpush1.msra.mxu0 0.0
        %3225 = vmatprep.subr.mxu0 0.0
        %3226 = vmatpush1.msra.mxu0 0.0
        %3227 = vmatprep.subr.mxu0 0.0
        %3228 = vmatpush1.msra.mxu0 0.0
        %3229 = vmatprep.subr.mxu0 0.0
        %3230 = vmatpush1.msra.mxu0 0.0
        %3231 = vmatprep.subr.mxu0 0.0
        %3232 = vmatpush1.msra.mxu0 0.0
        %3233 = vmatprep.subr.mxu0 0.0
        %3234 = vmatpush1.msra.mxu0 0.0
        %3235 = vmatprep.subr.mxu0 0.0
        %3236 = vmatpush1.msra.mxu0 0.0
        %3237 = vmatprep.subr.mxu0 0.0
        %3238 = vmatpush1.msra.mxu0 0.0
        %3239 = vmatprep.subr.mxu0 0.0
        %3240 = vmatpush1.msra.mxu0 0.0
        %3241 = vmatprep.subr.mxu0 0.0
        %3242 = vmatpush1.msra.mxu0 0.0
        %3243 = vmatprep.subr.mxu0 0.0
        %3244 = vmatpush1.msra.mxu0 0.0
        %3245 = vmatprep.subr.mxu0 0.0
        %3246 = vmatpush1.msra.mxu0 0.0
        %3247 = vmatprep.subr.mxu0 0.0
        %3248 = vmatpush1.msra.mxu0 0.0
        %3249 = vmatprep.subr.mxu0 0.0
        %3250 = vmatpush1.msra.mxu0 0.0
        %3251 = vmatprep.subr.mxu0 0.0
        %3252 = vmatpush1.msra.mxu0 0.0
        %3253 = vmatprep.subr.mxu0 0.0
        %3254 = vmatpush1.msra.mxu0 0.0
        %3255 = vmatprep.subr.mxu0 0.0
        %3256 = vmatpush1.msra.mxu0 0.0
        %3257 = vmatprep.subr.mxu0 0.0
        %3258 = vmatpush1.msra.mxu0 0.0
        %3259 = vmatprep.subr.mxu0 0.0
        %3260 = vmatpush1.msra.mxu0 0.0
        %3261 = vmatprep.subr.mxu0 0.0
        %3262 = vmatpush1.msra.mxu0 0.0
        %3263 = vmatprep.subr.mxu0 0.0
        %3264 = vmatpush1.msra.mxu0 0.0
        %3265 = vmatprep.subr.mxu0 0.0
        %3266 = vmatpush1.msra.mxu0 0.0
        %3267 = vmatprep.subr.mxu0 0.0
        %3268 = vmatpush1.msra.mxu0 0.0
        %3269 = vmatprep.subr.mxu0 0.0
        %3270 = vmatpush1.msra.mxu0 0.0
        %3271 = vmatprep.subr.mxu0 0.0
        %3272 = vmatpush1.msra.mxu0 0.0
        %3273 = vmatprep.subr.mxu0 0.0
        %3274 = vmatpush1.msra.mxu0 0.0
        %3275 = vmatprep.subr.mxu0 0.0
        %3276 = vmatpush1.msra.mxu0 0.0
        %3277 = vmatprep.subr.mxu0 0.0
        %3278 = vmatpush1.msra.mxu0 0.0
        %3279 = vmatprep.subr.mxu0 0.0
        %3280 = vmatpush1.msra.mxu0 0.0
        %3281 = vmatprep.subr.mxu0 0.0
        %3282 = vmatpush1.msra.mxu0 0.0
        %3283 = vmatprep.mubr.f32.mxu0 0.0
        %3284 = vmatmul.mubr.f32.gmra.mrb[0].mxu0 %v3166
        %v3285 = vpop.f32.mrb[0].mxu0
        %v3286 = vadd.f32 %v3077, %v3285
        %v3287 = vpop.f32.mrb[0].mxu0
        %3288 = vmatprep.mubr.f32.mxu0 0.0
        %3289 = vmatmul.mubr.f32.gmra.mrb[0].mxu0 %v3169
        %v3290 = vpop.f32.mrb[0].mxu0
        %v3291 = vadd.f32 %v3082, %v3290
        %v3292 = vpop.f32.mrb[0].mxu0
        %3293 = vmatprep.mubr.f32.mxu0 0.0
        %3294 = vmatmul.mubr.f32.gmra.mrb[0].mxu0 %v3172
        %v3295 = vpop.f32.mrb[0].mxu0
        %v3296 = vadd.f32 %v3087, %v3295
        %v3297 = vpop.f32.mrb[0].mxu0
        %3298 = vmatprep.mubr.f32.mxu0 0.0
        %3299 = vmatmul.mubr.f32.gmra.mrb[0].mxu0 %v3175
        %v3300 = vpop.f32.mrb[0].mxu0
        %v3301 = vadd.f32 %v3092, %v3300
        %v3302 = vpop.f32.mrb[0].mxu0
        %3303 = vmatprep.mubr.f32.mxu0 0.0
        %3304 = vmatmul.mubr.f32.gmra.mrb[0].mxu0 %v3178
        %v3305 = vpop.f32.mrb[0].mxu0
        %v3306 = vadd.f32 %v3097, %v3305
        %v3307 = vpop.f32.mrb[0].mxu0
        %3308 = vmatprep.mubr.f32.mxu0 0.0
        %3309 = vmatmul.mubr.f32.gmra.mrb[0].mxu0 %v3181
        %v3310 = vpop.f32.mrb[0].mxu0
        %v3311 = vadd.f32 %v3102, %v3310
        %v3312 = vpop.f32.mrb[0].mxu0
        %3313 = vmatprep.mubr.f32.mxu0 0.0
        %3314 = vmatmul.mubr.f32.gmra.mrb[0].mxu0 %v3184
        %v3315 = vpop.f32.mrb[0].mxu0
        %v3316 = vadd.f32 %v3107, %v3315
        %v3317 = vpop.f32.mrb[0].mxu0
        %3318 = vmatprep.mubr.f32.mxu0 0.0
        %3319 = vmatmul.mubr.f32.gmra.mrb[0].mxu0 %v3187
        %v3320 = vpop.f32.mrb[0].mxu0
        %v3321 = vadd.f32 %v3112, %v3320
        %v3322 = vpop.f32.mrb[0].mxu0
        %3323 = vmatprep.mubr.f32.mxu0 0.0
        %3324 = vmatmul.mubr.f32.gmra.mrb[0].mxu0 %v3190
        %v3325 = vpop.f32.mrb[0].mxu0
        %v3326 = vadd.f32 %v3117, %v3325
        %v3327 = vpop.f32.mrb[0].mxu0
        %3328 = vmatprep.mubr.f32.mxu0 0.0
        %3329 = vmatmul.mubr.f32.gmra.mrb[0].mxu0 %v3193
        %v3330 = vpop.f32.mrb[0].mxu0
        %v3331 = vadd.f32 %v3122, %v3330
        %v3332 = vpop.f32.mrb[0].mxu0
        %3333 = vmatprep.mubr.f32.mxu0 0.0
        %3334 = vmatmul.mubr.f32.gmra.mrb[0].mxu0 %v3196
        %v3335 = vpop.f32.mrb[0].mxu0
        %v3336 = vadd.f32 %v3127, %v3335
        %v3337 = vpop.f32.mrb[0].mxu0
        %3338 = vmatprep.mubr.f32.mxu0 0.0
        %3339 = vmatmul.mubr.f32.gmra.mrb[0].mxu0 %v3199
        %v3340 = vpop.f32.mrb[0].mxu0
        %v3341 = vadd.f32 %v3132, %v3340
        %v3342 = vpop.f32.mrb[0].mxu0
        %3343 = vmatprep.mubr.f32.mxu0 0.0
        %3344 = vmatmul.mubr.f32.gmra.mrb[0].mxu0 %v3202
        %v3345 = vpop.f32.mrb[0].mxu0
        %v3346 = vadd.f32 %v3137, %v3345
        %v3347 = vpop.f32.mrb[0].mxu0
        %3348 = vmatprep.mubr.f32.mxu0 0.0
        %3349 = vmatmul.mubr.f32.gmra.mrb[0].mxu0 %v3205
        %v3350 = vpop.f32.mrb[0].mxu0
        %v3351 = vadd.f32 %v3142, %v3350
        %v3352 = vpop.f32.mrb[0].mxu0
        %3353 = vmatprep.mubr.f32.mxu0 0.0
        %3354 = vmatmul.mubr.f32.gmra.mrb[0].mxu0 %v3208
        %v3355 = vpop.f32.mrb[0].mxu0
        %v3356 = vadd.f32 %v3147, %v3355
        %v3357 = vpop.f32.mrb[0].mxu0
        %3358 = vmatprep.mubr.f32.mxu0 0.0
        %3359 = vmatmul.mubr.f32.gmra.mrb[0].mxu0 %v3211
        %v3360 = vpop.f32.mrb[0].mxu0
        %v3361 = vadd.f32 %v3152, %v3360
        %v3362 = vpop.f32.mrb[0].mxu0
        %3363 = vmatprep.mubr.f32.mxu0 0.0
        %3364 = vmatmul.mubr.f32.gmra.mrb[0].mxu0 %v3214
        %v3365 = vpop.f32.mrb[0].mxu0
        %v3366 = vadd.f32 %v3157, %v3365
        %v3367 = vpop.f32.mrb[0].mxu0
        %3368 = vmatprep.mubr.f32.mxu0 0.0
        %3369 = vmatmul.mubr.f32.gmra.mrb[0].mxu0 %v3217
        %v3370 = vpop.f32.mrb[0].mxu0
        %v3371 = vadd.f32 %v3162, %v3370
        %v3372 = vpop.f32.mrb[0].mxu0
        %3373 = vdwg.mxu0
        %v3374 = vld [vmem:[%s221 + $0x92] sm:$0xff]
        %v3375 = vld [vmem:[%s221 + $0x9a] sm:$0xff]
        %v3376 = vld [vmem:[%s221 + $0xa2] sm:$0xff]
        %v3377 = vld [vmem:[%s221 + $0xaa] sm:$0xff]
        %v3378 = vld [vmem:[%s221 + $0xb2] sm:$0xff]
        %v3379 = vld [vmem:[%s221 + $0xba] sm:$0xff]
        %v3380 = vld [vmem:[%s221 + $0xc2] sm:$0xff]
        %v3381 = vld [vmem:[%s221 + $0xca] sm:$0xff]
        %v3382 = vld [vmem:[%s221 + $0xd2] sm:$0xff]
        %v3383 = vld [vmem:[%s221 + $0xda] sm:$0xff]
        %v3384 = vld [vmem:[%s221 + $0xe2] sm:$0xff]
        %v3385 = vld [vmem:[%s221 + $0xea] sm:$0xff]
        %v3386 = vld [vmem:[%s221 + $0xf2] sm:$0xff]
        %v3387 = vld [vmem:[%s221 + $0xfa] sm:$0xff]
        %v3388 = vld [vmem:[%s221 + $0x102] sm:$0xff]
        %v3389 = vld [vmem:[%s221 + $0x10a] sm:$0xff]
        %v3390 = vld [vmem:[%s221 + $0x112] sm:$0xff]
        %v3391 = vld [vmem:[%s221 + $0x11a] sm:$0xff]
        %v3393 = vsel %vm640, %v3374, 0
        %v3396 = vsel %vm640, %v3375, 0
        %v3399 = vsel %vm640, %v3376, 0
        %v3402 = vsel %vm640, %v3377, 0
        %v3405 = vsel %vm640, %v3378, 0
        %v3408 = vsel %vm640, %v3379, 0
        %v3411 = vsel %vm640, %v3380, 0
        %v3414 = vsel %vm640, %v3381, 0
        %v3417 = vsel %vm640, %v3382, 0
        %v3420 = vsel %vm640, %v3383, 0
        %v3423 = vsel %vm640, %v3384, 0
        %v3426 = vsel %vm640, %v3385, 0
        %v3429 = vsel %vm640, %v3386, 0
        %v3432 = vsel %vm640, %v3387, 0
        %v3435 = vsel %vm640, %v3388, 0
        %v3438 = vsel %vm640, %v3389, 0
        %v3441 = vsel %vm640, %v3390, 0
        %v3444 = vsel %vm640, %v3391, 0
        %3446 = vmatprep.subr.mxu0 0.0
        %3447 = vmatpush1.msra.mxu0 %v1141
        %3448 = vmatprep.subr.mxu0 0.0
        %3449 = vmatpush1.msra.mxu0 0.0
        %3450 = vmatprep.subr.mxu0 0.0
        %3451 = vmatpush1.msra.mxu0 0.0
        %3452 = vmatprep.subr.mxu0 0.0
        %3453 = vmatpush1.msra.mxu0 0.0
        %3454 = vmatprep.subr.mxu0 0.0
        %3455 = vmatpush1.msra.mxu0 0.0
        %3456 = vmatprep.subr.mxu0 0.0
        %3457 = vmatpush1.msra.mxu0 0.0
        %3458 = vmatprep.subr.mxu0 0.0
        %3459 = vmatpush1.msra.mxu0 0.0
        %3460 = vmatprep.subr.mxu0 0.0
        %3461 = vmatpush1.msra.mxu0 0.0
        %3462 = vmatprep.subr.mxu0 0.0
        %3463 = vmatpush1.msra.mxu0 0.0
        %3464 = vmatprep.subr.mxu0 0.0
        %3465 = vmatpush1.msra.mxu0 0.0
        %3466 = vmatprep.subr.mxu0 0.0
        %3467 = vmatpush1.msra.mxu0 0.0
        %3468 = vmatprep.subr.mxu0 0.0
        %3469 = vmatpush1.msra.mxu0 0.0
        %3470 = vmatprep.subr.mxu0 0.0
        %3471 = vmatpush1.msra.mxu0 0.0
        %3472 = vmatprep.subr.mxu0 0.0
        %3473 = vmatpush1.msra.mxu0 0.0
        %3474 = vmatprep.subr.mxu0 0.0
        %3475 = vmatpush1.msra.mxu0 0.0
        %3476 = vmatprep.subr.mxu0 0.0
        %3477 = vmatpush1.msra.mxu0 0.0
        %3478 = vmatprep.subr.mxu0 0.0
        %3479 = vmatpush1.msra.mxu0 0.0
        %3480 = vmatprep.subr.mxu0 0.0
        %3481 = vmatpush1.msra.mxu0 0.0
        %3482 = vmatprep.subr.mxu0 0.0
        %3483 = vmatpush1.msra.mxu0 0.0
        %3484 = vmatprep.subr.mxu0 0.0
        %3485 = vmatpush1.msra.mxu0 0.0
        %3486 = vmatprep.subr.mxu0 0.0
        %3487 = vmatpush1.msra.mxu0 0.0
        %3488 = vmatprep.subr.mxu0 0.0
        %3489 = vmatpush1.msra.mxu0 0.0
        %3490 = vmatprep.subr.mxu0 0.0
        %3491 = vmatpush1.msra.mxu0 0.0
        %3492 = vmatprep.subr.mxu0 0.0
        %3493 = vmatpush1.msra.mxu0 0.0
        %3494 = vmatprep.subr.mxu0 0.0
        %3495 = vmatpush1.msra.mxu0 0.0
        %3496 = vmatprep.subr.mxu0 0.0
        %3497 = vmatpush1.msra.mxu0 0.0
        %3498 = vmatprep.subr.mxu0 0.0
        %3499 = vmatpush1.msra.mxu0 0.0
        %3500 = vmatprep.subr.mxu0 0.0
        %3501 = vmatpush1.msra.mxu0 0.0
        %3502 = vmatprep.subr.mxu0 0.0
        %3503 = vmatpush1.msra.mxu0 0.0
        %3504 = vmatprep.subr.mxu0 0.0
        %3505 = vmatpush1.msra.mxu0 0.0
        %3506 = vmatprep.subr.mxu0 0.0
        %3507 = vmatpush1.msra.mxu0 0.0
        %3508 = vmatprep.subr.mxu0 0.0
        %3509 = vmatpush1.msra.mxu0 0.0
        %3510 = vmatprep.mubr.f32.mxu0 0.0
        %3511 = vmatmul.mubr.f32.gmra.mrb[0].mxu0 %v3393
        %v3512 = vpop.f32.mrb[0].mxu0
        %v3513 = vadd.f32 0.0, %v3512
        %v3514 = vpop.f32.mrb[0].mxu0
        %3515 = vmatprep.mubr.f32.mxu0 0.0
        %3516 = vmatmul.mubr.f32.gmra.mrb[0].mxu0 %v3396
        %v3517 = vpop.f32.mrb[0].mxu0
        %v3518 = vadd.f32 0.0, %v3517
        %v3519 = vpop.f32.mrb[0].mxu0
        %3520 = vmatprep.mubr.f32.mxu0 0.0
        %3521 = vmatmul.mubr.f32.gmra.mrb[0].mxu0 %v3399
        %v3522 = vpop.f32.mrb[0].mxu0
        %v3523 = vadd.f32 0.0, %v3522
        %v3524 = vpop.f32.mrb[0].mxu0
        %3525 = vmatprep.mubr.f32.mxu0 0.0
        %3526 = vmatmul.mubr.f32.gmra.mrb[0].mxu0 %v3402
        %v3527 = vpop.f32.mrb[0].mxu0
        %v3528 = vadd.f32 0.0, %v3527
        %v3529 = vpop.f32.mrb[0].mxu0
        %3530 = vmatprep.mubr.f32.mxu0 0.0
        %3531 = vmatmul.mubr.f32.gmra.mrb[0].mxu0 %v3405
        %v3532 = vpop.f32.mrb[0].mxu0
        %v3533 = vadd.f32 0.0, %v3532
        %v3534 = vpop.f32.mrb[0].mxu0
        %3535 = vmatprep.mubr.f32.mxu0 0.0
        %3536 = vmatmul.mubr.f32.gmra.mrb[0].mxu0 %v3408
        %v3537 = vpop.f32.mrb[0].mxu0
        %v3538 = vadd.f32 0.0, %v3537
        %v3539 = vpop.f32.mrb[0].mxu0
        %3540 = vmatprep.mubr.f32.mxu0 0.0
        %3541 = vmatmul.mubr.f32.gmra.mrb[0].mxu0 %v3411
        %v3542 = vpop.f32.mrb[0].mxu0
        %v3543 = vadd.f32 0.0, %v3542
        %v3544 = vpop.f32.mrb[0].mxu0
        %3545 = vmatprep.mubr.f32.mxu0 0.0
        %3546 = vmatmul.mubr.f32.gmra.mrb[0].mxu0 %v3414
        %v3547 = vpop.f32.mrb[0].mxu0
        %v3548 = vadd.f32 0.0, %v3547
        %v3549 = vpop.f32.mrb[0].mxu0
        %3550 = vmatprep.mubr.f32.mxu0 0.0
        %3551 = vmatmul.mubr.f32.gmra.mrb[0].mxu0 %v3417
        %v3552 = vpop.f32.mrb[0].mxu0
        %v3553 = vadd.f32 0.0, %v3552
        %v3554 = vpop.f32.mrb[0].mxu0
        %3555 = vmatprep.mubr.f32.mxu0 0.0
        %3556 = vmatmul.mubr.f32.gmra.mrb[0].mxu0 %v3420
        %v3557 = vpop.f32.mrb[0].mxu0
        %v3558 = vadd.f32 0.0, %v3557
        %v3559 = vpop.f32.mrb[0].mxu0
        %3560 = vmatprep.mubr.f32.mxu0 0.0
        %3561 = vmatmul.mubr.f32.gmra.mrb[0].mxu0 %v3423
        %v3562 = vpop.f32.mrb[0].mxu0
        %v3563 = vadd.f32 0.0, %v3562
        %v3564 = vpop.f32.mrb[0].mxu0
        %3565 = vmatprep.mubr.f32.mxu0 0.0
        %3566 = vmatmul.mubr.f32.gmra.mrb[0].mxu0 %v3426
        %v3567 = vpop.f32.mrb[0].mxu0
        %v3568 = vadd.f32 0.0, %v3567
        %v3569 = vpop.f32.mrb[0].mxu0
        %3570 = vmatprep.mubr.f32.mxu0 0.0
        %3571 = vmatmul.mubr.f32.gmra.mrb[0].mxu0 %v3429
        %v3572 = vpop.f32.mrb[0].mxu0
        %v3573 = vadd.f32 0.0, %v3572
        %v3574 = vpop.f32.mrb[0].mxu0
        %3575 = vmatprep.mubr.f32.mxu0 0.0
        %3576 = vmatmul.mubr.f32.gmra.mrb[0].mxu0 %v3432
        %v3577 = vpop.f32.mrb[0].mxu0
        %v3578 = vadd.f32 0.0, %v3577
        %v3579 = vpop.f32.mrb[0].mxu0
        %3580 = vmatprep.mubr.f32.mxu0 0.0
        %3581 = vmatmul.mubr.f32.gmra.mrb[0].mxu0 %v3435
        %v3582 = vpop.f32.mrb[0].mxu0
        %v3583 = vadd.f32 0.0, %v3582
        %v3584 = vpop.f32.mrb[0].mxu0
        %3585 = vmatprep.mubr.f32.mxu0 0.0
        %3586 = vmatmul.mubr.f32.gmra.mrb[0].mxu0 %v3438
        %v3587 = vpop.f32.mrb[0].mxu0
        %v3588 = vadd.f32 0.0, %v3587
        %v3589 = vpop.f32.mrb[0].mxu0
        %3590 = vmatprep.mubr.f32.mxu0 0.0
        %3591 = vmatmul.mubr.f32.gmra.mrb[0].mxu0 %v3441
        %v3592 = vpop.f32.mrb[0].mxu0
        %v3593 = vadd.f32 0.0, %v3592
        %v3594 = vpop.f32.mrb[0].mxu0
        %3595 = vmatprep.mubr.f32.mxu0 0.0
        %3596 = vmatmul.mubr.f32.gmra.mrb[0].mxu0 %v3444
        %v3597 = vpop.f32.mrb[0].mxu0
        %v3598 = vadd.f32 0.0, %v3597
        %v3599 = vpop.f32.mrb[0].mxu0
        %3600 = vdwg.mxu0
        %v3601 = vadd.f32 %v3286, %v3513
        %v3602 = vadd.f32 %v3291, %v3518
        %v3603 = vadd.f32 %v3296, %v3523
        %v3604 = vadd.f32 %v3301, %v3528
        %v3605 = vadd.f32 %v3306, %v3533
        %v3606 = vadd.f32 %v3311, %v3538
        %v3607 = vadd.f32 %v3316, %v3543
        %v3608 = vadd.f32 %v3321, %v3548
        %v3609 = vadd.f32 %v3326, %v3553
        %v3610 = vadd.f32 %v3331, %v3558
        %v3611 = vadd.f32 %v3336, %v3563
        %v3612 = vadd.f32 %v3341, %v3568
        %v3613 = vadd.f32 %v3346, %v3573
        %v3614 = vadd.f32 %v3351, %v3578
        %v3615 = vadd.f32 %v3356, %v3583
        %v3616 = vadd.f32 %v3361, %v3588
        %v3617 = vadd.f32 %v3366, %v3593
        %v3618 = vadd.f32 %v3371, %v3598
        %v3619 = vld [vmem:[%s221 + $0xa2] sm:$0xff]
        %v3620 = vld [vmem:[%s221 + $0xaa] sm:$0xff]
        %v3621 = vld [vmem:[%s221 + $0xb2] sm:$0xff]
        %v3622 = vld [vmem:[%s221 + $0xba] sm:$0xff]
        %v3623 = vld [vmem:[%s221 + $0xc2] sm:$0xff]
        %v3624 = vld [vmem:[%s221 + $0xca] sm:$0xff]
        %v3625 = vld [vmem:[%s221 + $0xd2] sm:$0xff]
        %v3626 = vld [vmem:[%s221 + $0xda] sm:$0xff]
        %v3627 = vld [vmem:[%s221 + $0xe2] sm:$0xff]
        %v3628 = vld [vmem:[%s221 + $0xea] sm:$0xff]
        %v3629 = vld [vmem:[%s221 + $0xf2] sm:$0xff]
        %v3630 = vld [vmem:[%s221 + $0xfa] sm:$0xff]
        %v3631 = vld [vmem:[%s221 + $0x102] sm:$0xff]
        %v3632 = vld [vmem:[%s221 + $0x10a] sm:$0xff]
        %v3633 = vld [vmem:[%s221 + $0x112] sm:$0xff]
        %v3634 = vld [vmem:[%s221 + $0x11a] sm:$0xff]
        %v3635 = vld [vmem:[%s221 + $0x122] sm:$0xff]
        %v3636 = vld [vmem:[%s221 + $0x12a] sm:$0xff]
        %v3638 = vsel %vm640, %v3619, 0
        %v3641 = vsel %vm640, %v3620, 0
        %v3644 = vsel %vm640, %v3621, 0
        %v3647 = vsel %vm640, %v3622, 0
        %v3650 = vsel %vm640, %v3623, 0
        %v3653 = vsel %vm640, %v3624, 0
        %v3656 = vsel %vm640, %v3625, 0
        %v3659 = vsel %vm640, %v3626, 0
        %v3662 = vsel %vm640, %v3627, 0
        %v3665 = vsel %vm640, %v3628, 0
        %v3668 = vsel %vm640, %v3629, 0
        %v3671 = vsel %vm640, %v3630, 0
        %v3674 = vsel %vm640, %v3631, 0
        %v3677 = vsel %vm640, %v3632, 0
        %v3680 = vsel %vm640, %v3633, 0
        %v3683 = vsel %vm640, %v3634, 0
        %v3686 = vsel %vm640, %v3635, 0
        %v3689 = vsel %vm640, %v3636, 0
        %3691 = vmatprep.subr.mxu0 0.0
        %3692 = vmatpush1.msra.mxu0 %v1391
        %3693 = vmatprep.subr.mxu0 0.0
        %3694 = vmatpush1.msra.mxu0 0.0
        %3695 = vmatprep.subr.mxu0 0.0
        %3696 = vmatpush1.msra.mxu0 0.0
        %3697 = vmatprep.subr.mxu0 0.0
        %3698 = vmatpush1.msra.mxu0 0.0
        %3699 = vmatprep.subr.mxu0 0.0
        %3700 = vmatpush1.msra.mxu0 0.0
        %3701 = vmatprep.subr.mxu0 0.0
        %3702 = vmatpush1.msra.mxu0 0.0
        %3703 = vmatprep.subr.mxu0 0.0
        %3704 = vmatpush1.msra.mxu0 0.0
        %3705 = vmatprep.subr.mxu0 0.0
        %3706 = vmatpush1.msra.mxu0 0.0
        %3707 = vmatprep.subr.mxu0 0.0
        %3708 = vmatpush1.msra.mxu0 0.0
        %3709 = vmatprep.subr.mxu0 0.0
        %3710 = vmatpush1.msra.mxu0 0.0
        %3711 = vmatprep.subr.mxu0 0.0
        %3712 = vmatpush1.msra.mxu0 0.0
        %3713 = vmatprep.subr.mxu0 0.0
        %3714 = vmatpush1.msra.mxu0 0.0
        %3715 = vmatprep.subr.mxu0 0.0
        %3716 = vmatpush1.msra.mxu0 0.0
        %3717 = vmatprep.subr.mxu0 0.0
        %3718 = vmatpush1.msra.mxu0 0.0
        %3719 = vmatprep.subr.mxu0 0.0
        %3720 = vmatpush1.msra.mxu0 0.0
        %3721 = vmatprep.subr.mxu0 0.0
        %3722 = vmatpush1.msra.mxu0 0.0
        %3723 = vmatprep.subr.mxu0 0.0
        %3724 = vmatpush1.msra.mxu0 0.0
        %3725 = vmatprep.subr.mxu0 0.0
        %3726 = vmatpush1.msra.mxu0 0.0
        %3727 = vmatprep.subr.mxu0 0.0
        %3728 = vmatpush1.msra.mxu0 0.0
        %3729 = vmatprep.subr.mxu0 0.0
        %3730 = vmatpush1.msra.mxu0 0.0
        %3731 = vmatprep.subr.mxu0 0.0
        %3732 = vmatpush1.msra.mxu0 0.0
        %3733 = vmatprep.subr.mxu0 0.0
        %3734 = vmatpush1.msra.mxu0 0.0
        %3735 = vmatprep.subr.mxu0 0.0
        %3736 = vmatpush1.msra.mxu0 0.0
        %3737 = vmatprep.subr.mxu0 0.0
        %3738 = vmatpush1.msra.mxu0 0.0
        %3739 = vmatprep.subr.mxu0 0.0
        %3740 = vmatpush1.msra.mxu0 0.0
        %3741 = vmatprep.subr.mxu0 0.0
        %3742 = vmatpush1.msra.mxu0 0.0
        %3743 = vmatprep.subr.mxu0 0.0
        %3744 = vmatpush1.msra.mxu0 0.0
        %3745 = vmatprep.subr.mxu0 0.0
        %3746 = vmatpush1.msra.mxu0 0.0
        %3747 = vmatprep.subr.mxu0 0.0
        %3748 = vmatpush1.msra.mxu0 0.0
        %3749 = vmatprep.subr.mxu0 0.0
        %3750 = vmatpush1.msra.mxu0 0.0
        %3751 = vmatprep.subr.mxu0 0.0
        %3752 = vmatpush1.msra.mxu0 0.0
        %3753 = vmatprep.subr.mxu0 0.0
        %3754 = vmatpush1.msra.mxu0 0.0
        %3755 = vmatprep.mubr.f32.mxu0 0.0
        %3756 = vmatmul.mubr.f32.gmra.mrb[0].mxu0 %v3638
        %v3757 = vpop.f32.mrb[0].mxu0
        %v3758 = vadd.f32 0.0, %v3757
        %v3759 = vpop.f32.mrb[0].mxu0
        %3760 = vmatprep.mubr.f32.mxu0 0.0
        %3761 = vmatmul.mubr.f32.gmra.mrb[0].mxu0 %v3641
        %v3762 = vpop.f32.mrb[0].mxu0
        %v3763 = vadd.f32 0.0, %v3762
        %v3764 = vpop.f32.mrb[0].mxu0
        %3765 = vmatprep.mubr.f32.mxu0 0.0
        %3766 = vmatmul.mubr.f32.gmra.mrb[0].mxu0 %v3644
        %v3767 = vpop.f32.mrb[0].mxu0
        %v3768 = vadd.f32 0.0, %v3767
        %v3769 = vpop.f32.mrb[0].mxu0
        %3770 = vmatprep.mubr.f32.mxu0 0.0
        %3771 = vmatmul.mubr.f32.gmra.mrb[0].mxu0 %v3647
        %v3772 = vpop.f32.mrb[0].mxu0
        %v3773 = vadd.f32 0.0, %v3772
        %v3774 = vpop.f32.mrb[0].mxu0
        %3775 = vmatprep.mubr.f32.mxu0 0.0
        %3776 = vmatmul.mubr.f32.gmra.mrb[0].mxu0 %v3650
        %v3777 = vpop.f32.mrb[0].mxu0
        %v3778 = vadd.f32 0.0, %v3777
        %v3779 = vpop.f32.mrb[0].mxu0
        %3780 = vmatprep.mubr.f32.mxu0 0.0
        %3781 = vmatmul.mubr.f32.gmra.mrb[0].mxu0 %v3653
        %v3782 = vpop.f32.mrb[0].mxu0
        %v3783 = vadd.f32 0.0, %v3782
        %v3784 = vpop.f32.mrb[0].mxu0
        %3785 = vmatprep.mubr.f32.mxu0 0.0
        %3786 = vmatmul.mubr.f32.gmra.mrb[0].mxu0 %v3656
        %v3787 = vpop.f32.mrb[0].mxu0
        %v3788 = vadd.f32 0.0, %v3787
        %v3789 = vpop.f32.mrb[0].mxu0
        %3790 = vmatprep.mubr.f32.mxu0 0.0
        %3791 = vmatmul.mubr.f32.gmra.mrb[0].mxu0 %v3659
        %v3792 = vpop.f32.mrb[0].mxu0
        %v3793 = vadd.f32 0.0, %v3792
        %v3794 = vpop.f32.mrb[0].mxu0
        %3795 = vmatprep.mubr.f32.mxu0 0.0
        %3796 = vmatmul.mubr.f32.gmra.mrb[0].mxu0 %v3662
        %v3797 = vpop.f32.mrb[0].mxu0
        %v3798 = vadd.f32 0.0, %v3797
        %v3799 = vpop.f32.mrb[0].mxu0
        %3800 = vmatprep.mubr.f32.mxu0 0.0
        %3801 = vmatmul.mubr.f32.gmra.mrb[0].mxu0 %v3665
        %v3802 = vpop.f32.mrb[0].mxu0
        %v3803 = vadd.f32 0.0, %v3802
        %v3804 = vpop.f32.mrb[0].mxu0
        %3805 = vmatprep.mubr.f32.mxu0 0.0
        %3806 = vmatmul.mubr.f32.gmra.mrb[0].mxu0 %v3668
        %v3807 = vpop.f32.mrb[0].mxu0
        %v3808 = vadd.f32 0.0, %v3807
        %v3809 = vpop.f32.mrb[0].mxu0
        %3810 = vmatprep.mubr.f32.mxu0 0.0
        %3811 = vmatmul.mubr.f32.gmra.mrb[0].mxu0 %v3671
        %v3812 = vpop.f32.mrb[0].mxu0
        %v3813 = vadd.f32 0.0, %v3812
        %v3814 = vpop.f32.mrb[0].mxu0
        %3815 = vmatprep.mubr.f32.mxu0 0.0
        %3816 = vmatmul.mubr.f32.gmra.mrb[0].mxu0 %v3674
        %v3817 = vpop.f32.mrb[0].mxu0
        %v3818 = vadd.f32 0.0, %v3817
        %v3819 = vpop.f32.mrb[0].mxu0
        %3820 = vmatprep.mubr.f32.mxu0 0.0
        %3821 = vmatmul.mubr.f32.gmra.mrb[0].mxu0 %v3677
        %v3822 = vpop.f32.mrb[0].mxu0
        %v3823 = vadd.f32 0.0, %v3822
        %v3824 = vpop.f32.mrb[0].mxu0
        %3825 = vmatprep.mubr.f32.mxu0 0.0
        %3826 = vmatmul.mubr.f32.gmra.mrb[0].mxu0 %v3680
        %v3827 = vpop.f32.mrb[0].mxu0
        %v3828 = vadd.f32 0.0, %v3827
        %v3829 = vpop.f32.mrb[0].mxu0
        %3830 = vmatprep.mubr.f32.mxu0 0.0
        %3831 = vmatmul.mubr.f32.gmra.mrb[0].mxu0 %v3683
        %v3832 = vpop.f32.mrb[0].mxu0
        %v3833 = vadd.f32 0.0, %v3832
        %v3834 = vpop.f32.mrb[0].mxu0
        %3835 = vmatprep.mubr.f32.mxu0 0.0
        %3836 = vmatmul.mubr.f32.gmra.mrb[0].mxu0 %v3686
        %v3837 = vpop.f32.mrb[0].mxu0
        %v3838 = vadd.f32 0.0, %v3837
        %v3839 = vpop.f32.mrb[0].mxu0
        %3840 = vmatprep.mubr.f32.mxu0 0.0
        %3841 = vmatmul.mubr.f32.gmra.mrb[0].mxu0 %v3689
        %v3842 = vpop.f32.mrb[0].mxu0
        %v3843 = vadd.f32 0.0, %v3842
        %v3844 = vpop.f32.mrb[0].mxu0
        %3845 = vdwg.mxu0
        %v3846 = vadd.f32 %v3601, %v3758
        %v3847 = vadd.f32 %v3602, %v3763
        %v3848 = vadd.f32 %v3603, %v3768
        %v3849 = vadd.f32 %v3604, %v3773
        %v3850 = vadd.f32 %v3605, %v3778
        %v3851 = vadd.f32 %v3606, %v3783
        %v3852 = vadd.f32 %v3607, %v3788
        %v3853 = vadd.f32 %v3608, %v3793
        %v3854 = vadd.f32 %v3609, %v3798
        %v3855 = vadd.f32 %v3610, %v3803
        %v3856 = vadd.f32 %v3611, %v3808
        %v3857 = vadd.f32 %v3612, %v3813
        %v3858 = vadd.f32 %v3613, %v3818
        %v3859 = vadd.f32 %v3614, %v3823
        %v3860 = vadd.f32 %v3615, %v3828
        %v3861 = vadd.f32 %v3616, %v3833
        %v3862 = vadd.f32 %v3617, %v3838
        %v3863 = vadd.f32 %v3618, %v3843
        %v3864 = vld [vmem:[%s221 + $0xa3] sm:$0xff]
        %v3865 = vld [vmem:[%s221 + $0xab] sm:$0xff]
        %v3866 = vld [vmem:[%s221 + $0xb3] sm:$0xff]
        %v3867 = vld [vmem:[%s221 + $0xbb] sm:$0xff]
        %v3868 = vld [vmem:[%s221 + $0xc3] sm:$0xff]
        %v3869 = vld [vmem:[%s221 + $0xcb] sm:$0xff]
        %v3870 = vld [vmem:[%s221 + $0xd3] sm:$0xff]
        %v3871 = vld [vmem:[%s221 + $0xdb] sm:$0xff]
        %v3872 = vld [vmem:[%s221 + $0xe3] sm:$0xff]
        %v3873 = vld [vmem:[%s221 + $0xeb] sm:$0xff]
        %v3874 = vld [vmem:[%s221 + $0xf3] sm:$0xff]
        %v3875 = vld [vmem:[%s221 + $0xfb] sm:$0xff]
        %v3876 = vld [vmem:[%s221 + $0x103] sm:$0xff]
        %v3877 = vld [vmem:[%s221 + $0x10b] sm:$0xff]
        %v3878 = vld [vmem:[%s221 + $0x113] sm:$0xff]
        %v3879 = vld [vmem:[%s221 + $0x11b] sm:$0xff]
        %v3880 = vld [vmem:[%s221 + $0x123] sm:$0xff]
        %v3881 = vld [vmem:[%s221 + $0x12b] sm:$0xff]
        %v3883 = vsel %vm640, %v3864, 0
        %v3886 = vsel %vm640, %v3865, 0
        %v3889 = vsel %vm640, %v3866, 0
        %v3892 = vsel %vm640, %v3867, 0
        %v3895 = vsel %vm640, %v3868, 0
        %v3898 = vsel %vm640, %v3869, 0
        %v3901 = vsel %vm640, %v3870, 0
        %v3904 = vsel %vm640, %v3871, 0
        %v3907 = vsel %vm640, %v3872, 0
        %v3910 = vsel %vm640, %v3873, 0
        %v3913 = vsel %vm640, %v3874, 0
        %v3916 = vsel %vm640, %v3875, 0
        %v3919 = vsel %vm640, %v3876, 0
        %v3922 = vsel %vm640, %v3877, 0
        %v3925 = vsel %vm640, %v3878, 0
        %v3928 = vsel %vm640, %v3879, 0
        %v3931 = vsel %vm640, %v3880, 0
        %v3934 = vsel %vm640, %v3881, 0
        %3936 = vmatprep.subr.mxu0 0.0
        %3937 = vmatpush1.msra.mxu0 %v1641
        %3938 = vmatprep.subr.mxu0 0.0
        %3939 = vmatpush1.msra.mxu0 0.0
        %3940 = vmatprep.subr.mxu0 0.0
        %3941 = vmatpush1.msra.mxu0 0.0
        %3942 = vmatprep.subr.mxu0 0.0
        %3943 = vmatpush1.msra.mxu0 0.0
        %3944 = vmatprep.subr.mxu0 0.0
        %3945 = vmatpush1.msra.mxu0 0.0
        %3946 = vmatprep.subr.mxu0 0.0
        %3947 = vmatpush1.msra.mxu0 0.0
        %3948 = vmatprep.subr.mxu0 0.0
        %3949 = vmatpush1.msra.mxu0 0.0
        %3950 = vmatprep.subr.mxu0 0.0
        %3951 = vmatpush1.msra.mxu0 0.0
        %3952 = vmatprep.subr.mxu0 0.0
        %3953 = vmatpush1.msra.mxu0 0.0
        %3954 = vmatprep.subr.mxu0 0.0
        %3955 = vmatpush1.msra.mxu0 0.0
        %3956 = vmatprep.subr.mxu0 0.0
        %3957 = vmatpush1.msra.mxu0 0.0
        %3958 = vmatprep.subr.mxu0 0.0
        %3959 = vmatpush1.msra.mxu0 0.0
        %3960 = vmatprep.subr.mxu0 0.0
        %3961 = vmatpush1.msra.mxu0 0.0
        %3962 = vmatprep.subr.mxu0 0.0
        %3963 = vmatpush1.msra.mxu0 0.0
        %3964 = vmatprep.subr.mxu0 0.0
        %3965 = vmatpush1.msra.mxu0 0.0
        %3966 = vmatprep.subr.mxu0 0.0
        %3967 = vmatpush1.msra.mxu0 0.0
        %3968 = vmatprep.subr.mxu0 0.0
        %3969 = vmatpush1.msra.mxu0 0.0
        %3970 = vmatprep.subr.mxu0 0.0
        %3971 = vmatpush1.msra.mxu0 0.0
        %3972 = vmatprep.subr.mxu0 0.0
        %3973 = vmatpush1.msra.mxu0 0.0
        %3974 = vmatprep.subr.mxu0 0.0
        %3975 = vmatpush1.msra.mxu0 0.0
        %3976 = vmatprep.subr.mxu0 0.0
        %3977 = vmatpush1.msra.mxu0 0.0
        %3978 = vmatprep.subr.mxu0 0.0
        %3979 = vmatpush1.msra.mxu0 0.0
        %3980 = vmatprep.subr.mxu0 0.0
        %3981 = vmatpush1.msra.mxu0 0.0
        %3982 = vmatprep.subr.mxu0 0.0
        %3983 = vmatpush1.msra.mxu0 0.0
        %3984 = vmatprep.subr.mxu0 0.0
        %3985 = vmatpush1.msra.mxu0 0.0
        %3986 = vmatprep.subr.mxu0 0.0
        %3987 = vmatpush1.msra.mxu0 0.0
        %3988 = vmatprep.subr.mxu0 0.0
        %3989 = vmatpush1.msra.mxu0 0.0
        %3990 = vmatprep.subr.mxu0 0.0
        %3991 = vmatpush1.msra.mxu0 0.0
        %3992 = vmatprep.subr.mxu0 0.0
        %3993 = vmatpush1.msra.mxu0 0.0
        %3994 = vmatprep.subr.mxu0 0.0
        %3995 = vmatpush1.msra.mxu0 0.0
        %3996 = vmatprep.subr.mxu0 0.0
        %3997 = vmatpush1.msra.mxu0 0.0
        %3998 = vmatprep.subr.mxu0 0.0
        %3999 = vmatpush1.msra.mxu0 0.0
        %4000 = vmatprep.mubr.f32.mxu0 0.0
        %4001 = vmatmul.mubr.f32.gmra.mrb[0].mxu0 %v3883
        %v4002 = vpop.f32.mrb[0].mxu0
        %v4003 = vadd.f32 0.0, %v4002
        %v4004 = vpop.f32.mrb[0].mxu0
        %4005 = vmatprep.mubr.f32.mxu0 0.0
        %4006 = vmatmul.mubr.f32.gmra.mrb[0].mxu0 %v3886
        %v4007 = vpop.f32.mrb[0].mxu0
        %v4008 = vadd.f32 0.0, %v4007
        %v4009 = vpop.f32.mrb[0].mxu0
        %4010 = vmatprep.mubr.f32.mxu0 0.0
        %4011 = vmatmul.mubr.f32.gmra.mrb[0].mxu0 %v3889
        %v4012 = vpop.f32.mrb[0].mxu0
        %v4013 = vadd.f32 0.0, %v4012
        %v4014 = vpop.f32.mrb[0].mxu0
        %4015 = vmatprep.mubr.f32.mxu0 0.0
        %4016 = vmatmul.mubr.f32.gmra.mrb[0].mxu0 %v3892
        %v4017 = vpop.f32.mrb[0].mxu0
        %v4018 = vadd.f32 0.0, %v4017
        %v4019 = vpop.f32.mrb[0].mxu0
        %4020 = vmatprep.mubr.f32.mxu0 0.0
        %4021 = vmatmul.mubr.f32.gmra.mrb[0].mxu0 %v3895
        %v4022 = vpop.f32.mrb[0].mxu0
        %v4023 = vadd.f32 0.0, %v4022
        %v4024 = vpop.f32.mrb[0].mxu0
        %4025 = vmatprep.mubr.f32.mxu0 0.0
        %4026 = vmatmul.mubr.f32.gmra.mrb[0].mxu0 %v3898
        %v4027 = vpop.f32.mrb[0].mxu0
        %v4028 = vadd.f32 0.0, %v4027
        %v4029 = vpop.f32.mrb[0].mxu0
        %4030 = vmatprep.mubr.f32.mxu0 0.0
        %4031 = vmatmul.mubr.f32.gmra.mrb[0].mxu0 %v3901
        %v4032 = vpop.f32.mrb[0].mxu0
        %v4033 = vadd.f32 0.0, %v4032
        %v4034 = vpop.f32.mrb[0].mxu0
        %4035 = vmatprep.mubr.f32.mxu0 0.0
        %4036 = vmatmul.mubr.f32.gmra.mrb[0].mxu0 %v3904
        %v4037 = vpop.f32.mrb[0].mxu0
        %v4038 = vadd.f32 0.0, %v4037
        %v4039 = vpop.f32.mrb[0].mxu0
        %4040 = vmatprep.mubr.f32.mxu0 0.0
        %4041 = vmatmul.mubr.f32.gmra.mrb[0].mxu0 %v3907
        %v4042 = vpop.f32.mrb[0].mxu0
        %v4043 = vadd.f32 0.0, %v4042
        %v4044 = vpop.f32.mrb[0].mxu0
        %4045 = vmatprep.mubr.f32.mxu0 0.0
        %4046 = vmatmul.mubr.f32.gmra.mrb[0].mxu0 %v3910
        %v4047 = vpop.f32.mrb[0].mxu0
        %v4048 = vadd.f32 0.0, %v4047
        %v4049 = vpop.f32.mrb[0].mxu0
        %4050 = vmatprep.mubr.f32.mxu0 0.0
        %4051 = vmatmul.mubr.f32.gmra.mrb[0].mxu0 %v3913
        %v4052 = vpop.f32.mrb[0].mxu0
        %v4053 = vadd.f32 0.0, %v4052
        %v4054 = vpop.f32.mrb[0].mxu0
        %4055 = vmatprep.mubr.f32.mxu0 0.0
        %4056 = vmatmul.mubr.f32.gmra.mrb[0].mxu0 %v3916
        %v4057 = vpop.f32.mrb[0].mxu0
        %v4058 = vadd.f32 0.0, %v4057
        %v4059 = vpop.f32.mrb[0].mxu0
        %4060 = vmatprep.mubr.f32.mxu0 0.0
        %4061 = vmatmul.mubr.f32.gmra.mrb[0].mxu0 %v3919
        %v4062 = vpop.f32.mrb[0].mxu0
        %v4063 = vadd.f32 0.0, %v4062
        %v4064 = vpop.f32.mrb[0].mxu0
        %4065 = vmatprep.mubr.f32.mxu0 0.0
        %4066 = vmatmul.mubr.f32.gmra.mrb[0].mxu0 %v3922
        %v4067 = vpop.f32.mrb[0].mxu0
        %v4068 = vadd.f32 0.0, %v4067
        %v4069 = vpop.f32.mrb[0].mxu0
        %4070 = vmatprep.mubr.f32.mxu0 0.0
        %4071 = vmatmul.mubr.f32.gmra.mrb[0].mxu0 %v3925
        %v4072 = vpop.f32.mrb[0].mxu0
        %v4073 = vadd.f32 0.0, %v4072
        %v4074 = vpop.f32.mrb[0].mxu0
        %4075 = vmatprep.mubr.f32.mxu0 0.0
        %4076 = vmatmul.mubr.f32.gmra.mrb[0].mxu0 %v3928
        %v4077 = vpop.f32.mrb[0].mxu0
        %v4078 = vadd.f32 0.0, %v4077
        %v4079 = vpop.f32.mrb[0].mxu0
        %4080 = vmatprep.mubr.f32.mxu0 0.0
        %4081 = vmatmul.mubr.f32.gmra.mrb[0].mxu0 %v3931
        %v4082 = vpop.f32.mrb[0].mxu0
        %v4083 = vadd.f32 0.0, %v4082
        %v4084 = vpop.f32.mrb[0].mxu0
        %4085 = vmatprep.mubr.f32.mxu0 0.0
        %4086 = vmatmul.mubr.f32.gmra.mrb[0].mxu0 %v3934
        %v4087 = vpop.f32.mrb[0].mxu0
        %v4088 = vadd.f32 0.0, %v4087
        %v4089 = vpop.f32.mrb[0].mxu0
        %4090 = vdwg.mxu0
        %v4091 = vadd.f32 %v3846, %v4003
        %v4092 = vadd.f32 %v3847, %v4008
        %v4093 = vadd.f32 %v3848, %v4013
        %v4094 = vadd.f32 %v3849, %v4018
        %v4095 = vadd.f32 %v3850, %v4023
        %v4096 = vadd.f32 %v3851, %v4028
        %v4097 = vadd.f32 %v3852, %v4033
        %v4098 = vadd.f32 %v3853, %v4038
        %v4099 = vadd.f32 %v3854, %v4043
        %v4100 = vadd.f32 %v3855, %v4048
        %v4101 = vadd.f32 %v3856, %v4053
        %v4102 = vadd.f32 %v3857, %v4058
        %v4103 = vadd.f32 %v3858, %v4063
        %v4104 = vadd.f32 %v3859, %v4068
        %v4105 = vadd.f32 %v3860, %v4073
        %v4106 = vadd.f32 %v3861, %v4078
        %v4107 = vadd.f32 %v3862, %v4083
        %v4108 = vadd.f32 %v3863, %v4088
        %v4109 = vld [vmem:[%s221 + $0xa4] sm:$0xff]
        %v4110 = vld [vmem:[%s221 + $0xac] sm:$0xff]
        %v4111 = vld [vmem:[%s221 + $0xb4] sm:$0xff]
        %v4112 = vld [vmem:[%s221 + $0xbc] sm:$0xff]
        %v4113 = vld [vmem:[%s221 + $0xc4] sm:$0xff]
        %v4114 = vld [vmem:[%s221 + $0xcc] sm:$0xff]
        %v4115 = vld [vmem:[%s221 + $0xd4] sm:$0xff]
        %v4116 = vld [vmem:[%s221 + $0xdc] sm:$0xff]
        %v4117 = vld [vmem:[%s221 + $0xe4] sm:$0xff]
        %v4118 = vld [vmem:[%s221 + $0xec] sm:$0xff]
        %v4119 = vld [vmem:[%s221 + $0xf4] sm:$0xff]
        %v4120 = vld [vmem:[%s221 + $0xfc] sm:$0xff]
        %v4121 = vld [vmem:[%s221 + $0x104] sm:$0xff]
        %v4122 = vld [vmem:[%s221 + $0x10c] sm:$0xff]
        %v4123 = vld [vmem:[%s221 + $0x114] sm:$0xff]
        %v4124 = vld [vmem:[%s221 + $0x11c] sm:$0xff]
        %v4125 = vld [vmem:[%s221 + $0x124] sm:$0xff]
        %v4126 = vld [vmem:[%s221 + $0x12c] sm:$0xff]
        %v4128 = vsel %vm640, %v4109, 0
        %v4131 = vsel %vm640, %v4110, 0
        %v4134 = vsel %vm640, %v4111, 0
        %v4137 = vsel %vm640, %v4112, 0
        %v4140 = vsel %vm640, %v4113, 0
        %v4143 = vsel %vm640, %v4114, 0
        %v4146 = vsel %vm640, %v4115, 0
        %v4149 = vsel %vm640, %v4116, 0
        %v4152 = vsel %vm640, %v4117, 0
        %v4155 = vsel %vm640, %v4118, 0
        %v4158 = vsel %vm640, %v4119, 0
        %v4161 = vsel %vm640, %v4120, 0
        %v4164 = vsel %vm640, %v4121, 0
        %v4167 = vsel %vm640, %v4122, 0
        %v4170 = vsel %vm640, %v4123, 0
        %v4173 = vsel %vm640, %v4124, 0
        %v4176 = vsel %vm640, %v4125, 0
        %v4179 = vsel %vm640, %v4126, 0
        %4181 = vmatprep.subr.mxu0 0.0
        %4182 = vmatpush1.msra.mxu0 %v1891
        %4183 = vmatprep.subr.mxu0 0.0
        %4184 = vmatpush1.msra.mxu0 0.0
        %4185 = vmatprep.subr.mxu0 0.0
        %4186 = vmatpush1.msra.mxu0 0.0
        %4187 = vmatprep.subr.mxu0 0.0
        %4188 = vmatpush1.msra.mxu0 0.0
        %4189 = vmatprep.subr.mxu0 0.0
        %4190 = vmatpush1.msra.mxu0 0.0
        %4191 = vmatprep.subr.mxu0 0.0
        %4192 = vmatpush1.msra.mxu0 0.0
        %4193 = vmatprep.subr.mxu0 0.0
        %4194 = vmatpush1.msra.mxu0 0.0
        %4195 = vmatprep.subr.mxu0 0.0
        %4196 = vmatpush1.msra.mxu0 0.0
        %4197 = vmatprep.subr.mxu0 0.0
        %4198 = vmatpush1.msra.mxu0 0.0
        %4199 = vmatprep.subr.mxu0 0.0
        %4200 = vmatpush1.msra.mxu0 0.0
        %4201 = vmatprep.subr.mxu0 0.0
        %4202 = vmatpush1.msra.mxu0 0.0
        %4203 = vmatprep.subr.mxu0 0.0
        %4204 = vmatpush1.msra.mxu0 0.0
        %4205 = vmatprep.subr.mxu0 0.0
        %4206 = vmatpush1.msra.mxu0 0.0
        %4207 = vmatprep.subr.mxu0 0.0
        %4208 = vmatpush1.msra.mxu0 0.0
        %4209 = vmatprep.subr.mxu0 0.0
        %4210 = vmatpush1.msra.mxu0 0.0
        %4211 = vmatprep.subr.mxu0 0.0
        %4212 = vmatpush1.msra.mxu0 0.0
        %4213 = vmatprep.subr.mxu0 0.0
        %4214 = vmatpush1.msra.mxu0 0.0
        %4215 = vmatprep.subr.mxu0 0.0
        %4216 = vmatpush1.msra.mxu0 0.0
        %4217 = vmatprep.subr.mxu0 0.0
        %4218 = vmatpush1.msra.mxu0 0.0
        %4219 = vmatprep.subr.mxu0 0.0
        %4220 = vmatpush1.msra.mxu0 0.0
        %4221 = vmatprep.subr.mxu0 0.0
        %4222 = vmatpush1.msra.mxu0 0.0
        %4223 = vmatprep.subr.mxu0 0.0
        %4224 = vmatpush1.msra.mxu0 0.0
        %4225 = vmatprep.subr.mxu0 0.0
        %4226 = vmatpush1.msra.mxu0 0.0
        %4227 = vmatprep.subr.mxu0 0.0
        %4228 = vmatpush1.msra.mxu0 0.0
        %4229 = vmatprep.subr.mxu0 0.0
        %4230 = vmatpush1.msra.mxu0 0.0
        %4231 = vmatprep.subr.mxu0 0.0
        %4232 = vmatpush1.msra.mxu0 0.0
        %4233 = vmatprep.subr.mxu0 0.0
        %4234 = vmatpush1.msra.mxu0 0.0
        %4235 = vmatprep.subr.mxu0 0.0
        %4236 = vmatpush1.msra.mxu0 0.0
        %4237 = vmatprep.subr.mxu0 0.0
        %4238 = vmatpush1.msra.mxu0 0.0
        %4239 = vmatprep.subr.mxu0 0.0
        %4240 = vmatpush1.msra.mxu0 0.0
        %4241 = vmatprep.subr.mxu0 0.0
        %4242 = vmatpush1.msra.mxu0 0.0
        %4243 = vmatprep.subr.mxu0 0.0
        %4244 = vmatpush1.msra.mxu0 0.0
        %4245 = vmatprep.mubr.f32.mxu0 0.0
        %4246 = vmatmul.mubr.f32.gmra.mrb[0].mxu0 %v4128
        %v4247 = vpop.f32.mrb[0].mxu0
        %v4248 = vadd.f32 0.0, %v4247
        %v4249 = vpop.f32.mrb[0].mxu0
        %4250 = vmatprep.mubr.f32.mxu0 0.0
        %4251 = vmatmul.mubr.f32.gmra.mrb[0].mxu0 %v4131
        %v4252 = vpop.f32.mrb[0].mxu0
        %v4253 = vadd.f32 0.0, %v4252
        %v4254 = vpop.f32.mrb[0].mxu0
        %4255 = vmatprep.mubr.f32.mxu0 0.0
        %4256 = vmatmul.mubr.f32.gmra.mrb[0].mxu0 %v4134
        %v4257 = vpop.f32.mrb[0].mxu0
        %v4258 = vadd.f32 0.0, %v4257
        %v4259 = vpop.f32.mrb[0].mxu0
        %4260 = vmatprep.mubr.f32.mxu0 0.0
        %4261 = vmatmul.mubr.f32.gmra.mrb[0].mxu0 %v4137
        %v4262 = vpop.f32.mrb[0].mxu0
        %v4263 = vadd.f32 0.0, %v4262
        %v4264 = vpop.f32.mrb[0].mxu0
        %4265 = vmatprep.mubr.f32.mxu0 0.0
        %4266 = vmatmul.mubr.f32.gmra.mrb[0].mxu0 %v4140
        %v4267 = vpop.f32.mrb[0].mxu0
        %v4268 = vadd.f32 0.0, %v4267
        %v4269 = vpop.f32.mrb[0].mxu0
        %4270 = vmatprep.mubr.f32.mxu0 0.0
        %4271 = vmatmul.mubr.f32.gmra.mrb[0].mxu0 %v4143
        %v4272 = vpop.f32.mrb[0].mxu0
        %v4273 = vadd.f32 0.0, %v4272
        %v4274 = vpop.f32.mrb[0].mxu0
        %4275 = vmatprep.mubr.f32.mxu0 0.0
        %4276 = vmatmul.mubr.f32.gmra.mrb[0].mxu0 %v4146
        %v4277 = vpop.f32.mrb[0].mxu0
        %v4278 = vadd.f32 0.0, %v4277
        %v4279 = vpop.f32.mrb[0].mxu0
        %4280 = vmatprep.mubr.f32.mxu0 0.0
        %4281 = vmatmul.mubr.f32.gmra.mrb[0].mxu0 %v4149
        %v4282 = vpop.f32.mrb[0].mxu0
        %v4283 = vadd.f32 0.0, %v4282
        %v4284 = vpop.f32.mrb[0].mxu0
        %4285 = vmatprep.mubr.f32.mxu0 0.0
        %4286 = vmatmul.mubr.f32.gmra.mrb[0].mxu0 %v4152
        %v4287 = vpop.f32.mrb[0].mxu0
        %v4288 = vadd.f32 0.0, %v4287
        %v4289 = vpop.f32.mrb[0].mxu0
        %4290 = vmatprep.mubr.f32.mxu0 0.0
        %4291 = vmatmul.mubr.f32.gmra.mrb[0].mxu0 %v4155
        %v4292 = vpop.f32.mrb[0].mxu0
        %v4293 = vadd.f32 0.0, %v4292
        %v4294 = vpop.f32.mrb[0].mxu0
        %4295 = vmatprep.mubr.f32.mxu0 0.0
        %4296 = vmatmul.mubr.f32.gmra.mrb[0].mxu0 %v4158
        %v4297 = vpop.f32.mrb[0].mxu0
        %v4298 = vadd.f32 0.0, %v4297
        %v4299 = vpop.f32.mrb[0].mxu0
        %4300 = vmatprep.mubr.f32.mxu0 0.0
        %4301 = vmatmul.mubr.f32.gmra.mrb[0].mxu0 %v4161
        %v4302 = vpop.f32.mrb[0].mxu0
        %v4303 = vadd.f32 0.0, %v4302
        %v4304 = vpop.f32.mrb[0].mxu0
        %4305 = vmatprep.mubr.f32.mxu0 0.0
        %4306 = vmatmul.mubr.f32.gmra.mrb[0].mxu0 %v4164
        %v4307 = vpop.f32.mrb[0].mxu0
        %v4308 = vadd.f32 0.0, %v4307
        %v4309 = vpop.f32.mrb[0].mxu0
        %4310 = vmatprep.mubr.f32.mxu0 0.0
        %4311 = vmatmul.mubr.f32.gmra.mrb[0].mxu0 %v4167
        %v4312 = vpop.f32.mrb[0].mxu0
        %v4313 = vadd.f32 0.0, %v4312
        %v4314 = vpop.f32.mrb[0].mxu0
        %4315 = vmatprep.mubr.f32.mxu0 0.0
        %4316 = vmatmul.mubr.f32.gmra.mrb[0].mxu0 %v4170
        %v4317 = vpop.f32.mrb[0].mxu0
        %v4318 = vadd.f32 0.0, %v4317
        %v4319 = vpop.f32.mrb[0].mxu0
        %4320 = vmatprep.mubr.f32.mxu0 0.0
        %4321 = vmatmul.mubr.f32.gmra.mrb[0].mxu0 %v4173
        %v4322 = vpop.f32.mrb[0].mxu0
        %v4323 = vadd.f32 0.0, %v4322
        %v4324 = vpop.f32.mrb[0].mxu0
        %4325 = vmatprep.mubr.f32.mxu0 0.0
        %4326 = vmatmul.mubr.f32.gmra.mrb[0].mxu0 %v4176
        %v4327 = vpop.f32.mrb[0].mxu0
        %v4328 = vadd.f32 0.0, %v4327
        %v4329 = vpop.f32.mrb[0].mxu0
        %4330 = vmatprep.mubr.f32.mxu0 0.0
        %4331 = vmatmul.mubr.f32.gmra.mrb[0].mxu0 %v4179
        %v4332 = vpop.f32.mrb[0].mxu0
        %v4333 = vadd.f32 0.0, %v4332
        %v4334 = vpop.f32.mrb[0].mxu0
        %4335 = vdwg.mxu0
        %v4336 = vadd.f32 %v4091, %v4248
        %v4337 = vadd.f32 %v4092, %v4253
        %v4338 = vadd.f32 %v4093, %v4258
        %v4339 = vadd.f32 %v4094, %v4263
        %v4340 = vadd.f32 %v4095, %v4268
        %v4341 = vadd.f32 %v4096, %v4273
        %v4342 = vadd.f32 %v4097, %v4278
        %v4343 = vadd.f32 %v4098, %v4283
        %v4344 = vadd.f32 %v4099, %v4288
        %v4345 = vadd.f32 %v4100, %v4293
        %v4346 = vadd.f32 %v4101, %v4298
        %v4347 = vadd.f32 %v4102, %v4303
        %v4348 = vadd.f32 %v4103, %v4308
        %v4349 = vadd.f32 %v4104, %v4313
        %v4350 = vadd.f32 %v4105, %v4318
        %v4351 = vadd.f32 %v4106, %v4323
        %v4352 = vadd.f32 %v4107, %v4328
        %v4353 = vadd.f32 %v4108, %v4333
        %v4354 = vld [vmem:[%s221 + $0xb4] sm:$0xff]
        %v4355 = vld [vmem:[%s221 + $0xbc] sm:$0xff]
        %v4356 = vld [vmem:[%s221 + $0xc4] sm:$0xff]
        %v4357 = vld [vmem:[%s221 + $0xcc] sm:$0xff]
        %v4358 = vld [vmem:[%s221 + $0xd4] sm:$0xff]
        %v4359 = vld [vmem:[%s221 + $0xdc] sm:$0xff]
        %v4360 = vld [vmem:[%s221 + $0xe4] sm:$0xff]
        %v4361 = vld [vmem:[%s221 + $0xec] sm:$0xff]
        %v4362 = vld [vmem:[%s221 + $0xf4] sm:$0xff]
        %v4363 = vld [vmem:[%s221 + $0xfc] sm:$0xff]
        %v4364 = vld [vmem:[%s221 + $0x104] sm:$0xff]
        %v4365 = vld [vmem:[%s221 + $0x10c] sm:$0xff]
        %v4366 = vld [vmem:[%s221 + $0x114] sm:$0xff]
        %v4367 = vld [vmem:[%s221 + $0x11c] sm:$0xff]
        %v4368 = vld [vmem:[%s221 + $0x124] sm:$0xff]
        %v4369 = vld [vmem:[%s221 + $0x12c] sm:$0xff]
        %v4370 = vld [vmem:[%s221 + $0x134] sm:$0xff]
        %v4371 = vld [vmem:[%s221 + $0x13c] sm:$0xff]
        %v4373 = vsel %vm640, %v4354, 0
        %v4376 = vsel %vm640, %v4355, 0
        %v4379 = vsel %vm640, %v4356, 0
        %v4382 = vsel %vm640, %v4357, 0
        %v4385 = vsel %vm640, %v4358, 0
        %v4388 = vsel %vm640, %v4359, 0
        %v4391 = vsel %vm640, %v4360, 0
        %v4394 = vsel %vm640, %v4361, 0
        %v4397 = vsel %vm640, %v4362, 0
        %v4400 = vsel %vm640, %v4363, 0
        %v4403 = vsel %vm640, %v4364, 0
        %v4406 = vsel %vm640, %v4365, 0
        %v4409 = vsel %vm640, %v4366, 0
        %v4412 = vsel %vm640, %v4367, 0
        %v4415 = vsel %vm640, %v4368, 0
        %v4418 = vsel %vm640, %v4369, 0
        %v4421 = vsel %vm640, %v4370, 0
        %v4424 = vsel %vm640, %v4371, 0
        %4426 = vmatprep.subr.mxu0 0.0
        %4427 = vmatpush1.msra.mxu0 %v2141
        %4428 = vmatprep.subr.mxu0 0.0
        %4429 = vmatpush1.msra.mxu0 0.0
        %4430 = vmatprep.subr.mxu0 0.0
        %4431 = vmatpush1.msra.mxu0 0.0
        %4432 = vmatprep.subr.mxu0 0.0
        %4433 = vmatpush1.msra.mxu0 0.0
        %4434 = vmatprep.subr.mxu0 0.0
        %4435 = vmatpush1.msra.mxu0 0.0
        %4436 = vmatprep.subr.mxu0 0.0
        %4437 = vmatpush1.msra.mxu0 0.0
        %4438 = vmatprep.subr.mxu0 0.0
        %4439 = vmatpush1.msra.mxu0 0.0
        %4440 = vmatprep.subr.mxu0 0.0
        %4441 = vmatpush1.msra.mxu0 0.0
        %4442 = vmatprep.subr.mxu0 0.0
        %4443 = vmatpush1.msra.mxu0 0.0
        %4444 = vmatprep.subr.mxu0 0.0
        %4445 = vmatpush1.msra.mxu0 0.0
        %4446 = vmatprep.subr.mxu0 0.0
        %4447 = vmatpush1.msra.mxu0 0.0
        %4448 = vmatprep.subr.mxu0 0.0
        %4449 = vmatpush1.msra.mxu0 0.0
        %4450 = vmatprep.subr.mxu0 0.0
        %4451 = vmatpush1.msra.mxu0 0.0
        %4452 = vmatprep.subr.mxu0 0.0
        %4453 = vmatpush1.msra.mxu0 0.0
        %4454 = vmatprep.subr.mxu0 0.0
        %4455 = vmatpush1.msra.mxu0 0.0
        %4456 = vmatprep.subr.mxu0 0.0
        %4457 = vmatpush1.msra.mxu0 0.0
        %4458 = vmatprep.subr.mxu0 0.0
        %4459 = vmatpush1.msra.mxu0 0.0
        %4460 = vmatprep.subr.mxu0 0.0
        %4461 = vmatpush1.msra.mxu0 0.0
        %4462 = vmatprep.subr.mxu0 0.0
        %4463 = vmatpush1.msra.mxu0 0.0
        %4464 = vmatprep.subr.mxu0 0.0
        %4465 = vmatpush1.msra.mxu0 0.0
        %4466 = vmatprep.subr.mxu0 0.0
        %4467 = vmatpush1.msra.mxu0 0.0
        %4468 = vmatprep.subr.mxu0 0.0
        %4469 = vmatpush1.msra.mxu0 0.0
        %4470 = vmatprep.subr.mxu0 0.0
        %4471 = vmatpush1.msra.mxu0 0.0
        %4472 = vmatprep.subr.mxu0 0.0
        %4473 = vmatpush1.msra.mxu0 0.0
        %4474 = vmatprep.subr.mxu0 0.0
        %4475 = vmatpush1.msra.mxu0 0.0
        %4476 = vmatprep.subr.mxu0 0.0
        %4477 = vmatpush1.msra.mxu0 0.0
        %4478 = vmatprep.subr.mxu0 0.0
        %4479 = vmatpush1.msra.mxu0 0.0
        %4480 = vmatprep.subr.mxu0 0.0
        %4481 = vmatpush1.msra.mxu0 0.0
        %4482 = vmatprep.subr.mxu0 0.0
        %4483 = vmatpush1.msra.mxu0 0.0
        %4484 = vmatprep.subr.mxu0 0.0
        %4485 = vmatpush1.msra.mxu0 0.0
        %4486 = vmatprep.subr.mxu0 0.0
        %4487 = vmatpush1.msra.mxu0 0.0
        %4488 = vmatprep.subr.mxu0 0.0
        %4489 = vmatpush1.msra.mxu0 0.0
        %4490 = vmatprep.mubr.f32.mxu0 0.0
        %4491 = vmatmul.mubr.f32.gmra.mrb[0].mxu0 %v4373
        %v4492 = vpop.f32.mrb[0].mxu0
        %v4493 = vadd.f32 0.0, %v4492
        %v4494 = vpop.f32.mrb[0].mxu0
        %4495 = vmatprep.mubr.f32.mxu0 0.0
        %4496 = vmatmul.mubr.f32.gmra.mrb[0].mxu0 %v4376
        %v4497 = vpop.f32.mrb[0].mxu0
        %v4498 = vadd.f32 0.0, %v4497
        %v4499 = vpop.f32.mrb[0].mxu0
        %4500 = vmatprep.mubr.f32.mxu0 0.0
        %4501 = vmatmul.mubr.f32.gmra.mrb[0].mxu0 %v4379
        %v4502 = vpop.f32.mrb[0].mxu0
        %v4503 = vadd.f32 0.0, %v4502
        %v4504 = vpop.f32.mrb[0].mxu0
        %4505 = vmatprep.mubr.f32.mxu0 0.0
        %4506 = vmatmul.mubr.f32.gmra.mrb[0].mxu0 %v4382
        %v4507 = vpop.f32.mrb[0].mxu0
        %v4508 = vadd.f32 0.0, %v4507
        %v4509 = vpop.f32.mrb[0].mxu0
        %4510 = vmatprep.mubr.f32.mxu0 0.0
        %4511 = vmatmul.mubr.f32.gmra.mrb[0].mxu0 %v4385
        %v4512 = vpop.f32.mrb[0].mxu0
        %v4513 = vadd.f32 0.0, %v4512
        %v4514 = vpop.f32.mrb[0].mxu0
        %4515 = vmatprep.mubr.f32.mxu0 0.0
        %4516 = vmatmul.mubr.f32.gmra.mrb[0].mxu0 %v4388
        %v4517 = vpop.f32.mrb[0].mxu0
        %v4518 = vadd.f32 0.0, %v4517
        %v4519 = vpop.f32.mrb[0].mxu0
        %4520 = vmatprep.mubr.f32.mxu0 0.0
        %4521 = vmatmul.mubr.f32.gmra.mrb[0].mxu0 %v4391
        %v4522 = vpop.f32.mrb[0].mxu0
        %v4523 = vadd.f32 0.0, %v4522
        %v4524 = vpop.f32.mrb[0].mxu0
        %4525 = vmatprep.mubr.f32.mxu0 0.0
        %4526 = vmatmul.mubr.f32.gmra.mrb[0].mxu0 %v4394
        %v4527 = vpop.f32.mrb[0].mxu0
        %v4528 = vadd.f32 0.0, %v4527
        %v4529 = vpop.f32.mrb[0].mxu0
        %4530 = vmatprep.mubr.f32.mxu0 0.0
        %4531 = vmatmul.mubr.f32.gmra.mrb[0].mxu0 %v4397
        %v4532 = vpop.f32.mrb[0].mxu0
        %v4533 = vadd.f32 0.0, %v4532
        %v4534 = vpop.f32.mrb[0].mxu0
        %4535 = vmatprep.mubr.f32.mxu0 0.0
        %4536 = vmatmul.mubr.f32.gmra.mrb[0].mxu0 %v4400
        %v4537 = vpop.f32.mrb[0].mxu0
        %v4538 = vadd.f32 0.0, %v4537
        %v4539 = vpop.f32.mrb[0].mxu0
        %4540 = vmatprep.mubr.f32.mxu0 0.0
        %4541 = vmatmul.mubr.f32.gmra.mrb[0].mxu0 %v4403
        %v4542 = vpop.f32.mrb[0].mxu0
        %v4543 = vadd.f32 0.0, %v4542
        %v4544 = vpop.f32.mrb[0].mxu0
        %4545 = vmatprep.mubr.f32.mxu0 0.0
        %4546 = vmatmul.mubr.f32.gmra.mrb[0].mxu0 %v4406
        %v4547 = vpop.f32.mrb[0].mxu0
        %v4548 = vadd.f32 0.0, %v4547
        %v4549 = vpop.f32.mrb[0].mxu0
        %4550 = vmatprep.mubr.f32.mxu0 0.0
        %4551 = vmatmul.mubr.f32.gmra.mrb[0].mxu0 %v4409
        %v4552 = vpop.f32.mrb[0].mxu0
        %v4553 = vadd.f32 0.0, %v4552
        %v4554 = vpop.f32.mrb[0].mxu0
        %4555 = vmatprep.mubr.f32.mxu0 0.0
        %4556 = vmatmul.mubr.f32.gmra.mrb[0].mxu0 %v4412
        %v4557 = vpop.f32.mrb[0].mxu0
        %v4558 = vadd.f32 0.0, %v4557
        %v4559 = vpop.f32.mrb[0].mxu0
        %4560 = vmatprep.mubr.f32.mxu0 0.0
        %4561 = vmatmul.mubr.f32.gmra.mrb[0].mxu0 %v4415
        %v4562 = vpop.f32.mrb[0].mxu0
        %v4563 = vadd.f32 0.0, %v4562
        %v4564 = vpop.f32.mrb[0].mxu0
        %4565 = vmatprep.mubr.f32.mxu0 0.0
        %4566 = vmatmul.mubr.f32.gmra.mrb[0].mxu0 %v4418
        %v4567 = vpop.f32.mrb[0].mxu0
        %v4568 = vadd.f32 0.0, %v4567
        %v4569 = vpop.f32.mrb[0].mxu0
        %4570 = vmatprep.mubr.f32.mxu0 0.0
        %4571 = vmatmul.mubr.f32.gmra.mrb[0].mxu0 %v4421
        %v4572 = vpop.f32.mrb[0].mxu0
        %v4573 = vadd.f32 0.0, %v4572
        %v4574 = vpop.f32.mrb[0].mxu0
        %4575 = vmatprep.mubr.f32.mxu0 0.0
        %4576 = vmatmul.mubr.f32.gmra.mrb[0].mxu0 %v4424
        %v4577 = vpop.f32.mrb[0].mxu0
        %v4578 = vadd.f32 0.0, %v4577
        %v4579 = vpop.f32.mrb[0].mxu0
        %4580 = vdwg.mxu0
        %v4581 = vadd.f32 %v4336, %v4493
        %v4582 = vadd.f32 %v4337, %v4498
        %v4583 = vadd.f32 %v4338, %v4503
        %v4584 = vadd.f32 %v4339, %v4508
        %v4585 = vadd.f32 %v4340, %v4513
        %v4586 = vadd.f32 %v4341, %v4518
        %v4587 = vadd.f32 %v4342, %v4523
        %v4588 = vadd.f32 %v4343, %v4528
        %v4589 = vadd.f32 %v4344, %v4533
        %v4590 = vadd.f32 %v4345, %v4538
        %v4591 = vadd.f32 %v4346, %v4543
        %v4592 = vadd.f32 %v4347, %v4548
        %v4593 = vadd.f32 %v4348, %v4553
        %v4594 = vadd.f32 %v4349, %v4558
        %v4595 = vadd.f32 %v4350, %v4563
        %v4596 = vadd.f32 %v4351, %v4568
        %v4597 = vadd.f32 %v4352, %v4573
        %v4598 = vadd.f32 %v4353, %v4578
        %v4599 = vld [vmem:[%s221 + $0xb5] sm:$0xff]
        %v4600 = vld [vmem:[%s221 + $0xbd] sm:$0xff]
        %v4601 = vld [vmem:[%s221 + $0xc5] sm:$0xff]
        %v4602 = vld [vmem:[%s221 + $0xcd] sm:$0xff]
        %v4603 = vld [vmem:[%s221 + $0xd5] sm:$0xff]
        %v4604 = vld [vmem:[%s221 + $0xdd] sm:$0xff]
        %v4605 = vld [vmem:[%s221 + $0xe5] sm:$0xff]
        %v4606 = vld [vmem:[%s221 + $0xed] sm:$0xff]
        %v4607 = vld [vmem:[%s221 + $0xf5] sm:$0xff]
        %v4608 = vld [vmem:[%s221 + $0xfd] sm:$0xff]
        %v4609 = vld [vmem:[%s221 + $0x105] sm:$0xff]
        %v4610 = vld [vmem:[%s221 + $0x10d] sm:$0xff]
        %v4611 = vld [vmem:[%s221 + $0x115] sm:$0xff]
        %v4612 = vld [vmem:[%s221 + $0x11d] sm:$0xff]
        %v4613 = vld [vmem:[%s221 + $0x125] sm:$0xff]
        %v4614 = vld [vmem:[%s221 + $0x12d] sm:$0xff]
        %v4615 = vld [vmem:[%s221 + $0x135] sm:$0xff]
        %v4616 = vld [vmem:[%s221 + $0x13d] sm:$0xff]
        %v4618 = vsel %vm640, %v4599, 0
        %v4621 = vsel %vm640, %v4600, 0
        %v4624 = vsel %vm640, %v4601, 0
        %v4627 = vsel %vm640, %v4602, 0
        %v4630 = vsel %vm640, %v4603, 0
        %v4633 = vsel %vm640, %v4604, 0
        %v4636 = vsel %vm640, %v4605, 0
        %v4639 = vsel %vm640, %v4606, 0
        %v4642 = vsel %vm640, %v4607, 0
        %v4645 = vsel %vm640, %v4608, 0
        %v4648 = vsel %vm640, %v4609, 0
        %v4651 = vsel %vm640, %v4610, 0
        %v4654 = vsel %vm640, %v4611, 0
        %v4657 = vsel %vm640, %v4612, 0
        %v4660 = vsel %vm640, %v4613, 0
        %v4663 = vsel %vm640, %v4614, 0
        %v4666 = vsel %vm640, %v4615, 0
        %v4669 = vsel %vm640, %v4616, 0
        %4671 = vmatprep.subr.mxu0 0.0
        %4672 = vmatpush1.msra.mxu0 %v2391
        %4673 = vmatprep.subr.mxu0 0.0
        %4674 = vmatpush1.msra.mxu0 0.0
        %4675 = vmatprep.subr.mxu0 0.0
        %4676 = vmatpush1.msra.mxu0 0.0
        %4677 = vmatprep.subr.mxu0 0.0
        %4678 = vmatpush1.msra.mxu0 0.0
        %4679 = vmatprep.subr.mxu0 0.0
        %4680 = vmatpush1.msra.mxu0 0.0
        %4681 = vmatprep.subr.mxu0 0.0
        %4682 = vmatpush1.msra.mxu0 0.0
        %4683 = vmatprep.subr.mxu0 0.0
        %4684 = vmatpush1.msra.mxu0 0.0
        %4685 = vmatprep.subr.mxu0 0.0
        %4686 = vmatpush1.msra.mxu0 0.0
        %4687 = vmatprep.subr.mxu0 0.0
        %4688 = vmatpush1.msra.mxu0 0.0
        %4689 = vmatprep.subr.mxu0 0.0
        %4690 = vmatpush1.msra.mxu0 0.0
        %4691 = vmatprep.subr.mxu0 0.0
        %4692 = vmatpush1.msra.mxu0 0.0
        %4693 = vmatprep.subr.mxu0 0.0
        %4694 = vmatpush1.msra.mxu0 0.0
        %4695 = vmatprep.subr.mxu0 0.0
        %4696 = vmatpush1.msra.mxu0 0.0
        %4697 = vmatprep.subr.mxu0 0.0
        %4698 = vmatpush1.msra.mxu0 0.0
        %4699 = vmatprep.subr.mxu0 0.0
        %4700 = vmatpush1.msra.mxu0 0.0
        %4701 = vmatprep.subr.mxu0 0.0
        %4702 = vmatpush1.msra.mxu0 0.0
        %4703 = vmatprep.subr.mxu0 0.0
        %4704 = vmatpush1.msra.mxu0 0.0
        %4705 = vmatprep.subr.mxu0 0.0
        %4706 = vmatpush1.msra.mxu0 0.0
        %4707 = vmatprep.subr.mxu0 0.0
        %4708 = vmatpush1.msra.mxu0 0.0
        %4709 = vmatprep.subr.mxu0 0.0
        %4710 = vmatpush1.msra.mxu0 0.0
        %4711 = vmatprep.subr.mxu0 0.0
        %4712 = vmatpush1.msra.mxu0 0.0
        %4713 = vmatprep.subr.mxu0 0.0
        %4714 = vmatpush1.msra.mxu0 0.0
        %4715 = vmatprep.subr.mxu0 0.0
        %4716 = vmatpush1.msra.mxu0 0.0
        %4717 = vmatprep.subr.mxu0 0.0
        %4718 = vmatpush1.msra.mxu0 0.0
        %4719 = vmatprep.subr.mxu0 0.0
        %4720 = vmatpush1.msra.mxu0 0.0
        %4721 = vmatprep.subr.mxu0 0.0
        %4722 = vmatpush1.msra.mxu0 0.0
        %4723 = vmatprep.subr.mxu0 0.0
        %4724 = vmatpush1.msra.mxu0 0.0
        %4725 = vmatprep.subr.mxu0 0.0
        %4726 = vmatpush1.msra.mxu0 0.0
        %4727 = vmatprep.subr.mxu0 0.0
        %4728 = vmatpush1.msra.mxu0 0.0
        %4729 = vmatprep.subr.mxu0 0.0
        %4730 = vmatpush1.msra.mxu0 0.0
        %4731 = vmatprep.subr.mxu0 0.0
        %4732 = vmatpush1.msra.mxu0 0.0
        %4733 = vmatprep.subr.mxu0 0.0
        %4734 = vmatpush1.msra.mxu0 0.0
        %4735 = vmatprep.mubr.f32.mxu0 0.0
        %4736 = vmatmul.mubr.f32.gmra.mrb[0].mxu0 %v4618
        %v4737 = vpop.f32.mrb[0].mxu0
        %v4738 = vadd.f32 0.0, %v4737
        %v4739 = vpop.f32.mrb[0].mxu0
        %4740 = vmatprep.mubr.f32.mxu0 0.0
        %4741 = vmatmul.mubr.f32.gmra.mrb[0].mxu0 %v4621
        %v4742 = vpop.f32.mrb[0].mxu0
        %v4743 = vadd.f32 0.0, %v4742
        %v4744 = vpop.f32.mrb[0].mxu0
        %4745 = vmatprep.mubr.f32.mxu0 0.0
        %4746 = vmatmul.mubr.f32.gmra.mrb[0].mxu0 %v4624
        %v4747 = vpop.f32.mrb[0].mxu0
        %v4748 = vadd.f32 0.0, %v4747
        %v4749 = vpop.f32.mrb[0].mxu0
        %4750 = vmatprep.mubr.f32.mxu0 0.0
        %4751 = vmatmul.mubr.f32.gmra.mrb[0].mxu0 %v4627
        %v4752 = vpop.f32.mrb[0].mxu0
        %v4753 = vadd.f32 0.0, %v4752
        %v4754 = vpop.f32.mrb[0].mxu0
        %4755 = vmatprep.mubr.f32.mxu0 0.0
        %4756 = vmatmul.mubr.f32.gmra.mrb[0].mxu0 %v4630
        %v4757 = vpop.f32.mrb[0].mxu0
        %v4758 = vadd.f32 0.0, %v4757
        %v4759 = vpop.f32.mrb[0].mxu0
        %4760 = vmatprep.mubr.f32.mxu0 0.0
        %4761 = vmatmul.mubr.f32.gmra.mrb[0].mxu0 %v4633
        %v4762 = vpop.f32.mrb[0].mxu0
        %v4763 = vadd.f32 0.0, %v4762
        %v4764 = vpop.f32.mrb[0].mxu0
        %4765 = vmatprep.mubr.f32.mxu0 0.0
        %4766 = vmatmul.mubr.f32.gmra.mrb[0].mxu0 %v4636
        %v4767 = vpop.f32.mrb[0].mxu0
        %v4768 = vadd.f32 0.0, %v4767
        %v4769 = vpop.f32.mrb[0].mxu0
        %4770 = vmatprep.mubr.f32.mxu0 0.0
        %4771 = vmatmul.mubr.f32.gmra.mrb[0].mxu0 %v4639
        %v4772 = vpop.f32.mrb[0].mxu0
        %v4773 = vadd.f32 0.0, %v4772
        %v4774 = vpop.f32.mrb[0].mxu0
        %4775 = vmatprep.mubr.f32.mxu0 0.0
        %4776 = vmatmul.mubr.f32.gmra.mrb[0].mxu0 %v4642
        %v4777 = vpop.f32.mrb[0].mxu0
        %v4778 = vadd.f32 0.0, %v4777
        %v4779 = vpop.f32.mrb[0].mxu0
        %4780 = vmatprep.mubr.f32.mxu0 0.0
        %4781 = vmatmul.mubr.f32.gmra.mrb[0].mxu0 %v4645
        %v4782 = vpop.f32.mrb[0].mxu0
        %v4783 = vadd.f32 0.0, %v4782
        %v4784 = vpop.f32.mrb[0].mxu0
        %4785 = vmatprep.mubr.f32.mxu0 0.0
        %4786 = vmatmul.mubr.f32.gmra.mrb[0].mxu0 %v4648
        %v4787 = vpop.f32.mrb[0].mxu0
        %v4788 = vadd.f32 0.0, %v4787
        %v4789 = vpop.f32.mrb[0].mxu0
        %4790 = vmatprep.mubr.f32.mxu0 0.0
        %4791 = vmatmul.mubr.f32.gmra.mrb[0].mxu0 %v4651
        %v4792 = vpop.f32.mrb[0].mxu0
        %v4793 = vadd.f32 0.0, %v4792
        %v4794 = vpop.f32.mrb[0].mxu0
        %4795 = vmatprep.mubr.f32.mxu0 0.0
        %4796 = vmatmul.mubr.f32.gmra.mrb[0].mxu0 %v4654
        %v4797 = vpop.f32.mrb[0].mxu0
        %v4798 = vadd.f32 0.0, %v4797
        %v4799 = vpop.f32.mrb[0].mxu0
        %4800 = vmatprep.mubr.f32.mxu0 0.0
        %4801 = vmatmul.mubr.f32.gmra.mrb[0].mxu0 %v4657
        %v4802 = vpop.f32.mrb[0].mxu0
        %v4803 = vadd.f32 0.0, %v4802
        %v4804 = vpop.f32.mrb[0].mxu0
        %4805 = vmatprep.mubr.f32.mxu0 0.0
        %4806 = vmatmul.mubr.f32.gmra.mrb[0].mxu0 %v4660
        %v4807 = vpop.f32.mrb[0].mxu0
        %v4808 = vadd.f32 0.0, %v4807
        %v4809 = vpop.f32.mrb[0].mxu0
        %4810 = vmatprep.mubr.f32.mxu0 0.0
        %4811 = vmatmul.mubr.f32.gmra.mrb[0].mxu0 %v4663
        %v4812 = vpop.f32.mrb[0].mxu0
        %v4813 = vadd.f32 0.0, %v4812
        %v4814 = vpop.f32.mrb[0].mxu0
        %4815 = vmatprep.mubr.f32.mxu0 0.0
        %4816 = vmatmul.mubr.f32.gmra.mrb[0].mxu0 %v4666
        %v4817 = vpop.f32.mrb[0].mxu0
        %v4818 = vadd.f32 0.0, %v4817
        %v4819 = vpop.f32.mrb[0].mxu0
        %4820 = vmatprep.mubr.f32.mxu0 0.0
        %4821 = vmatmul.mubr.f32.gmra.mrb[0].mxu0 %v4669
        %v4822 = vpop.f32.mrb[0].mxu0
        %v4823 = vadd.f32 0.0, %v4822
        %v4824 = vpop.f32.mrb[0].mxu0
        %4825 = vdwg.mxu0
        %v4826 = vadd.f32 %v4581, %v4738
        %v4827 = vadd.f32 %v4582, %v4743
        %v4828 = vadd.f32 %v4583, %v4748
        %v4829 = vadd.f32 %v4584, %v4753
        %v4830 = vadd.f32 %v4585, %v4758
        %v4831 = vadd.f32 %v4586, %v4763
        %v4832 = vadd.f32 %v4587, %v4768
        %v4833 = vadd.f32 %v4588, %v4773
        %v4834 = vadd.f32 %v4589, %v4778
        %v4835 = vadd.f32 %v4590, %v4783
        %v4836 = vadd.f32 %v4591, %v4788
        %v4837 = vadd.f32 %v4592, %v4793
        %v4838 = vadd.f32 %v4593, %v4798
        %v4839 = vadd.f32 %v4594, %v4803
        %v4840 = vadd.f32 %v4595, %v4808
        %v4841 = vadd.f32 %v4596, %v4813
        %v4842 = vadd.f32 %v4597, %v4818
        %v4843 = vadd.f32 %v4598, %v4823
        %v4844 = vld [vmem:[%s221 + $0xb6] sm:$0xff]
        %v4845 = vld [vmem:[%s221 + $0xbe] sm:$0xff]
        %v4846 = vld [vmem:[%s221 + $0xc6] sm:$0xff]
        %v4847 = vld [vmem:[%s221 + $0xce] sm:$0xff]
        %v4848 = vld [vmem:[%s221 + $0xd6] sm:$0xff]
        %v4849 = vld [vmem:[%s221 + $0xde] sm:$0xff]
        %v4850 = vld [vmem:[%s221 + $0xe6] sm:$0xff]
        %v4851 = vld [vmem:[%s221 + $0xee] sm:$0xff]
        %v4852 = vld [vmem:[%s221 + $0xf6] sm:$0xff]
        %v4853 = vld [vmem:[%s221 + $0xfe] sm:$0xff]
        %v4854 = vld [vmem:[%s221 + $0x106] sm:$0xff]
        %v4855 = vld [vmem:[%s221 + $0x10e] sm:$0xff]
        %v4856 = vld [vmem:[%s221 + $0x116] sm:$0xff]
        %v4857 = vld [vmem:[%s221 + $0x11e] sm:$0xff]
        %v4858 = vld [vmem:[%s221 + $0x126] sm:$0xff]
        %v4859 = vld [vmem:[%s221 + $0x12e] sm:$0xff]
        %v4860 = vld [vmem:[%s221 + $0x136] sm:$0xff]
        %v4861 = vld [vmem:[%s221 + $0x13e] sm:$0xff]
        %v4863 = vsel %vm640, %v4844, 0
        %v4866 = vsel %vm640, %v4845, 0
        %v4869 = vsel %vm640, %v4846, 0
        %v4872 = vsel %vm640, %v4847, 0
        %v4875 = vsel %vm640, %v4848, 0
        %v4878 = vsel %vm640, %v4849, 0
        %v4881 = vsel %vm640, %v4850, 0
        %v4884 = vsel %vm640, %v4851, 0
        %v4887 = vsel %vm640, %v4852, 0
        %v4890 = vsel %vm640, %v4853, 0
        %v4893 = vsel %vm640, %v4854, 0
        %v4896 = vsel %vm640, %v4855, 0
        %v4899 = vsel %vm640, %v4856, 0
        %v4902 = vsel %vm640, %v4857, 0
        %v4905 = vsel %vm640, %v4858, 0
        %v4908 = vsel %vm640, %v4859, 0
        %v4911 = vsel %vm640, %v4860, 0
        %v4914 = vsel %vm640, %v4861, 0
        %4916 = vmatprep.subr.mxu0 0.0
        %4917 = vmatpush1.msra.mxu0 %v2641
        %4918 = vmatprep.subr.mxu0 0.0
        %4919 = vmatpush1.msra.mxu0 0.0
        %4920 = vmatprep.subr.mxu0 0.0
        %4921 = vmatpush1.msra.mxu0 0.0
        %4922 = vmatprep.subr.mxu0 0.0
        %4923 = vmatpush1.msra.mxu0 0.0
        %4924 = vmatprep.subr.mxu0 0.0
        %4925 = vmatpush1.msra.mxu0 0.0
        %4926 = vmatprep.subr.mxu0 0.0
        %4927 = vmatpush1.msra.mxu0 0.0
        %4928 = vmatprep.subr.mxu0 0.0
        %4929 = vmatpush1.msra.mxu0 0.0
        %4930 = vmatprep.subr.mxu0 0.0
        %4931 = vmatpush1.msra.mxu0 0.0
        %4932 = vmatprep.subr.mxu0 0.0
        %4933 = vmatpush1.msra.mxu0 0.0
        %4934 = vmatprep.subr.mxu0 0.0
        %4935 = vmatpush1.msra.mxu0 0.0
        %4936 = vmatprep.subr.mxu0 0.0
        %4937 = vmatpush1.msra.mxu0 0.0
        %4938 = vmatprep.subr.mxu0 0.0
        %4939 = vmatpush1.msra.mxu0 0.0
        %4940 = vmatprep.subr.mxu0 0.0
        %4941 = vmatpush1.msra.mxu0 0.0
        %4942 = vmatprep.subr.mxu0 0.0
        %4943 = vmatpush1.msra.mxu0 0.0
        %4944 = vmatprep.subr.mxu0 0.0
        %4945 = vmatpush1.msra.mxu0 0.0
        %4946 = vmatprep.subr.mxu0 0.0
        %4947 = vmatpush1.msra.mxu0 0.0
        %4948 = vmatprep.subr.mxu0 0.0
        %4949 = vmatpush1.msra.mxu0 0.0
        %4950 = vmatprep.subr.mxu0 0.0
        %4951 = vmatpush1.msra.mxu0 0.0
        %4952 = vmatprep.subr.mxu0 0.0
        %4953 = vmatpush1.msra.mxu0 0.0
        %4954 = vmatprep.subr.mxu0 0.0
        %4955 = vmatpush1.msra.mxu0 0.0
        %4956 = vmatprep.subr.mxu0 0.0
        %4957 = vmatpush1.msra.mxu0 0.0
        %4958 = vmatprep.subr.mxu0 0.0
        %4959 = vmatpush1.msra.mxu0 0.0
        %4960 = vmatprep.subr.mxu0 0.0
        %4961 = vmatpush1.msra.mxu0 0.0
        %4962 = vmatprep.subr.mxu0 0.0
        %4963 = vmatpush1.msra.mxu0 0.0
        %4964 = vmatprep.subr.mxu0 0.0
        %4965 = vmatpush1.msra.mxu0 0.0
        %4966 = vmatprep.subr.mxu0 0.0
        %4967 = vmatpush1.msra.mxu0 0.0
        %4968 = vmatprep.subr.mxu0 0.0
        %4969 = vmatpush1.msra.mxu0 0.0
        %4970 = vmatprep.subr.mxu0 0.0
        %4971 = vmatpush1.msra.mxu0 0.0
        %4972 = vmatprep.subr.mxu0 0.0
        %4973 = vmatpush1.msra.mxu0 0.0
        %4974 = vmatprep.subr.mxu0 0.0
        %4975 = vmatpush1.msra.mxu0 0.0
        %4976 = vmatprep.subr.mxu0 0.0
        %4977 = vmatpush1.msra.mxu0 0.0
        %4978 = vmatprep.subr.mxu0 0.0
        %4979 = vmatpush1.msra.mxu0 0.0
        %4980 = vmatprep.mubr.f32.mxu0 0.0
        %4981 = vmatmul.mubr.f32.gmra.mrb[0].mxu0 %v4863
        %v4982 = vpop.f32.mrb[0].mxu0
        %v4983 = vadd.f32 0.0, %v4982
        %v4984 = vpop.f32.mrb[0].mxu0
        %4985 = vmatprep.mubr.f32.mxu0 0.0
        %4986 = vmatmul.mubr.f32.gmra.mrb[0].mxu0 %v4866
        %v4987 = vpop.f32.mrb[0].mxu0
        %v4988 = vadd.f32 0.0, %v4987
        %v4989 = vpop.f32.mrb[0].mxu0
        %4990 = vmatprep.mubr.f32.mxu0 0.0
        %4991 = vmatmul.mubr.f32.gmra.mrb[0].mxu0 %v4869
        %v4992 = vpop.f32.mrb[0].mxu0
        %v4993 = vadd.f32 0.0, %v4992
        %v4994 = vpop.f32.mrb[0].mxu0
        %4995 = vmatprep.mubr.f32.mxu0 0.0
        %4996 = vmatmul.mubr.f32.gmra.mrb[0].mxu0 %v4872
        %v4997 = vpop.f32.mrb[0].mxu0
        %v4998 = vadd.f32 0.0, %v4997
        %v4999 = vpop.f32.mrb[0].mxu0
        %5000 = vmatprep.mubr.f32.mxu0 0.0
        %5001 = vmatmul.mubr.f32.gmra.mrb[0].mxu0 %v4875
        %v5002 = vpop.f32.mrb[0].mxu0
        %v5003 = vadd.f32 0.0, %v5002
        %v5004 = vpop.f32.mrb[0].mxu0
        %5005 = vmatprep.mubr.f32.mxu0 0.0
        %5006 = vmatmul.mubr.f32.gmra.mrb[0].mxu0 %v4878
        %v5007 = vpop.f32.mrb[0].mxu0
        %v5008 = vadd.f32 0.0, %v5007
        %v5009 = vpop.f32.mrb[0].mxu0
        %5010 = vmatprep.mubr.f32.mxu0 0.0
        %5011 = vmatmul.mubr.f32.gmra.mrb[0].mxu0 %v4881
        %v5012 = vpop.f32.mrb[0].mxu0
        %v5013 = vadd.f32 0.0, %v5012
        %v5014 = vpop.f32.mrb[0].mxu0
        %5015 = vmatprep.mubr.f32.mxu0 0.0
        %5016 = vmatmul.mubr.f32.gmra.mrb[0].mxu0 %v4884
        %v5017 = vpop.f32.mrb[0].mxu0
        %v5018 = vadd.f32 0.0, %v5017
        %v5019 = vpop.f32.mrb[0].mxu0
        %5020 = vmatprep.mubr.f32.mxu0 0.0
        %5021 = vmatmul.mubr.f32.gmra.mrb[0].mxu0 %v4887
        %v5022 = vpop.f32.mrb[0].mxu0
        %v5023 = vadd.f32 0.0, %v5022
        %v5024 = vpop.f32.mrb[0].mxu0
        %5025 = vmatprep.mubr.f32.mxu0 0.0
        %5026 = vmatmul.mubr.f32.gmra.mrb[0].mxu0 %v4890
        %v5027 = vpop.f32.mrb[0].mxu0
        %v5028 = vadd.f32 0.0, %v5027
        %v5029 = vpop.f32.mrb[0].mxu0
        %5030 = vmatprep.mubr.f32.mxu0 0.0
        %5031 = vmatmul.mubr.f32.gmra.mrb[0].mxu0 %v4893
        %v5032 = vpop.f32.mrb[0].mxu0
        %v5033 = vadd.f32 0.0, %v5032
        %v5034 = vpop.f32.mrb[0].mxu0
        %5035 = vmatprep.mubr.f32.mxu0 0.0
        %5036 = vmatmul.mubr.f32.gmra.mrb[0].mxu0 %v4896
        %v5037 = vpop.f32.mrb[0].mxu0
        %v5038 = vadd.f32 0.0, %v5037
        %v5039 = vpop.f32.mrb[0].mxu0
        %5040 = vmatprep.mubr.f32.mxu0 0.0
        %5041 = vmatmul.mubr.f32.gmra.mrb[0].mxu0 %v4899
        %v5042 = vpop.f32.mrb[0].mxu0
        %v5043 = vadd.f32 0.0, %v5042
        %v5044 = vpop.f32.mrb[0].mxu0
        %5045 = vmatprep.mubr.f32.mxu0 0.0
        %5046 = vmatmul.mubr.f32.gmra.mrb[0].mxu0 %v4902
        %v5047 = vpop.f32.mrb[0].mxu0
        %v5048 = vadd.f32 0.0, %v5047
        %v5049 = vpop.f32.mrb[0].mxu0
        %5050 = vmatprep.mubr.f32.mxu0 0.0
        %5051 = vmatmul.mubr.f32.gmra.mrb[0].mxu0 %v4905
        %v5052 = vpop.f32.mrb[0].mxu0
        %v5053 = vadd.f32 0.0, %v5052
        %v5054 = vpop.f32.mrb[0].mxu0
        %5055 = vmatprep.mubr.f32.mxu0 0.0
        %5056 = vmatmul.mubr.f32.gmra.mrb[0].mxu0 %v4908
        %v5057 = vpop.f32.mrb[0].mxu0
        %v5058 = vadd.f32 0.0, %v5057
        %v5059 = vpop.f32.mrb[0].mxu0
        %5060 = vmatprep.mubr.f32.mxu0 0.0
        %5061 = vmatmul.mubr.f32.gmra.mrb[0].mxu0 %v4911
        %v5062 = vpop.f32.mrb[0].mxu0
        %v5063 = vadd.f32 0.0, %v5062
        %v5064 = vpop.f32.mrb[0].mxu0
        %5065 = vmatprep.mubr.f32.mxu0 0.0
        %5066 = vmatmul.mubr.f32.gmra.mrb[0].mxu0 %v4914
        %v5067 = vpop.f32.mrb[0].mxu0
        %v5068 = vadd.f32 0.0, %v5067
        %v5069 = vpop.f32.mrb[0].mxu0
        %5070 = vdwg.mxu0
        %v5071 = vadd.f32 %v4826, %v4983
        %v5072 = vadd.f32 %v4827, %v4988
        %v5073 = vadd.f32 %v4828, %v4993
        %v5074 = vadd.f32 %v4829, %v4998
        %v5075 = vadd.f32 %v4830, %v5003
        %v5076 = vadd.f32 %v4831, %v5008
        %v5077 = vadd.f32 %v4832, %v5013
        %v5078 = vadd.f32 %v4833, %v5018
        %v5079 = vadd.f32 %v4834, %v5023
        %v5080 = vadd.f32 %v4835, %v5028
        %v5081 = vadd.f32 %v4836, %v5033
        %v5082 = vadd.f32 %v4837, %v5038
        %v5083 = vadd.f32 %v4838, %v5043
        %v5084 = vadd.f32 %v4839, %v5048
        %v5085 = vadd.f32 %v4840, %v5053
        %v5086 = vadd.f32 %v4841, %v5058
        %v5087 = vadd.f32 %v4842, %v5063
        %v5088 = vadd.f32 %v4843, %v5068
        %v5089 = vadd.f32 %v5071, %v2821
        %v5090 = vadd.f32 %v5072, %v2821
        %v5091 = vadd.f32 %v5073, %v2821
        %v5092 = vadd.f32 %v5074, %v2821
        %v5093 = vadd.f32 %v5075, %v2821
        %v5094 = vadd.f32 %v5076, %v2821
        %v5095 = vadd.f32 %v5077, %v2821
        %v5096 = vadd.f32 %v5078, %v2821
        %v5097 = vadd.f32 %v5079, %v2821
        %v5098 = vadd.f32 %v5080, %v2821
        %v5099 = vadd.f32 %v5081, %v2821
        %v5100 = vadd.f32 %v5082, %v2821
        %v5101 = vadd.f32 %v5083, %v2821
        %v5102 = vadd.f32 %v5084, %v2821
        %v5103 = vadd.f32 %v5085, %v2821
        %v5104 = vadd.f32 %v5086, %v2821
        %v5105 = vadd.f32 %v5087, %v2821
        %v5106 = vadd.f32 %v5088, %v2821
        %v5107 = vmax.f32 %v5089, 0.0
        %v5108 = vmax.f32 %v5090, 0.0
        %v5109 = vmax.f32 %v5091, 0.0
        %v5110 = vmax.f32 %v5092, 0.0
        %v5111 = vmax.f32 %v5093, 0.0
        %v5112 = vmax.f32 %v5094, 0.0
        %v5113 = vmax.f32 %v5095, 0.0
        %v5114 = vmax.f32 %v5096, 0.0
        %v5115 = vmax.f32 %v5097, 0.0
        %v5116 = vmax.f32 %v5098, 0.0
        %v5117 = vmax.f32 %v5099, 0.0
        %v5118 = vmax.f32 %v5100, 0.0
        %v5119 = vmax.f32 %v5101, 0.0
        %v5120 = vmax.f32 %v5102, 0.0
        %v5121 = vmax.f32 %v5103, 0.0
        %v5122 = vmax.f32 %v5104, 0.0
        %v5123 = vmax.f32 %v5105, 0.0
        %v5124 = vmax.f32 %v5106, 0.0
        %v5125 = vmul.f32 %v5107, %v583
        %v5126 = vmul.f32 %v5108, %v584
        %v5127 = vmul.f32 %v5109, %v585
        %v5128 = vmul.f32 %v5110, %v586
        %v5129 = vmul.f32 %v5111, %v587
        %v5130 = vmul.f32 %v5112, %v588
        %v5131 = vmul.f32 %v5113, %v589
        %v5132 = vmul.f32 %v5114, %v590
        %v5133 = vmul.f32 %v5115, %v591
        %v5134 = vmul.f32 %v5116, %v592
        %v5135 = vmul.f32 %v5117, %v593
        %v5136 = vmul.f32 %v5118, %v594
        %v5137 = vmul.f32 %v5119, %v595
        %v5138 = vmul.f32 %v5120, %v596
        %v5139 = vmul.f32 %v5121, %v597
        %v5140 = vmul.f32 %v5122, %v598
        %v5141 = vmul.f32 %v5123, %v599
        %v5142 = vmul.f32 %v5124, %v600
        %v5143 = vsel %vm2877, %v5125, 0.0
        %v5144 = vsel %vm2877, %v5126, 0.0
        %v5145 = vadd.f32 %v5143, %v5144
        %v5146 = vsel %vm2877, %v5127, 0.0
        %v5147 = vadd.f32 %v5145, %v5146
        %v5148 = vsel %vm2877, %v5128, 0.0
        %v5149 = vadd.f32 %v5147, %v5148
        %v5150 = vsel %vm2877, %v5129, 0.0
        %v5151 = vadd.f32 %v5149, %v5150
        %v5152 = vsel %vm2877, %v5130, 0.0
        %v5153 = vadd.f32 %v5151, %v5152
        %v5154 = vsel %vm2877, %v5131, 0.0
        %v5155 = vadd.f32 %v5153, %v5154
        %v5156 = vsel %vm2877, %v5132, 0.0
        %v5157 = vadd.f32 %v5155, %v5156
        %v5158 = vsel %vm2877, %v5133, 0.0
        %v5159 = vadd.f32 %v5157, %v5158
        %v5160 = vsel %vm2877, %v5134, 0.0
        %v5161 = vadd.f32 %v5159, %v5160
        %v5162 = vsel %vm2877, %v5135, 0.0
        %v5163 = vadd.f32 %v5161, %v5162
        %v5164 = vsel %vm2877, %v5136, 0.0
        %v5165 = vadd.f32 %v5163, %v5164
        %v5166 = vsel %vm2877, %v5137, 0.0
        %v5167 = vadd.f32 %v5165, %v5166
        %v5168 = vsel %vm2877, %v5138, 0.0
        %v5169 = vadd.f32 %v5167, %v5168
        %v5170 = vsel %vm2877, %v5139, 0.0
        %v5171 = vadd.f32 %v5169, %v5170
        %v5172 = vsel %vm2877, %v5140, 0.0
        %v5173 = vadd.f32 %v5171, %v5172
        %v5174 = vsel %vm2877, %v5141, 0.0
        %v5175 = vadd.f32 %v5173, %v5174
        %v5176 = vsel %vm2877, %v5142, 0.0
        %v5177 = vadd.f32 %v5175, %v5176
        %v5178 = vrot.slane %v5177, 4
        %v5179 = vadd.f32 %v5177, %v5178
        %v5180 = vrot.slane %v5179, 2
        %v5181 = vadd.f32 %v5179, %v5180
        %v5182 = vrot.slane %v5181, 1
        %v5183 = vadd.f32 %v5181, %v5182
        %v5184 = vadd.f32 %v2919, %v5183
        %v5185 = vld [vmem:[%s3] sm:$0xff]
        %v5186 = vld [vmem:[%s3 + $0x8] sm:$0xff]
        %v5187 = vld [vmem:[%s3 + $0x10] sm:$0xff]
        %v5188 = vld [vmem:[%s3 + $0x18] sm:$0xff]
        %v5189 = vld [vmem:[%s4] sm:$0x1]
        %v5191 = vsel %vm2877, %v5184, 0
        %5193 = vmatprep.subr.mxu0 0.0
        %5194 = vmatpush1.msra.mxu0 %v5185
        %5195 = vmatprep.subr.mxu0 0.0
        %5196 = vmatpush1.msra.mxu0 %v5186
        %5197 = vmatprep.subr.mxu0 0.0
        %5198 = vmatpush1.msra.mxu0 %v5187
        %5199 = vmatprep.subr.mxu0 0.0
        %5200 = vmatpush1.msra.mxu0 %v5188
        %5201 = vmatprep.subr.mxu0 0.0
        %5202 = vmatpush1.msra.mxu0 0.0
        %5203 = vmatprep.subr.mxu0 0.0
        %5204 = vmatpush1.msra.mxu0 0.0
        %5205 = vmatprep.subr.mxu0 0.0
        %5206 = vmatpush1.msra.mxu0 0.0
        %5207 = vmatprep.subr.mxu0 0.0
        %5208 = vmatpush1.msra.mxu0 0.0
        %5209 = vmatprep.subr.mxu0 0.0
        %5210 = vmatpush1.msra.mxu0 0.0
        %5211 = vmatprep.subr.mxu0 0.0
        %5212 = vmatpush1.msra.mxu0 0.0
        %5213 = vmatprep.subr.mxu0 0.0
        %5214 = vmatpush1.msra.mxu0 0.0
        %5215 = vmatprep.subr.mxu0 0.0
        %5216 = vmatpush1.msra.mxu0 0.0
        %5217 = vmatprep.subr.mxu0 0.0
        %5218 = vmatpush1.msra.mxu0 0.0
        %5219 = vmatprep.subr.mxu0 0.0
        %5220 = vmatpush1.msra.mxu0 0.0
        %5221 = vmatprep.subr.mxu0 0.0
        %5222 = vmatpush1.msra.mxu0 0.0
        %5223 = vmatprep.subr.mxu0 0.0
        %5224 = vmatpush1.msra.mxu0 0.0
        %5225 = vmatprep.subr.mxu0 0.0
        %5226 = vmatpush1.msra.mxu0 0.0
        %5227 = vmatprep.subr.mxu0 0.0
        %5228 = vmatpush1.msra.mxu0 0.0
        %5229 = vmatprep.subr.mxu0 0.0
        %5230 = vmatpush1.msra.mxu0 0.0
        %5231 = vmatprep.subr.mxu0 0.0
        %5232 = vmatpush1.msra.mxu0 0.0
        %5233 = vmatprep.subr.mxu0 0.0
        %5234 = vmatpush1.msra.mxu0 0.0
        %5235 = vmatprep.subr.mxu0 0.0
        %5236 = vmatpush1.msra.mxu0 0.0
        %5237 = vmatprep.subr.mxu0 0.0
        %5238 = vmatpush1.msra.mxu0 0.0
        %5239 = vmatprep.subr.mxu0 0.0
        %5240 = vmatpush1.msra.mxu0 0.0
        %5241 = vmatprep.subr.mxu0 0.0
        %5242 = vmatpush1.msra.mxu0 0.0
        %5243 = vmatprep.subr.mxu0 0.0
        %5244 = vmatpush1.msra.mxu0 0.0
        %5245 = vmatprep.subr.mxu0 0.0
        %5246 = vmatpush1.msra.mxu0 0.0
        %5247 = vmatprep.subr.mxu0 0.0
        %5248 = vmatpush1.msra.mxu0 0.0
        %5249 = vmatprep.subr.mxu0 0.0
        %5250 = vmatpush1.msra.mxu0 0.0
        %5251 = vmatprep.subr.mxu0 0.0
        %5252 = vmatpush1.msra.mxu0 0.0
        %5253 = vmatprep.subr.mxu0 0.0
        %5254 = vmatpush1.msra.mxu0 0.0
        %5255 = vmatprep.subr.mxu0 0.0
        %5256 = vmatpush1.msra.mxu0 0.0
        %5257 = vmatprep.mubr.f32.mxu0 0.0
        %5258 = vmatmul.mubr.f32.gmra.mrb[0].mxu0 %v5191
        %v5259 = vpop.f32.mrb[0].mxu0
        %v5260 = vadd.f32 %v5189, %v5259
        %v5261 = vpop.f32.mrb[0].mxu0
        %5262 = vdwg.mxu0
        %vm5263 = vcmask 32768
        %5264 = vst.msk [vmem:[%s216] sm:$0x1] %vm5263, %v5260
        %s5265 = sand.u32 %s137, 1
        %s5266 = scalar_lea.sflag [#allocation3], %s5265
        %s5267 = sand.u32 %s137, 1
        %s5268 = scalar_lea.vmem [#allocation2], %s5267
        // Predicated region
        $region41: #{tpu_custom_call.1} parent=39 // pred_check
          %p5269 = pneg %p147
        $region42: #{tpu_custom_call.1} parent=39 // pred_check_branch
          %5271 = sbr.rel (%p5269) target = $region44
        $region43: #{tpu_custom_call.1} parent=39 // pred_region
          %s5273 = ssub.s32 16, 16
          %5274 = vsyncadd %s5266, %s5273
          %s5275 = smul.addr %s19, 16
          %s5276 = scalar_lea.hbm %s5, %s5275
          %s5278 = sshll.u32 %s5268, 4
          %s5279 = int_to_ptr.vmem [resolvable:$true] %s5278
          %5281 = dma.vmem_to_hbm [thread:$0]  %s5279, 16, %s5276, %s5266
        $region44: #{tpu_custom_call.1} parent=39 // pred_fallthru
          _
      $region40: #{tpu_custom_call.1} parent=5 // pred_fallthru
        _
      %p5282 = scmp.le.s32.totalorder 2, %s14
      // Predicated region
      $region45: #{tpu_custom_call.1} parent=5 // pred_check
        %p5283 = pneg %p5282
      $region46: #{tpu_custom_call.1} parent=5 // pred_check_branch
        %5285 = sbr.rel (%p5283) target = $region48
      $region47: #{tpu_custom_call.1} parent=5 // pred_region
        %s5286 = ssub.s32 %s14, 2
        // Predicated region
        $region49: #{tpu_custom_call.1} parent=47 // pred_check
          %p5287 = pneg %p153
        $region50: #{tpu_custom_call.1} parent=47 // pred_check_branch
          %5289 = sbr.rel (%p5287) target = $region52
        $region51: #{tpu_custom_call.1} parent=47 // pred_region
          %s5290 = sand.u32 %s138, 1
          %s5291 = scalar_lea.sflag [#allocation3], %s5290
          %s5292 = sand.u32 %s138, 1
          %s5293 = scalar_lea.vmem [#allocation2], %s5292
          %5294 = dma.done %s5291, 16
        $region52: #{tpu_custom_call.1} parent=47 // pred_fallthru
          _
      $region48: #{tpu_custom_call.1} parent=5 // pred_fallthru
        _
    $region6: #{tpu_custom_call.1} parent=1 // loop_footer
      %s18 = sadd.s32 1, %s14
    $region7: #{tpu_custom_call.1} parent=1 // loop_footer_branch
      %13 = sbr.rel target = $region3
    $region8: #{tpu_custom_call.1} parent=1 // loop_exit
      _
    %5295 = vsyncpa [#allocation3], 1
    %s5296 = scalar_lea.sflag [#allocation3], 1
    %5297 = vsyncpa %s5296, 1

</llo_original>
